<compile_context>
chip_gen: v7x
topology: tpu7x:2x2x1
jax: 0.10.0
libtpu: 0.0.40
codegen_flags: <defaults>
</compile_context>

<pallas_src>
import functools

import numpy as np
import jax
import jax.numpy as jnp
from jax import lax
from jax.experimental import pallas as pl
from jax.experimental.pallas import tpu as pltpu


def _round_up(x, m):
    return (x + m - 1) // m * m


# ----------------------------- kernel helpers -------------------------------

def _mlp(x_bf, w1, b1, w2, b2, w3, b3):
    # bf16 operands, f32 accumulation; biases stay [1, dim] (broadcasting add),
    # ReLU in f32.
    h = jnp.maximum(jnp.dot(x_bf, w1, preferred_element_type=jnp.float32) + b1, 0.0)
    h = jnp.maximum(jnp.dot(h.astype(jnp.bfloat16), w2,
                            preferred_element_type=jnp.float32) + b2, 0.0)
    return jnp.dot(h.astype(jnp.bfloat16), w3,
                   preferred_element_type=jnp.float32) + b3


def _lstm_gates(gates, c, dim):
    # PyTorch nn.LSTM gate order: i, f, g, o.  `gates` already includes
    # x @ W_ih + h @ W_hh + (b_ih + b_hh) via the fused GEMM in the caller.
    i = jax.nn.sigmoid(gates[:, 0 * dim:1 * dim])
    f = jax.nn.sigmoid(gates[:, 1 * dim:2 * dim])
    g = jnp.tanh(gates[:, 2 * dim:3 * dim])
    o = jax.nn.sigmoid(gates[:, 3 * dim:4 * dim])
    c_new = f * c + i * g
    h_new = o * jnp.tanh(c_new)
    return h_new.astype(jnp.bfloat16), c_new


# ------------------------------- the kernel ---------------------------------

def neurosat_kernel(adj_pos_ref, adj_neg_ref, adjt_pos_ref, adjt_neg_ref,
                    l_init_ref, c_init_ref,
                    lm_w1, lm_b1, lm_w2, lm_b2, lm_w3, lm_b3,
                    cm_w1, cm_b1, cm_w2, cm_b2, cm_w3, cm_b3,
                    cu_w, cu_b,
                    lu_w, lu_b,
                    lv_w1, lv_b1, lv_w2, lv_b2,
                    h_out_ref,
                    *, dim, n_rounds):
    bf16 = jnp.bfloat16
    n_vars_p = adj_pos_ref.shape[0]
    n_clauses_p = adj_pos_ref.shape[1]

    # Loop-invariant values (adjacency halves + hoisted transposes, weights).
    adj_pos = adj_pos_ref[...]        # bf16 [Vp, Cp]
    adj_neg = adj_neg_ref[...]        # bf16 [Vp, Cp]
    adjt_pos = adjt_pos_ref[...]      # bf16 [Cp, Vp]
    adjt_neg = adjt_neg_ref[...]      # bf16 [Cp, Vp]

    lm_w1v, lm_w2v, lm_w3v = lm_w1[...], lm_w2[...], lm_w3[...]
    lm_b1v, lm_b2v, lm_b3v = lm_b1[...], lm_b2[...], lm_b3[...]
    cm_w1v, cm_w2v, cm_w3v = cm_w1[...], cm_w2[...], cm_w3[...]
    cm_b1v, cm_b2v, cm_b3v = cm_b1[...], cm_b2[...], cm_b3[...]
    cu_wv, cu_bv = cu_w[...], cu_b[...]          # [2*dim, 4*dim], [1, 4*dim]
    lu_wv, lu_bv = lu_w[...], lu_b[...]          # [3*dim, 4*dim], [1, 4*dim]

    # L_init(1).repeat / C_init(1).repeat + zero cell states.  Hidden states
    # in bf16, cell states in f32.  (Padded rows carry the init state too but
    # adj pad rows/cols are zero so they never couple to real rows.)
    Lh0 = jnp.broadcast_to(l_init_ref[...], (n_vars_p, dim)).astype(bf16)
    Ch0 = jnp.broadcast_to(c_init_ref[...], (n_clauses_p, dim)).astype(bf16)
    Lc0 = jnp.zeros((n_vars_p, dim), jnp.float32)
    Cc0 = jnp.zeros((n_clauses_p, dim), jnp.float32)

    def round_fn(_, state):
        Lh_p, Lh_n, Lc_p, Lc_n, Ch, Cc = state

        # ---- literal -> clause messages (no adj transpose inside the loop) --
        Lpre_p = _mlp(Lh_p, lm_w1v, lm_b1v, lm_w2v, lm_b2v, lm_w3v, lm_b3v)
        Lpre_n = _mlp(Lh_n, lm_w1v, lm_b1v, lm_w2v, lm_b2v, lm_w3v, lm_b3v)
        LC_msg = (jnp.dot(adjt_pos, Lpre_p.astype(bf16),
                          preferred_element_type=jnp.float32)
                  + jnp.dot(adjt_neg, Lpre_n.astype(bf16),
                            preferred_element_type=jnp.float32))        # [Cp, dim]

        # ---- C_update LSTM with fused gate GEMM: [x | h] @ [W_ih; W_hh] ----
        xc = jnp.concatenate([LC_msg.astype(bf16), Ch], axis=1)         # [Cp, 2*dim]
        gates_c = jnp.dot(xc, cu_wv, preferred_element_type=jnp.float32) + cu_bv
        Ch_new, Cc_new = _lstm_gates(gates_c, Cc, dim)

        # ---- clause -> literal messages -------------------------------------
        C_pre = _mlp(Ch_new, cm_w1v, cm_b1v, cm_w2v, cm_b2v, cm_w3v, cm_b3v)
        C_pre_bf = C_pre.astype(bf16)
        CL_p = jnp.dot(adj_pos, C_pre_bf, preferred_element_type=jnp.float32)
        CL_n = jnp.dot(adj_neg, C_pre_bf, preferred_element_type=jnp.float32)

        # ---- L_update LSTM.  flip(Lh) on the pos half is Lh_neg (and vice
        # versa): the flip is a zero-cost operand swap.  Gate GEMM fused over
        # [CL_msg | flip(Lh) | Lh] @ [W_ih ; W_hh]  (K = 3*dim). ---------------
        x_p = jnp.concatenate([CL_p.astype(bf16), Lh_n, Lh_p], axis=1)  # [Vp, 3*dim]
        x_n = jnp.concatenate([CL_n.astype(bf16), Lh_p, Lh_n], axis=1)
        gates_p = jnp.dot(x_p, lu_wv, preferred_element_type=jnp.float32) + lu_bv
        gates_n = jnp.dot(x_n, lu_wv, preferred_element_type=jnp.float32) + lu_bv
        Lh_p_new, Lc_p_new = _lstm_gates(gates_p, Lc_p, dim)
        Lh_n_new, Lc_n_new = _lstm_gates(gates_n, Lc_n, dim)

        return (Lh_p_new, Lh_n_new, Lc_p_new, Lc_n_new, Ch_new, Cc_new)

    Lh_p, Lh_n, _, _, _, _ = lax.fori_loop(
        0, n_rounds, round_fn, (Lh0, Lh0, Lc0, Lc0, Ch0, Cc0))

    # First two L_vote layers in-kernel (lane-dense [*, dim] output store);
    # the tiny final [dim -> 1] projection is finished in the wrapper to avoid
    # masked last-dim-1 partial stores.
    lv_w1v, lv_w2v = lv_w1[...], lv_w2[...]
    lv_b1v, lv_b2v = lv_b1[...], lv_b2[...]

    def vote_head(h_bf):
        y = jnp.maximum(jnp.dot(h_bf, lv_w1v,
                                preferred_element_type=jnp.float32) + lv_b1v, 0.0)
        return jnp.maximum(jnp.dot(y.astype(bf16), lv_w2v,
                                   preferred_element_type=jnp.float32) + lv_b2v, 0.0)

    h_out_ref[0:n_vars_p, :] = vote_head(Lh_p)
    h_out_ref[n_vars_p:2 * n_vars_p, :] = vote_head(Lh_n)


# ------------------------------ JAX wrapper ----------------------------------

def init_params(key, dim):
    """Deterministic synthetic parameters (shapes match the PyTorch module,
    Linear/LSTM weights pre-transposed to [in_dim, out_dim])."""
    names_shapes = [
        ("L_init_w", (dim, 1)), ("L_init_b", (dim,)),
        ("C_init_w", (dim, 1)), ("C_init_b", (dim,)),
        ("lm_w1", (dim, dim)), ("lm_b1", (1, dim)),
        ("lm_w2", (dim, dim)), ("lm_b2", (1, dim)),
        ("lm_w3", (dim, dim)), ("lm_b3", (1, dim)),
        ("cm_w1", (dim, dim)), ("cm_b1", (1, dim)),
        ("cm_w2", (dim, dim)), ("cm_b2", (1, dim)),
        ("cm_w3", (dim, dim)), ("cm_b3", (1, dim)),
        ("cu_wih", (dim, 4 * dim)), ("cu_whh", (dim, 4 * dim)),
        ("cu_bih", (1, 4 * dim)), ("cu_bhh", (1, 4 * dim)),
        ("lu_wih", (2 * dim, 4 * dim)), ("lu_whh", (dim, 4 * dim)),
        ("lu_bih", (1, 4 * dim)), ("lu_bhh", (1, 4 * dim)),
        ("lv_w1", (dim, dim)), ("lv_b1", (1, dim)),
        ("lv_w2", (dim, dim)), ("lv_b2", (1, dim)),
        ("lv_w3", (1, dim)), ("lv_b3", (1, 1)),
    ]
    keys = jax.random.split(key, len(names_shapes))
    params = {n: (jax.random.normal(k, s, jnp.float32) * 0.1)
              for (n, s), k in zip(names_shapes, keys)}
    return params


def _vmem_limit_bytes():
    # Generation-aware VMEM budget: headroom on v7x (64 MiB physical per TC),
    # use most of the 128 MiB parts (v5e / v6e).
    try:
        cap = int(pltpu.get_tpu_info().vmem_capacity_bytes)
    except Exception:
        return 46 << 20
    if cap <= (64 << 20):
        return 46 << 20
    return 110 << 20


def neurosat_forward(params, adj, n_vars_list, n_clauses_list, *, dim, n_rounds):
    n_vars = int(sum(n_vars_list))
    n_clauses = int(sum(n_clauses_list))
    n_probs = len(n_vars_list)
    assert adj.shape == (2 * n_vars, n_clauses)

    # Pad each literal polarity half and the clause axis to multiples of 16
    # (bf16 sublane packing).  Pad rows/cols of adj are zero, so padded rows
    # evolve independently and never influence real literals / clauses.
    n_vars_p = _round_up(n_vars, 16)
    n_clauses_p = _round_up(n_clauses, 16)
    pad_v = n_vars_p - n_vars
    pad_c = n_clauses_p - n_clauses

    adj_f32 = adj.astype(jnp.float32)
    adj_pos = jnp.pad(adj_f32[:n_vars, :], ((0, pad_v), (0, pad_c)))
    adj_neg = jnp.pad(adj_f32[n_vars:, :], ((0, pad_v), (0, pad_c)))
    # adj entries are exactly 0/1 -> bf16 is lossless and halves the footprint.
    adj_pos_bf = adj_pos.astype(jnp.bfloat16)
    adj_neg_bf = adj_neg.astype(jnp.bfloat16)
    adjt_pos_bf = adj_pos.T.astype(jnp.bfloat16)     # hoisted transposes
    adjt_neg_bf = adj_neg.T.astype(jnp.bfloat16)

    bf = lambda a: a.astype(jnp.bfloat16)

    # L_init / C_init of the scalar 1.0  ->  W[:, 0] + b, shaped (1, dim)
    l_init = (params["L_init_w"][:, 0] + params["L_init_b"]).reshape(1, dim)
    c_init = (params["C_init_w"][:, 0] + params["C_init_b"]).reshape(1, dim)

    # Fused LSTM gate weights: [W_ih ; W_hh] stacked along K, biases pre-summed.
    cu_w = jnp.concatenate([params["cu_wih"], params["cu_whh"]], axis=0)  # [2*dim, 4*dim]
    lu_w = jnp.concatenate([params["lu_wih"], params["lu_whh"]], axis=0)  # [3*dim, 4*dim]
    cu_b = params["cu_bih"] + params["cu_bhh"]
    lu_b = params["lu_bih"] + params["lu_bhh"]

    args = [
        adj_pos_bf, adj_neg_bf, adjt_pos_bf, adjt_neg_bf,
        l_init.astype(jnp.float32), c_init.astype(jnp.float32),
        bf(params["lm_w1"]), params["lm_b1"], bf(params["lm_w2"]), params["lm_b2"],
        bf(params["lm_w3"]), params["lm_b3"],
        bf(params["cm_w1"]), params["cm_b1"], bf(params["cm_w2"]), params["cm_b2"],
        bf(params["cm_w3"]), params["cm_b3"],
        bf(cu_w), cu_b,
        bf(lu_w), lu_b,
        bf(params["lv_w1"]), params["lv_b1"], bf(params["lv_w2"]), params["lv_b2"],
    ]

    vspec = pl.BlockSpec(memory_space=pltpu.MemorySpace.VMEM)
    h2 = pl.pallas_call(
        functools.partial(neurosat_kernel, dim=dim, n_rounds=n_rounds),
        out_shape=jax.ShapeDtypeStruct((2 * n_vars_p, dim), jnp.float32),
        in_specs=[vspec] * len(args),
        out_specs=vspec,
        compiler_params=pltpu.CompilerParams(
            vmem_limit_bytes=_vmem_limit_bytes()),
    )(*args)

    # Final L_vote projection + per-problem means (tiny, lane-sparse) in JAX
    # glue; a single segment reduction instead of per-problem Python slices.
    vote = h2 @ params["lv_w3"].T + params["lv_b3"]          # [2*n_vars_p, 1]
    vote_pos = vote[:n_vars, :]
    vote_neg = vote[n_vars_p:n_vars_p + n_vars, :]
    vote_join = jnp.concatenate([vote_pos, vote_neg], axis=1)   # [n_vars, 2]
    seg_ids = jnp.asarray(np.repeat(np.arange(n_probs),
                                    np.asarray(n_vars_list, dtype=np.int64)),
                          jnp.int32)
    sums = jax.ops.segment_sum(vote_join.sum(axis=1), seg_ids,
                               num_segments=n_probs)
    counts = jnp.asarray([2.0 * nv for nv in n_vars_list], jnp.float32)
    return sums / counts


# --------------------------------- main --------------------------------------

if __name__ == "__main__":
    # NOTE: these are deliberately tiny correctness-check shapes; benchmark at
    # realistic SR(40)+ adjacency sizes with n_rounds=26 and xprof min-of-N.
    dim = 128        # module default hidden size
    n_rounds = 4     # small round count for the test (module default is 26)
    n_vars_list = [6, 7]       # per-problem variable counts (exercises padding)
    n_clauses_list = [12, 14]  # per-problem clause counts

    key = jax.random.PRNGKey(0)
    k_params, k_adj = jax.random.split(key)

    params = init_params(k_params, dim)

    n_vars = sum(n_vars_list)
    n_clauses = sum(n_clauses_list)
    # synthetic literal/clause adjacency [2*n_vars, n_clauses] with 0/1 entries
    adj = (jax.random.uniform(k_adj, (2 * n_vars, n_clauses)) > 0.7).astype(jnp.float32)

    vote_mean = neurosat_forward(params, adj, n_vars_list, n_clauses_list,
                                 dim=dim, n_rounds=n_rounds)
    jax.block_until_ready(vote_mean)
    assert vote_mean.shape == (len(n_vars_list),)
    assert bool(jnp.all(jnp.isfinite(vote_mean)))
    print("KERNEL_OK")
</pallas_src>

<mosaic_0001>
module attributes {stable_mosaic.version = 11 : i64} {
  func.func @neurosat_kernel(%arg0: memref<16x32xbf16, #tpu.memory_space<vmem>>, %arg1: memref<16x32xbf16, #tpu.memory_space<vmem>>, %arg2: memref<32x16xbf16, #tpu.memory_space<vmem>>, %arg3: memref<32x16xbf16, #tpu.memory_space<vmem>>, %arg4: memref<1x128xf32, #tpu.memory_space<vmem>>, %arg5: memref<1x128xf32, #tpu.memory_space<vmem>>, %arg6: memref<128x128xbf16, #tpu.memory_space<vmem>>, %arg7: memref<1x128xf32, #tpu.memory_space<vmem>>, %arg8: memref<128x128xbf16, #tpu.memory_space<vmem>>, %arg9: memref<1x128xf32, #tpu.memory_space<vmem>>, %arg10: memref<128x128xbf16, #tpu.memory_space<vmem>>, %arg11: memref<1x128xf32, #tpu.memory_space<vmem>>, %arg12: memref<128x128xbf16, #tpu.memory_space<vmem>>, %arg13: memref<1x128xf32, #tpu.memory_space<vmem>>, %arg14: memref<128x128xbf16, #tpu.memory_space<vmem>>, %arg15: memref<1x128xf32, #tpu.memory_space<vmem>>, %arg16: memref<128x128xbf16, #tpu.memory_space<vmem>>, %arg17: memref<1x128xf32, #tpu.memory_space<vmem>>, %arg18: memref<256x512xbf16, #tpu.memory_space<vmem>>, %arg19: memref<1x512xf32, #tpu.memory_space<vmem>>, %arg20: memref<384x512xbf16, #tpu.memory_space<vmem>>, %arg21: memref<1x512xf32, #tpu.memory_space<vmem>>, %arg22: memref<128x128xbf16, #tpu.memory_space<vmem>>, %arg23: memref<1x128xf32, #tpu.memory_space<vmem>>, %arg24: memref<128x128xbf16, #tpu.memory_space<vmem>>, %arg25: memref<1x128xf32, #tpu.memory_space<vmem>>, %arg26: memref<32x128xf32, #tpu.memory_space<vmem>>) attributes {dimension_semantics = [], scalar_prefetch = 0 : i64, scratch_operands = 0 : i64, tpu.core_type = #tpu.core_type<tc>} {
    %c0 = arith.constant 0 : index
    %c0_0 = arith.constant 0 : index
    %0 = vector.load %arg0[%c0, %c0_0] : memref<16x32xbf16, #tpu.memory_space<vmem>>, vector<16x32xbf16>
    %c0_1 = arith.constant 0 : index
    %c0_2 = arith.constant 0 : index
    %1 = vector.load %arg1[%c0_1, %c0_2] : memref<16x32xbf16, #tpu.memory_space<vmem>>, vector<16x32xbf16>
    %c0_3 = arith.constant 0 : index
    %c0_4 = arith.constant 0 : index
    %2 = vector.load %arg2[%c0_3, %c0_4] : memref<32x16xbf16, #tpu.memory_space<vmem>>, vector<32x16xbf16>
    %c0_5 = arith.constant 0 : index
    %c0_6 = arith.constant 0 : index
    %3 = vector.load %arg3[%c0_5, %c0_6] : memref<32x16xbf16, #tpu.memory_space<vmem>>, vector<32x16xbf16>
    %c0_7 = arith.constant 0 : index
    %c0_8 = arith.constant 0 : index
    %4 = vector.load %arg6[%c0_7, %c0_8] : memref<128x128xbf16, #tpu.memory_space<vmem>>, vector<128x128xbf16>
    %c0_9 = arith.constant 0 : index
    %c0_10 = arith.constant 0 : index
    %5 = vector.load %arg8[%c0_9, %c0_10] : memref<128x128xbf16, #tpu.memory_space<vmem>>, vector<128x128xbf16>
    %c0_11 = arith.constant 0 : index
    %c0_12 = arith.constant 0 : index
    %6 = vector.load %arg10[%c0_11, %c0_12] : memref<128x128xbf16, #tpu.memory_space<vmem>>, vector<128x128xbf16>
    %c0_13 = arith.constant 0 : index
    %c0_14 = arith.constant 0 : index
    %7 = vector.load %arg7[%c0_13, %c0_14] : memref<1x128xf32, #tpu.memory_space<vmem>>, vector<1x128xf32>
    %c0_15 = arith.constant 0 : index
    %c0_16 = arith.constant 0 : index
    %8 = vector.load %arg9[%c0_15, %c0_16] : memref<1x128xf32, #tpu.memory_space<vmem>>, vector<1x128xf32>
    %c0_17 = arith.constant 0 : index
    %c0_18 = arith.constant 0 : index
    %9 = vector.load %arg11[%c0_17, %c0_18] : memref<1x128xf32, #tpu.memory_space<vmem>>, vector<1x128xf32>
    %c0_19 = arith.constant 0 : index
    %c0_20 = arith.constant 0 : index
    %10 = vector.load %arg12[%c0_19, %c0_20] : memref<128x128xbf16, #tpu.memory_space<vmem>>, vector<128x128xbf16>
    %c0_21 = arith.constant 0 : index
    %c0_22 = arith.constant 0 : index
    %11 = vector.load %arg14[%c0_21, %c0_22] : memref<128x128xbf16, #tpu.memory_space<vmem>>, vector<128x128xbf16>
    %c0_23 = arith.constant 0 : index
    %c0_24 = arith.constant 0 : index
    %12 = vector.load %arg16[%c0_23, %c0_24] : memref<128x128xbf16, #tpu.memory_space<vmem>>, vector<128x128xbf16>
    %c0_25 = arith.constant 0 : index
    %c0_26 = arith.constant 0 : index
    %13 = vector.load %arg13[%c0_25, %c0_26] : memref<1x128xf32, #tpu.memory_space<vmem>>, vector<1x128xf32>
    %c0_27 = arith.constant 0 : index
    %c0_28 = arith.constant 0 : index
    %14 = vector.load %arg15[%c0_27, %c0_28] : memref<1x128xf32, #tpu.memory_space<vmem>>, vector<1x128xf32>
    %c0_29 = arith.constant 0 : index
    %c0_30 = arith.constant 0 : index
    %15 = vector.load %arg17[%c0_29, %c0_30] : memref<1x128xf32, #tpu.memory_space<vmem>>, vector<1x128xf32>
    %c0_31 = arith.constant 0 : index
    %c0_32 = arith.constant 0 : index
    %16 = vector.load %arg18[%c0_31, %c0_32] : memref<256x512xbf16, #tpu.memory_space<vmem>>, vector<256x512xbf16>
    %c0_33 = arith.constant 0 : index
    %c0_34 = arith.constant 0 : index
    %17 = vector.load %arg19[%c0_33, %c0_34] : memref<1x512xf32, #tpu.memory_space<vmem>>, vector<1x512xf32>
    %c0_35 = arith.constant 0 : index
    %c0_36 = arith.constant 0 : index
    %18 = vector.load %arg20[%c0_35, %c0_36] : memref<384x512xbf16, #tpu.memory_space<vmem>>, vector<384x512xbf16>
    %c0_37 = arith.constant 0 : index
    %c0_38 = arith.constant 0 : index
    %19 = vector.load %arg21[%c0_37, %c0_38] : memref<1x512xf32, #tpu.memory_space<vmem>>, vector<1x512xf32>
    %c0_39 = arith.constant 0 : index
    %c0_40 = arith.constant 0 : index
    %20 = vector.load %arg4[%c0_39, %c0_40] : memref<1x128xf32, #tpu.memory_space<vmem>>, vector<1x128xf32>
    %21 = vector.shape_cast %20 : vector<1x128xf32> to vector<1x128xf32>
    %22 = vector.broadcast %21 : vector<1x128xf32> to vector<16x128xf32>
    %23 = arith.truncf %22 : vector<16x128xf32> to vector<16x128xbf16>
    %c0_41 = arith.constant 0 : index
    %c0_42 = arith.constant 0 : index
    %24 = vector.load %arg5[%c0_41, %c0_42] : memref<1x128xf32, #tpu.memory_space<vmem>>, vector<1x128xf32>
    %25 = vector.shape_cast %24 : vector<1x128xf32> to vector<1x128xf32>
    %26 = vector.broadcast %25 : vector<1x128xf32> to vector<32x128xf32>
    %27 = arith.truncf %26 : vector<32x128xf32> to vector<32x128xbf16>
    %cst = arith.constant 0.000000e+00 : f32
    %28 = vector.broadcast %cst : f32 to vector<16x128xf32>
    %cst_43 = arith.constant 0.000000e+00 : f32
    %29 = vector.broadcast %cst_43 : f32 to vector<32x128xf32>
    %c0_i32 = arith.constant 0 : i32
    %c4_i32 = arith.constant 4 : i32
    %30 = arith.addi %c0_i32, %c4_i32 : i32
    %c1_i32 = arith.constant 1 : i32
    %31:6 = scf.for %arg27 = %c0_i32 to %30 step %c1_i32 iter_args(%arg28 = %23, %arg29 = %23, %arg30 = %28, %arg31 = %28, %arg32 = %27, %arg33 = %29) -> (vector<16x128xbf16>, vector<16x128xbf16>, vector<16x128xf32>, vector<16x128xf32>, vector<32x128xbf16>, vector<32x128xf32>)  : i32 {
      %cst_63 = arith.constant dense<0.000000e+00> : vector<16x128xf32>
      %60 = tpu.matmul %arg28, %4, %cst_63 {dimension_numbers = #tpu.dot_dimension_numbers<[1], [0], [0], [1], [0, 0, 1, 1], [], []>} : vector<16x128xbf16>, vector<128x128xbf16>, vector<16x128xf32> -> vector<16x128xf32>
      %61 = vector.broadcast %7 : vector<1x128xf32> to vector<16x128xf32>
      %62 = arith.addf %60, %61 : vector<16x128xf32>
      %cst_64 = arith.constant 0.000000e+00 : f32
      %63 = vector.broadcast %cst_64 : f32 to vector<16x128xf32>
      %64 = arith.maximumf %62, %63 : vector<16x128xf32>
      %65 = arith.truncf %64 : vector<16x128xf32> to vector<16x128xbf16>
      %cst_65 = arith.constant dense<0.000000e+00> : vector<16x128xf32>
      %66 = tpu.matmul %65, %5, %cst_65 {dimension_numbers = #tpu.dot_dimension_numbers<[1], [0], [0], [1], [0, 0, 1, 1], [], []>} : vector<16x128xbf16>, vector<128x128xbf16>, vector<16x128xf32> -> vector<16x128xf32>
      %67 = vector.broadcast %8 : vector<1x128xf32> to vector<16x128xf32>
      %68 = arith.addf %66, %67 : vector<16x128xf32>
      %cst_66 = arith.constant 0.000000e+00 : f32
      %69 = vector.broadcast %cst_66 : f32 to vector<16x128xf32>
      %70 = arith.maximumf %68, %69 : vector<16x128xf32>
      %71 = arith.truncf %70 : vector<16x128xf32> to vector<16x128xbf16>
      %cst_67 = arith.constant dense<0.000000e+00> : vector<16x128xf32>
      %72 = tpu.matmul %71, %6, %cst_67 {dimension_numbers = #tpu.dot_dimension_numbers<[1], [0], [0], [1], [0, 0, 1, 1], [], []>} : vector<16x128xbf16>, vector<128x128xbf16>, vector<16x128xf32> -> vector<16x128xf32>
      %73 = vector.broadcast %9 : vector<1x128xf32> to vector<16x128xf32>
      %74 = arith.addf %72, %73 : vector<16x128xf32>
      %cst_68 = arith.constant dense<0.000000e+00> : vector<16x128xf32>
      %75 = tpu.matmul %arg29, %4, %cst_68 {dimension_numbers = #tpu.dot_dimension_numbers<[1], [0], [0], [1], [0, 0, 1, 1], [], []>} : vector<16x128xbf16>, vector<128x128xbf16>, vector<16x128xf32> -> vector<16x128xf32>
      %76 = vector.broadcast %7 : vector<1x128xf32> to vector<16x128xf32>
      %77 = arith.addf %75, %76 : vector<16x128xf32>
      %cst_69 = arith.constant 0.000000e+00 : f32
      %78 = vector.broadcast %cst_69 : f32 to vector<16x128xf32>
      %79 = arith.maximumf %77, %78 : vector<16x128xf32>
      %80 = arith.truncf %79 : vector<16x128xf32> to vector<16x128xbf16>
      %cst_70 = arith.constant dense<0.000000e+00> : vector<16x128xf32>
      %81 = tpu.matmul %80, %5, %cst_70 {dimension_numbers = #tpu.dot_dimension_numbers<[1], [0], [0], [1], [0, 0, 1, 1], [], []>} : vector<16x128xbf16>, vector<128x128xbf16>, vector<16x128xf32> -> vector<16x128xf32>
      %82 = vector.broadcast %8 : vector<1x128xf32> to vector<16x128xf32>
      %83 = arith.addf %81, %82 : vector<16x128xf32>
      %cst_71 = arith.constant 0.000000e+00 : f32
      %84 = vector.broadcast %cst_71 : f32 to vector<16x128xf32>
      %85 = arith.maximumf %83, %84 : vector<16x128xf32>
      %86 = arith.truncf %85 : vector<16x128xf32> to vector<16x128xbf16>
      %cst_72 = arith.constant dense<0.000000e+00> : vector<16x128xf32>
      %87 = tpu.matmul %86, %6, %cst_72 {dimension_numbers = #tpu.dot_dimension_numbers<[1], [0], [0], [1], [0, 0, 1, 1], [], []>} : vector<16x128xbf16>, vector<128x128xbf16>, vector<16x128xf32> -> vector<16x128xf32>
      %88 = vector.broadcast %9 : vector<1x128xf32> to vector<16x128xf32>
      %89 = arith.addf %87, %88 : vector<16x128xf32>
      %90 = arith.truncf %74 : vector<16x128xf32> to vector<16x128xbf16>
      %cst_73 = arith.constant dense<0.000000e+00> : vector<32x128xf32>
      %91 = tpu.matmul %2, %90, %cst_73 {dimension_numbers = #tpu.dot_dimension_numbers<[1], [0], [0], [1], [0, 0, 1, 1], [], []>} : vector<32x16xbf16>, vector<16x128xbf16>, vector<32x128xf32> -> vector<32x128xf32>
      %92 = arith.truncf %89 : vector<16x128xf32> to vector<16x128xbf16>
      %cst_74 = arith.constant dense<0.000000e+00> : vector<32x128xf32>
      %93 = tpu.matmul %3, %92, %cst_74 {dimension_numbers = #tpu.dot_dimension_numbers<[1], [0], [0], [1], [0, 0, 1, 1], [], []>} : vector<32x16xbf16>, vector<16x128xbf16>, vector<32x128xf32> -> vector<32x128xf32>
      %94 = arith.addf %91, %93 : vector<32x128xf32>
      %95 = arith.truncf %94 : vector<32x128xf32> to vector<32x128xbf16>
      %96 = tpu.concatenate %95, %arg32 in 1 : vector<32x128xbf16>, vector<32x128xbf16> -> vector<32x256xbf16>
      %cst_75 = arith.constant dense<0.000000e+00> : vector<32x512xf32>
      %97 = tpu.matmul %96, %16, %cst_75 {dimension_numbers = #tpu.dot_dimension_numbers<[1], [0], [0], [1], [0, 0, 1, 1], [], []>} : vector<32x256xbf16>, vector<256x512xbf16>, vector<32x512xf32> -> vector<32x512xf32>
      %98 = vector.broadcast %17 : vector<1x512xf32> to vector<32x512xf32>
      %99 = arith.addf %97, %98 : vector<32x512xf32>
      %100 = vector.extract_strided_slice %99 {offsets = [0, 0], sizes = [32, 128], strides = [1, 1]} : vector<32x512xf32> to vector<32x128xf32>
      %101 = arith.negf %100 : vector<32x128xf32>
      %102 = math.exp %101 : vector<32x128xf32>
      %cst_76 = arith.constant 1.000000e+00 : f32
      %103 = vector.broadcast %cst_76 : f32 to vector<32x128xf32>
      %104 = arith.addf %103, %102 : vector<32x128xf32>
      %105 = arith.divf %103, %104 : vector<32x128xf32>
      %106 = vector.extract_strided_slice %99 {offsets = [0, 128], sizes = [32, 128], strides = [1, 1]} : vector<32x512xf32> to vector<32x128xf32>
      %107 = arith.negf %106 : vector<32x128xf32>
      %108 = math.exp %107 : vector<32x128xf32>
      %cst_77 = arith.constant 1.000000e+00 : f32
      %109 = vector.broadcast %cst_77 : f32 to vector<32x128xf32>
      %110 = arith.addf %109, %108 : vector<32x128xf32>
      %111 = arith.divf %109, %110 : vector<32x128xf32>
      %112 = vector.extract_strided_slice %99 {offsets = [0, 256], sizes = [32, 128], strides = [1, 1]} : vector<32x512xf32> to vector<32x128xf32>
      %113 = math.tanh %112 : vector<32x128xf32>
      %114 = vector.extract_strided_slice %99 {offsets = [0, 384], sizes = [32, 128], strides = [1, 1]} : vector<32x512xf32> to vector<32x128xf32>
      %115 = arith.negf %114 : vector<32x128xf32>
      %116 = math.exp %115 : vector<32x128xf32>
      %cst_78 = arith.constant 1.000000e+00 : f32
      %117 = vector.broadcast %cst_78 : f32 to vector<32x128xf32>
      %118 = arith.addf %117, %116 : vector<32x128xf32>
      %119 = arith.divf %117, %118 : vector<32x128xf32>
      %120 = arith.mulf %111, %arg33 : vector<32x128xf32>
      %121 = arith.mulf %105, %113 : vector<32x128xf32>
      %122 = arith.addf %120, %121 : vector<32x128xf32>
      %123 = math.tanh %122 : vector<32x128xf32>
      %124 = arith.mulf %119, %123 : vector<32x128xf32>
      %125 = arith.truncf %124 : vector<32x128xf32> to vector<32x128xbf16>
      %cst_79 = arith.constant dense<0.000000e+00> : vector<32x128xf32>
      %126 = tpu.matmul %125, %10, %cst_79 {dimension_numbers = #tpu.dot_dimension_numbers<[1], [0], [0], [1], [0, 0, 1, 1], [], []>} : vector<32x128xbf16>, vector<128x128xbf16>, vector<32x128xf32> -> vector<32x128xf32>
      %127 = vector.broadcast %13 : vector<1x128xf32> to vector<32x128xf32>
      %128 = arith.addf %126, %127 : vector<32x128xf32>
      %cst_80 = arith.constant 0.000000e+00 : f32
      %129 = vector.broadcast %cst_80 : f32 to vector<32x128xf32>
      %130 = arith.maximumf %128, %129 : vector<32x128xf32>
      %131 = arith.truncf %130 : vector<32x128xf32> to vector<32x128xbf16>
      %cst_81 = arith.constant dense<0.000000e+00> : vector<32x128xf32>
      %132 = tpu.matmul %131, %11, %cst_81 {dimension_numbers = #tpu.dot_dimension_numbers<[1], [0], [0], [1], [0, 0, 1, 1], [], []>} : vector<32x128xbf16>, vector<128x128xbf16>, vector<32x128xf32> -> vector<32x128xf32>
      %133 = vector.broadcast %14 : vector<1x128xf32> to vector<32x128xf32>
      %134 = arith.addf %132, %133 : vector<32x128xf32>
      %cst_82 = arith.constant 0.000000e+00 : f32
      %135 = vector.broadcast %cst_82 : f32 to vector<32x128xf32>
      %136 = arith.maximumf %134, %135 : vector<32x128xf32>
      %137 = arith.truncf %136 : vector<32x128xf32> to vector<32x128xbf16>
      %cst_83 = arith.constant dense<0.000000e+00> : vector<32x128xf32>
      %138 = tpu.matmul %137, %12, %cst_83 {dimension_numbers = #tpu.dot_dimension_numbers<[1], [0], [0], [1], [0, 0, 1, 1], [], []>} : vector<32x128xbf16>, vector<128x128xbf16>, vector<32x128xf32> -> vector<32x128xf32>
      %139 = vector.broadcast %15 : vector<1x128xf32> to vector<32x128xf32>
      %140 = arith.addf %138, %139 : vector<32x128xf32>
      %141 = arith.truncf %140 : vector<32x128xf32> to vector<32x128xbf16>
      %cst_84 = arith.constant dense<0.000000e+00> : vector<16x128xf32>
      %142 = tpu.matmul %0, %141, %cst_84 {dimension_numbers = #tpu.dot_dimension_numbers<[1], [0], [0], [1], [0, 0, 1, 1], [], []>} : vector<16x32xbf16>, vector<32x128xbf16>, vector<16x128xf32> -> vector<16x128xf32>
      %cst_85 = arith.constant dense<0.000000e+00> : vector<16x128xf32>
      %143 = tpu.matmul %1, %141, %cst_85 {dimension_numbers = #tpu.dot_dimension_numbers<[1], [0], [0], [1], [0, 0, 1, 1], [], []>} : vector<16x32xbf16>, vector<32x128xbf16>, vector<16x128xf32> -> vector<16x128xf32>
      %144 = arith.truncf %142 : vector<16x128xf32> to vector<16x128xbf16>
      %145 = tpu.concatenate %144, %arg29, %arg28 in 1 : vector<16x128xbf16>, vector<16x128xbf16>, vector<16x128xbf16> -> vector<16x384xbf16>
      %146 = arith.truncf %143 : vector<16x128xf32> to vector<16x128xbf16>
      %147 = tpu.concatenate %146, %arg28, %arg29 in 1 : vector<16x128xbf16>, vector<16x128xbf16>, vector<16x128xbf16> -> vector<16x384xbf16>
      %cst_86 = arith.constant dense<0.000000e+00> : vector<16x512xf32>
      %148 = tpu.matmul %145, %18, %cst_86 {dimension_numbers = #tpu.dot_dimension_numbers<[1], [0], [0], [1], [0, 0, 1, 1], [], []>} : vector<16x384xbf16>, vector<384x512xbf16>, vector<16x512xf32> -> vector<16x512xf32>
      %149 = vector.broadcast %19 : vector<1x512xf32> to vector<16x512xf32>
      %150 = arith.addf %148, %149 : vector<16x512xf32>
      %cst_87 = arith.constant dense<0.000000e+00> : vector<16x512xf32>
      %151 = tpu.matmul %147, %18, %cst_87 {dimension_numbers = #tpu.dot_dimension_numbers<[1], [0], [0], [1], [0, 0, 1, 1], [], []>} : vector<16x384xbf16>, vector<384x512xbf16>, vector<16x512xf32> -> vector<16x512xf32>
      %152 = vector.broadcast %19 : vector<1x512xf32> to vector<16x512xf32>
      %153 = arith.addf %151, %152 : vector<16x512xf32>
      %154 = vector.extract_strided_slice %150 {offsets = [0, 0], sizes = [16, 128], strides = [1, 1]} : vector<16x512xf32> to vector<16x128xf32>
      %155 = arith.negf %154 : vector<16x128xf32>
      %156 = math.exp %155 : vector<16x128xf32>
      %cst_88 = arith.constant 1.000000e+00 : f32
      %157 = vector.broadcast %cst_88 : f32 to vector<16x128xf32>
      %158 = arith.addf %157, %156 : vector<16x128xf32>
      %159 = arith.divf %157, %158 : vector<16x128xf32>
      %160 = vector.extract_strided_slice %150 {offsets = [0, 128], sizes = [16, 128], strides = [1, 1]} : vector<16x512xf32> to vector<16x128xf32>
      %161 = arith.negf %160 : vector<16x128xf32>
      %162 = math.exp %161 : vector<16x128xf32>
      %cst_89 = arith.constant 1.000000e+00 : f32
      %163 = vector.broadcast %cst_89 : f32 to vector<16x128xf32>
      %164 = arith.addf %163, %162 : vector<16x128xf32>
      %165 = arith.divf %163, %164 : vector<16x128xf32>
      %166 = vector.extract_strided_slice %150 {offsets = [0, 256], sizes = [16, 128], strides = [1, 1]} : vector<16x512xf32> to vector<16x128xf32>
      %167 = math.tanh %166 : vector<16x128xf32>
      %168 = vector.extract_strided_slice %150 {offsets = [0, 384], sizes = [16, 128], strides = [1, 1]} : vector<16x512xf32> to vector<16x128xf32>
      %169 = arith.negf %168 : vector<16x128xf32>
      %170 = math.exp %169 : vector<16x128xf32>
      %cst_90 = arith.constant 1.000000e+00 : f32
      %171 = vector.broadcast %cst_90 : f32 to vector<16x128xf32>
      %172 = arith.addf %171, %170 : vector<16x128xf32>
      %173 = arith.divf %171, %172 : vector<16x128xf32>
      %174 = arith.mulf %165, %arg30 : vector<16x128xf32>
      %175 = arith.mulf %159, %167 : vector<16x128xf32>
      %176 = arith.addf %174, %175 : vector<16x128xf32>
      %177 = math.tanh %176 : vector<16x128xf32>
      %178 = arith.mulf %173, %177 : vector<16x128xf32>
      %179 = arith.truncf %178 : vector<16x128xf32> to vector<16x128xbf16>
      %180 = vector.extract_strided_slice %153 {offsets = [0, 0], sizes = [16, 128], strides = [1, 1]} : vector<16x512xf32> to vector<16x128xf32>
      %181 = arith.negf %180 : vector<16x128xf32>
      %182 = math.exp %181 : vector<16x128xf32>
      %cst_91 = arith.constant 1.000000e+00 : f32
      %183 = vector.broadcast %cst_91 : f32 to vector<16x128xf32>
      %184 = arith.addf %183, %182 : vector<16x128xf32>
      %185 = arith.divf %183, %184 : vector<16x128xf32>
      %186 = vector.extract_strided_slice %153 {offsets = [0, 128], sizes = [16, 128], strides = [1, 1]} : vector<16x512xf32> to vector<16x128xf32>
      %187 = arith.negf %186 : vector<16x128xf32>
      %188 = math.exp %187 : vector<16x128xf32>
      %cst_92 = arith.constant 1.000000e+00 : f32
      %189 = vector.broadcast %cst_92 : f32 to vector<16x128xf32>
      %190 = arith.addf %189, %188 : vector<16x128xf32>
      %191 = arith.divf %189, %190 : vector<16x128xf32>
      %192 = vector.extract_strided_slice %153 {offsets = [0, 256], sizes = [16, 128], strides = [1, 1]} : vector<16x512xf32> to vector<16x128xf32>
      %193 = math.tanh %192 : vector<16x128xf32>
      %194 = vector.extract_strided_slice %153 {offsets = [0, 384], sizes = [16, 128], strides = [1, 1]} : vector<16x512xf32> to vector<16x128xf32>
      %195 = arith.negf %194 : vector<16x128xf32>
      %196 = math.exp %195 : vector<16x128xf32>
      %cst_93 = arith.constant 1.000000e+00 : f32
      %197 = vector.broadcast %cst_93 : f32 to vector<16x128xf32>
      %198 = arith.addf %197, %196 : vector<16x128xf32>
      %199 = arith.divf %197, %198 : vector<16x128xf32>
      %200 = arith.mulf %191, %arg31 : vector<16x128xf32>
      %201 = arith.mulf %185, %193 : vector<16x128xf32>
      %202 = arith.addf %200, %201 : vector<16x128xf32>
      %203 = math.tanh %202 : vector<16x128xf32>
      %204 = arith.mulf %199, %203 : vector<16x128xf32>
      %205 = arith.truncf %204 : vector<16x128xf32> to vector<16x128xbf16>
      scf.yield %179, %205, %176, %202, %125, %122 : vector<16x128xbf16>, vector<16x128xbf16>, vector<16x128xf32>, vector<16x128xf32>, vector<32x128xbf16>, vector<32x128xf32>
    }
    %c0_44 = arith.constant 0 : index
    %c0_45 = arith.constant 0 : index
    %32 = vector.load %arg22[%c0_44, %c0_45] : memref<128x128xbf16, #tpu.memory_space<vmem>>, vector<128x128xbf16>
    %c0_46 = arith.constant 0 : index
    %c0_47 = arith.constant 0 : index
    %33 = vector.load %arg24[%c0_46, %c0_47] : memref<128x128xbf16, #tpu.memory_space<vmem>>, vector<128x128xbf16>
    %c0_48 = arith.constant 0 : index
    %c0_49 = arith.constant 0 : index
    %34 = vector.load %arg23[%c0_48, %c0_49] : memref<1x128xf32, #tpu.memory_space<vmem>>, vector<1x128xf32>
    %c0_50 = arith.constant 0 : index
    %c0_51 = arith.constant 0 : index
    %35 = vector.load %arg25[%c0_50, %c0_51] : memref<1x128xf32, #tpu.memory_space<vmem>>, vector<1x128xf32>
    %cst_52 = arith.constant dense<0.000000e+00> : vector<16x128xf32>
    %36 = tpu.matmul %31#0, %32, %cst_52 {dimension_numbers = #tpu.dot_dimension_numbers<[1], [0], [0], [1], [0, 0, 1, 1], [], []>} : vector<16x128xbf16>, vector<128x128xbf16>, vector<16x128xf32> -> vector<16x128xf32>
    %37 = vector.broadcast %34 : vector<1x128xf32> to vector<16x128xf32>
    %38 = arith.addf %36, %37 : vector<16x128xf32>
    %cst_53 = arith.constant 0.000000e+00 : f32
    %39 = vector.broadcast %cst_53 : f32 to vector<16x128xf32>
    %40 = arith.maximumf %38, %39 : vector<16x128xf32>
    %41 = arith.truncf %40 : vector<16x128xf32> to vector<16x128xbf16>
    %cst_54 = arith.constant dense<0.000000e+00> : vector<16x128xf32>
    %42 = tpu.matmul %41, %33, %cst_54 {dimension_numbers = #tpu.dot_dimension_numbers<[1], [0], [0], [1], [0, 0, 1, 1], [], []>} : vector<16x128xbf16>, vector<128x128xbf16>, vector<16x128xf32> -> vector<16x128xf32>
    %43 = vector.broadcast %35 : vector<1x128xf32> to vector<16x128xf32>
    %44 = arith.addf %42, %43 : vector<16x128xf32>
    %cst_55 = arith.constant 0.000000e+00 : f32
    %45 = vector.broadcast %cst_55 : f32 to vector<16x128xf32>
    %46 = arith.maximumf %44, %45 : vector<16x128xf32>
    %c0_56 = arith.constant 0 : index
    %c0_57 = arith.constant 0 : index
    %47 = vector.load %arg26[%c0_56, %c0_57] : memref<32x128xf32, #tpu.memory_space<vmem>>, vector<16x128xf32>
    tpu.vector_store %arg26[%c0_56, %c0_57], %46 {strides = array<i32>} : memref<32x128xf32, #tpu.memory_space<vmem>>, vector<16x128xf32>,
    %cst_58 = arith.constant dense<0.000000e+00> : vector<16x128xf32>
    %48 = tpu.matmul %31#1, %32, %cst_58 {dimension_numbers = #tpu.dot_dimension_numbers<[1], [0], [0], [1], [0, 0, 1, 1], [], []>} : vector<16x128xbf16>, vector<128x128xbf16>, vector<16x128xf32> -> vector<16x128xf32>
    %49 = vector.broadcast %34 : vector<1x128xf32> to vector<16x128xf32>
    %50 = arith.addf %48, %49 : vector<16x128xf32>
    %cst_59 = arith.constant 0.000000e+00 : f32
    %51 = vector.broadcast %cst_59 : f32 to vector<16x128xf32>
    %52 = arith.maximumf %50, %51 : vector<16x128xf32>
    %53 = arith.truncf %52 : vector<16x128xf32> to vector<16x128xbf16>
    %cst_60 = arith.constant dense<0.000000e+00> : vector<16x128xf32>
    %54 = tpu.matmul %53, %33, %cst_60 {dimension_numbers = #tpu.dot_dimension_numbers<[1], [0], [0], [1], [0, 0, 1, 1], [], []>} : vector<16x128xbf16>, vector<128x128xbf16>, vector<16x128xf32> -> vector<16x128xf32>
    %55 = vector.broadcast %35 : vector<1x128xf32> to vector<16x128xf32>
    %56 = arith.addf %54, %55 : vector<16x128xf32>
    %cst_61 = arith.constant 0.000000e+00 : f32
    %57 = vector.broadcast %cst_61 : f32 to vector<16x128xf32>
    %58 = arith.maximumf %56, %57 : vector<16x128xf32>
    %c16 = arith.constant 16 : index
    %c0_62 = arith.constant 0 : index
    %59 = vector.load %arg26[%c16, %c0_62] : memref<32x128xf32, #tpu.memory_space<vmem>>, vector<16x128xf32>
    tpu.vector_store %arg26[%c16, %c0_62], %58 {strides = array<i32>} : memref<32x128xf32, #tpu.memory_space<vmem>>, vector<16x128xf32>,
    return
  }
}

</mosaic_0001>

<llo_original>
// kernel: tpu_custom_call.1
$region0: #{tpu_custom_call.1}
  #allocation0 [shape = 'u32[]', space=smem, size = 0x4, offset = 0x4, fixed_abs, tag = 'smem constant byte address 0x4 - core index']
  #allocation1 [shape = 'u32[144,128]{1,0:T(1,128)}', space=vmem, size = 0x12000, scoped, tag = 'internal scratch']
  %s0 = inlined_call_operand.hbm [shape: bf16[16,32], index: 0, kind: input, shape index: {}]
  %s1 = inlined_call_operand.hbm [shape: bf16[16,32], index: 1, kind: input, shape index: {}]
  %s2 = inlined_call_operand.vmem [shape: bf16[32,16], index: 2, kind: input, shape index: {}]
  %s3 = inlined_call_operand.vmem [shape: bf16[32,16], index: 3, kind: input, shape index: {}]
  %s4 = inlined_call_operand.vmem [shape: f32[1,128], index: 4, kind: input, shape index: {}]
  %s5 = inlined_call_operand.vmem [shape: f32[1,128], index: 5, kind: input, shape index: {}]
  %s6 = inlined_call_operand.vmem [shape: bf16[128,128], index: 6, kind: input, shape index: {}]
  %s7 = inlined_call_operand.vmem [shape: f32[1,128], index: 7, kind: input, shape index: {}]
  %s8 = inlined_call_operand.hbm [shape: bf16[128,128], index: 8, kind: input, shape index: {}]
  %s9 = inlined_call_operand.hbm [shape: f32[1,128], index: 9, kind: input, shape index: {}]
  %s10 = inlined_call_operand.hbm [shape: bf16[128,128], index: 10, kind: input, shape index: {}]
  %s11 = inlined_call_operand.hbm [shape: f32[1,128], index: 11, kind: input, shape index: {}]
  %s12 = inlined_call_operand.hbm [shape: bf16[128,128], index: 12, kind: input, shape index: {}]
  %s13 = inlined_call_operand.hbm [shape: f32[1,128], index: 13, kind: input, shape index: {}]
  %s14 = inlined_call_operand.hbm [shape: bf16[128,128], index: 14, kind: input, shape index: {}]
  %s15 = inlined_call_operand.hbm [shape: f32[1,128], index: 15, kind: input, shape index: {}]
  %s16 = inlined_call_operand.hbm [shape: bf16[128,128], index: 16, kind: input, shape index: {}]
  %s17 = inlined_call_operand.hbm [shape: f32[1,128], index: 17, kind: input, shape index: {}]
  %s18 = inlined_call_operand.hbm [shape: bf16[256,512], index: 18, kind: input, shape index: {}]
  %s19 = inlined_call_operand.hbm [shape: f32[1,512], index: 19, kind: input, shape index: {}]
  %s20 = inlined_call_operand.hbm [shape: bf16[384,512], index: 20, kind: input, shape index: {}]
  %s21 = inlined_call_operand.hbm [shape: f32[1,512], index: 21, kind: input, shape index: {}]
  %s22 = inlined_call_operand.vmem [shape: bf16[128,128], index: 22, kind: input, shape index: {}]
  %s23 = inlined_call_operand.vmem [shape: f32[1,128], index: 23, kind: input, shape index: {}]
  %s24 = inlined_call_operand.hbm [shape: bf16[128,128], index: 24, kind: input, shape index: {}]
  %s25 = inlined_call_operand.vmem [shape: f32[1,128], index: 25, kind: input, shape index: {}]
  %s26 = inlined_call_operand.hbm [shape: f32[32,128], index: 26, kind: output, shape index: {}]
  %s27 = sld [smem:[#allocation0]]
  $region189: #{tpu_custom_call.1} parent=0
    _
  %s29 = ssub.s32 1, %s27
  %s30 = scalar_select 0, %s29, %s27
  $region1: #{tpu_custom_call.1} parent=0
    #allocation2 [shape = 'u8[4096]{0}', space=vmem, size = 0x1000, scoped, tag = 'input window, operand 0, single buffered']
    #allocation3 [shape = 's32[1]{0}', space=sflag, size = 0x4, scoped, tag = 'scoped memory for tpu_custom_call.1']
    #allocation4 [shape = 's32[1]{0}', space=sflag, size = 0x4, scoped, tag = 'scoped memory for tpu_custom_call.1']
    #allocation5 [shape = 'u8[4096]{0}', space=vmem, size = 0x1000, scoped, tag = 'input window, operand 1, single buffered']
    #allocation6 [shape = 's32[1]{0}', space=sflag, size = 0x4, scoped, tag = 'scoped memory for tpu_custom_call.1']
    #allocation7 [shape = 'u8[32768]{0}', space=vmem, size = 0x8000, scoped, tag = 'input window, operand 8, single buffered']
    #allocation8 [shape = 'u8[512]{0}', space=vmem, size = 0x400, scoped, tag = 'input window, operand 9, single buffered']
    #allocation9 [shape = 's32[1]{0}', space=sflag, size = 0x4, scoped, tag = 'scoped memory for tpu_custom_call.1']
    #allocation10 [shape = 'u8[32768]{0}', space=vmem, size = 0x8000, scoped, tag = 'input window, operand 10, single buffered']
    #allocation11 [shape = 'u8[512]{0}', space=vmem, size = 0x400, scoped, tag = 'input window, operand 11, single buffered']
    #allocation12 [shape = 's32[1]{0}', space=sflag, size = 0x4, scoped, tag = 'scoped memory for tpu_custom_call.1']
    #allocation13 [shape = 'u8[32768]{0}', space=vmem, size = 0x8000, scoped, tag = 'input window, operand 12, single buffered']
    #allocation14 [shape = 'u8[512]{0}', space=vmem, size = 0x400, scoped, tag = 'input window, operand 13, single buffered']
    #allocation15 [shape = 's32[1]{0}', space=sflag, size = 0x4, scoped, tag = 'scoped memory for tpu_custom_call.1']
    #allocation16 [shape = 'u8[32768]{0}', space=vmem, size = 0x8000, scoped, tag = 'input window, operand 14, single buffered']
    #allocation17 [shape = 'u8[512]{0}', space=vmem, size = 0x400, scoped, tag = 'input window, operand 15, single buffered']
    #allocation18 [shape = 's32[1]{0}', space=sflag, size = 0x4, scoped, tag = 'scoped memory for tpu_custom_call.1']
    #allocation19 [shape = 'u8[32768]{0}', space=vmem, size = 0x8000, scoped, tag = 'input window, operand 16, single buffered']
    #allocation20 [shape = 'u8[512]{0}', space=vmem, size = 0x400, scoped, tag = 'input window, operand 17, single buffered']
    #allocation21 [shape = 's32[1]{0}', space=sflag, size = 0x4, scoped, tag = 'scoped memory for tpu_custom_call.1']
    #allocation22 [shape = 'u8[262144]{0}', space=vmem, size = 0x40000, scoped, tag = 'input window, operand 18, single buffered']
    #allocation23 [shape = 'u8[2048]{0}', space=vmem, size = 0x800, scoped, tag = 'input window, operand 19, single buffered']
    #allocation24 [shape = 's32[1]{0}', space=sflag, size = 0x4, scoped, tag = 'scoped memory for tpu_custom_call.1']
    #allocation25 [shape = 'u8[393216]{0}', space=vmem, size = 0x60000, scoped, tag = 'input window, operand 20, single buffered']
    #allocation26 [shape = 'u8[2048]{0}', space=vmem, size = 0x800, scoped, tag = 'input window, operand 21, single buffered']
    #allocation27 [shape = 's32[1]{0}', space=sflag, size = 0x4, scoped, tag = 'scoped memory for tpu_custom_call.1']
    #allocation28 [shape = 'u8[32768]{0}', space=vmem, size = 0x8000, scoped, tag = 'input window, operand 24, single buffered']
    #allocation29 [shape = 'u8[16384]{0}', space=vmem, size = 0x4000, scoped, tag = 'output window, operand 0, single buffered']
    %31 = vsyncpa [#allocation3], 0
    %32 = vsyncpa [#allocation6], 0
    %33 = vsyncpa [#allocation9], 0
    %34 = vsyncpa [#allocation12], 0
    %35 = vsyncpa [#allocation15], 0
    %36 = vsyncpa [#allocation18], 0
    %37 = vsyncpa [#allocation21], 0
    %38 = vsyncpa [#allocation24], 0
    %39 = vsyncpa [#allocation27], 0
    %40 = vsyncpa [#allocation4], 0
    // Predicated region
    $region2: #{tpu_custom_call.1} parent=1 // pred_check
      _
    $region3: #{tpu_custom_call.1} parent=1 // pred_check_branch
      %42 = sbr.rel (0) target = $region5
    $region4: #{tpu_custom_call.1} parent=1 // pred_region
      %s44 = ssub.s32 128, 128
      %45 = vsyncadd [#allocation3], %s44
      %s46 = sshll.u32 [#allocation2], 4
      %s47 = int_to_ptr.vmem [resolvable:$true] %s46
      %52 = dma.hbm_to_vmem [thread:$0]  %s0, 128, %s47, [#allocation3], 64, 64, 4
    $region5: #{tpu_custom_call.1} parent=1 // pred_fallthru
      _
    // Predicated region
    $region6: #{tpu_custom_call.1} parent=1 // pred_check
      _
    $region7: #{tpu_custom_call.1} parent=1 // pred_check_branch
      %54 = sbr.rel (0) target = $region9
    $region8: #{tpu_custom_call.1} parent=1 // pred_region
      %s56 = ssub.s32 128, 128
      %57 = vsyncadd [#allocation6], %s56
      %s58 = sshll.u32 [#allocation5], 4
      %s59 = int_to_ptr.vmem [resolvable:$true] %s58
      %64 = dma.hbm_to_vmem [thread:$0]  %s1, 128, %s59, [#allocation6], 64, 64, 4
    $region9: #{tpu_custom_call.1} parent=1 // pred_fallthru
      _
    // Predicated region
    $region10: #{tpu_custom_call.1} parent=1 // pred_check
      _
    $region11: #{tpu_custom_call.1} parent=1 // pred_check_branch
      %66 = sbr.rel (0) target = $region13
    $region12: #{tpu_custom_call.1} parent=1 // pred_region
      _
    $region13: #{tpu_custom_call.1} parent=1 // pred_fallthru
      _
    // Predicated region
    $region14: #{tpu_custom_call.1} parent=1 // pred_check
      _
    $region15: #{tpu_custom_call.1} parent=1 // pred_check_branch
      %68 = sbr.rel (0) target = $region17
    $region16: #{tpu_custom_call.1} parent=1 // pred_region
      _
    $region17: #{tpu_custom_call.1} parent=1 // pred_fallthru
      _
    // Predicated region
    $region18: #{tpu_custom_call.1} parent=1 // pred_check
      _
    $region19: #{tpu_custom_call.1} parent=1 // pred_check_branch
      %70 = sbr.rel (0) target = $region21
    $region20: #{tpu_custom_call.1} parent=1 // pred_region
      _
    $region21: #{tpu_custom_call.1} parent=1 // pred_fallthru
      _
    // Predicated region
    $region22: #{tpu_custom_call.1} parent=1 // pred_check
      _
    $region23: #{tpu_custom_call.1} parent=1 // pred_check_branch
      %72 = sbr.rel (0) target = $region25
    $region24: #{tpu_custom_call.1} parent=1 // pred_region
      _
    $region25: #{tpu_custom_call.1} parent=1 // pred_fallthru
      _
    // Predicated region
    $region26: #{tpu_custom_call.1} parent=1 // pred_check
      _
    $region27: #{tpu_custom_call.1} parent=1 // pred_check_branch
      %74 = sbr.rel (0) target = $region29
    $region28: #{tpu_custom_call.1} parent=1 // pred_region
      _
    $region29: #{tpu_custom_call.1} parent=1 // pred_fallthru
      _
    // Predicated region
    $region30: #{tpu_custom_call.1} parent=1 // pred_check
      _
    $region31: #{tpu_custom_call.1} parent=1 // pred_check_branch
      %76 = sbr.rel (0) target = $region33
    $region32: #{tpu_custom_call.1} parent=1 // pred_region
      _
    $region33: #{tpu_custom_call.1} parent=1 // pred_fallthru
      _
    // Predicated region
    $region34: #{tpu_custom_call.1} parent=1 // pred_check
      _
    $region35: #{tpu_custom_call.1} parent=1 // pred_check_branch
      %78 = sbr.rel (0) target = $region37
    $region36: #{tpu_custom_call.1} parent=1 // pred_region
      %s80 = ssub.s32 1024, 1024
      %81 = vsyncadd [#allocation6], %s80
      %s82 = sshll.u32 [#allocation7], 4
      %s83 = int_to_ptr.vmem [resolvable:$true] %s82
      %88 = dma.hbm_to_vmem [thread:$0]  %s8, 1024, %s83, [#allocation6], 64, 64, 4
    $region37: #{tpu_custom_call.1} parent=1 // pred_fallthru
      _
    // Predicated region
    $region38: #{tpu_custom_call.1} parent=1 // pred_check
      _
    $region39: #{tpu_custom_call.1} parent=1 // pred_check_branch
      %90 = sbr.rel (0) target = $region41
    $region40: #{tpu_custom_call.1} parent=1 // pred_region
      %s92 = ssub.s32 16, 16
      %93 = vsyncadd [#allocation9], %s92
      %s95 = sshll.u32 [#allocation8], 4
      %s96 = int_to_ptr.vmem [resolvable:$true] %s95
      %98 = dma.hbm_to_vmem [thread:$0]  %s9, 16, %s96, [#allocation9]
    $region41: #{tpu_custom_call.1} parent=1 // pred_fallthru
      _
    // Predicated region
    $region42: #{tpu_custom_call.1} parent=1 // pred_check
      _
    $region43: #{tpu_custom_call.1} parent=1 // pred_check_branch
      %100 = sbr.rel (0) target = $region45
    $region44: #{tpu_custom_call.1} parent=1 // pred_region
      %s102 = ssub.s32 1024, 1024
      %103 = vsyncadd [#allocation9], %s102
      %s104 = sshll.u32 [#allocation10], 4
      %s105 = int_to_ptr.vmem [resolvable:$true] %s104
      %110 = dma.hbm_to_vmem [thread:$0]  %s10, 1024, %s105, [#allocation9], 64, 64, 4
    $region45: #{tpu_custom_call.1} parent=1 // pred_fallthru
      _
    // Predicated region
    $region46: #{tpu_custom_call.1} parent=1 // pred_check
      _
    $region47: #{tpu_custom_call.1} parent=1 // pred_check_branch
      %112 = sbr.rel (0) target = $region49
    $region48: #{tpu_custom_call.1} parent=1 // pred_region
      %s114 = ssub.s32 16, 16
      %115 = vsyncadd [#allocation12], %s114
      %s117 = sshll.u32 [#allocation11], 4
      %s118 = int_to_ptr.vmem [resolvable:$true] %s117
      %120 = dma.hbm_to_vmem [thread:$0]  %s11, 16, %s118, [#allocation12]
    $region49: #{tpu_custom_call.1} parent=1 // pred_fallthru
      _
    // Predicated region
    $region50: #{tpu_custom_call.1} parent=1 // pred_check
      _
    $region51: #{tpu_custom_call.1} parent=1 // pred_check_branch
      %122 = sbr.rel (0) target = $region53
    $region52: #{tpu_custom_call.1} parent=1 // pred_region
      %s124 = ssub.s32 1024, 1024
      %125 = vsyncadd [#allocation12], %s124
      %s126 = sshll.u32 [#allocation13], 4
      %s127 = int_to_ptr.vmem [resolvable:$true] %s126
      %132 = dma.hbm_to_vmem [thread:$0]  %s12, 1024, %s127, [#allocation12], 64, 64, 4
    $region53: #{tpu_custom_call.1} parent=1 // pred_fallthru
      _
    // Predicated region
    $region54: #{tpu_custom_call.1} parent=1 // pred_check
      _
    $region55: #{tpu_custom_call.1} parent=1 // pred_check_branch
      %134 = sbr.rel (0) target = $region57
    $region56: #{tpu_custom_call.1} parent=1 // pred_region
      %s136 = ssub.s32 16, 16
      %137 = vsyncadd [#allocation15], %s136
      %s139 = sshll.u32 [#allocation14], 4
      %s140 = int_to_ptr.vmem [resolvable:$true] %s139
      %142 = dma.hbm_to_vmem [thread:$0]  %s13, 16, %s140, [#allocation15]
    $region57: #{tpu_custom_call.1} parent=1 // pred_fallthru
      _
    // Predicated region
    $region58: #{tpu_custom_call.1} parent=1 // pred_check
      _
    $region59: #{tpu_custom_call.1} parent=1 // pred_check_branch
      %144 = sbr.rel (0) target = $region61
    $region60: #{tpu_custom_call.1} parent=1 // pred_region
      %s146 = ssub.s32 1024, 1024
      %147 = vsyncadd [#allocation15], %s146
      %s148 = sshll.u32 [#allocation16], 4
      %s149 = int_to_ptr.vmem [resolvable:$true] %s148
      %154 = dma.hbm_to_vmem [thread:$0]  %s14, 1024, %s149, [#allocation15], 64, 64, 4
    $region61: #{tpu_custom_call.1} parent=1 // pred_fallthru
      _
    // Predicated region
    $region62: #{tpu_custom_call.1} parent=1 // pred_check
      _
    $region63: #{tpu_custom_call.1} parent=1 // pred_check_branch
      %156 = sbr.rel (0) target = $region65
    $region64: #{tpu_custom_call.1} parent=1 // pred_region
      %s158 = ssub.s32 16, 16
      %159 = vsyncadd [#allocation18], %s158
      %s161 = sshll.u32 [#allocation17], 4
      %s162 = int_to_ptr.vmem [resolvable:$true] %s161
      %164 = dma.hbm_to_vmem [thread:$0]  %s15, 16, %s162, [#allocation18]
    $region65: #{tpu_custom_call.1} parent=1 // pred_fallthru
      _
    // Predicated region
    $region66: #{tpu_custom_call.1} parent=1 // pred_check
      _
    $region67: #{tpu_custom_call.1} parent=1 // pred_check_branch
      %166 = sbr.rel (0) target = $region69
    $region68: #{tpu_custom_call.1} parent=1 // pred_region
      %s168 = ssub.s32 1024, 1024
      %169 = vsyncadd [#allocation18], %s168
      %s170 = sshll.u32 [#allocation19], 4
      %s171 = int_to_ptr.vmem [resolvable:$true] %s170
      %176 = dma.hbm_to_vmem [thread:$0]  %s16, 1024, %s171, [#allocation18], 64, 64, 4
    $region69: #{tpu_custom_call.1} parent=1 // pred_fallthru
      _
    // Predicated region
    $region70: #{tpu_custom_call.1} parent=1 // pred_check
      _
    $region71: #{tpu_custom_call.1} parent=1 // pred_check_branch
      %178 = sbr.rel (0) target = $region73
    $region72: #{tpu_custom_call.1} parent=1 // pred_region
      %s180 = ssub.s32 16, 16
      %181 = vsyncadd [#allocation21], %s180
      %s183 = sshll.u32 [#allocation20], 4
      %s184 = int_to_ptr.vmem [resolvable:$true] %s183
      %186 = dma.hbm_to_vmem [thread:$0]  %s17, 16, %s184, [#allocation21]
    $region73: #{tpu_custom_call.1} parent=1 // pred_fallthru
      _
    // Predicated region
    $region74: #{tpu_custom_call.1} parent=1 // pred_check
      _
    $region75: #{tpu_custom_call.1} parent=1 // pred_check_branch
      %188 = sbr.rel (0) target = $region77
    $region76: #{tpu_custom_call.1} parent=1 // pred_region
      %s190 = ssub.s32 8192, 8192
      %191 = vsyncadd [#allocation21], %s190
      %s192 = sshll.u32 [#allocation22], 4
      %s193 = int_to_ptr.vmem [resolvable:$true] %s192
      %198 = dma.hbm_to_vmem [thread:$0]  %s18, 8192, %s193, [#allocation21], 256, 256, 16
    $region77: #{tpu_custom_call.1} parent=1 // pred_fallthru
      _
    // Predicated region
    $region78: #{tpu_custom_call.1} parent=1 // pred_check
      _
    $region79: #{tpu_custom_call.1} parent=1 // pred_check_branch
      %200 = sbr.rel (0) target = $region81
    $region80: #{tpu_custom_call.1} parent=1 // pred_region
      %s202 = ssub.s32 64, 64
      %203 = vsyncadd [#allocation24], %s202
      %s205 = sshll.u32 [#allocation23], 4
      %s206 = int_to_ptr.vmem [resolvable:$true] %s205
      %208 = dma.hbm_to_vmem [thread:$0]  %s19, 64, %s206, [#allocation24]
    $region81: #{tpu_custom_call.1} parent=1 // pred_fallthru
      _
    // Predicated region
    $region82: #{tpu_custom_call.1} parent=1 // pred_check
      _
    $region83: #{tpu_custom_call.1} parent=1 // pred_check_branch
      %210 = sbr.rel (0) target = $region85
    $region84: #{tpu_custom_call.1} parent=1 // pred_region
      %s212 = ssub.s32 12288, 12288
      %213 = vsyncadd [#allocation24], %s212
      %s214 = sshll.u32 [#allocation25], 4
      %s215 = int_to_ptr.vmem [resolvable:$true] %s214
      %220 = dma.hbm_to_vmem [thread:$0]  %s20, 12288, %s215, [#allocation24], 256, 256, 16
    $region85: #{tpu_custom_call.1} parent=1 // pred_fallthru
      _
    // Predicated region
    $region86: #{tpu_custom_call.1} parent=1 // pred_check
      _
    $region87: #{tpu_custom_call.1} parent=1 // pred_check_branch
      %222 = sbr.rel (0) target = $region89
    $region88: #{tpu_custom_call.1} parent=1 // pred_region
      %s224 = ssub.s32 64, 64
      %225 = vsyncadd [#allocation27], %s224
      %s227 = sshll.u32 [#allocation26], 4
      %s228 = int_to_ptr.vmem [resolvable:$true] %s227
      %230 = dma.hbm_to_vmem [thread:$0]  %s21, 64, %s228, [#allocation27]
    $region89: #{tpu_custom_call.1} parent=1 // pred_fallthru
      _
    // Predicated region
    $region90: #{tpu_custom_call.1} parent=1 // pred_check
      _
    $region91: #{tpu_custom_call.1} parent=1 // pred_check_branch
      %232 = sbr.rel (0) target = $region93
    $region92: #{tpu_custom_call.1} parent=1 // pred_region
      _
    $region93: #{tpu_custom_call.1} parent=1 // pred_fallthru
      _
    // Predicated region
    $region94: #{tpu_custom_call.1} parent=1 // pred_check
      _
    $region95: #{tpu_custom_call.1} parent=1 // pred_check_branch
      %234 = sbr.rel (0) target = $region97
    $region96: #{tpu_custom_call.1} parent=1 // pred_region
      _
    $region97: #{tpu_custom_call.1} parent=1 // pred_fallthru
      _
    // Predicated region
    $region98: #{tpu_custom_call.1} parent=1 // pred_check
      _
    $region99: #{tpu_custom_call.1} parent=1 // pred_check_branch
      %236 = sbr.rel (0) target = $region101
    $region100: #{tpu_custom_call.1} parent=1 // pred_region
      %s238 = ssub.s32 1024, 1024
      %239 = vsyncadd [#allocation27], %s238
      %s240 = sshll.u32 [#allocation28], 4
      %s241 = int_to_ptr.vmem [resolvable:$true] %s240
      %246 = dma.hbm_to_vmem [thread:$0]  %s24, 1024, %s241, [#allocation27], 64, 64, 4
    $region101: #{tpu_custom_call.1} parent=1 // pred_fallthru
      _
    // Predicated region
    $region102: #{tpu_custom_call.1} parent=1 // pred_check
      _
    $region103: #{tpu_custom_call.1} parent=1 // pred_check_branch
      %248 = sbr.rel (0) target = $region105
    $region104: #{tpu_custom_call.1} parent=1 // pred_region
      _
    $region105: #{tpu_custom_call.1} parent=1 // pred_fallthru
      _
    // Predicated region
    $region106: #{tpu_custom_call.1} parent=1 // pred_check
      _
    $region107: #{tpu_custom_call.1} parent=1 // pred_check_branch
      %250 = sbr.rel (0) target = $region109
    $region108: #{tpu_custom_call.1} parent=1 // pred_region
      %251 = dma.done [#allocation3], 128
    $region109: #{tpu_custom_call.1} parent=1 // pred_fallthru
      _
    // Predicated region
    $region110: #{tpu_custom_call.1} parent=1 // pred_check
      _
    $region111: #{tpu_custom_call.1} parent=1 // pred_check_branch
      %253 = sbr.rel (0) target = $region113
    $region112: #{tpu_custom_call.1} parent=1 // pred_region
      %254 = dma.done [#allocation6], 128
    $region113: #{tpu_custom_call.1} parent=1 // pred_fallthru
      _
    // Predicated region
    $region114: #{tpu_custom_call.1} parent=1 // pred_check
      _
    $region115: #{tpu_custom_call.1} parent=1 // pred_check_branch
      %256 = sbr.rel (0) target = $region117
    $region116: #{tpu_custom_call.1} parent=1 // pred_region
      %257 = dma.done [#allocation6], 1024
    $region117: #{tpu_custom_call.1} parent=1 // pred_fallthru
      _
    // Predicated region
    $region118: #{tpu_custom_call.1} parent=1 // pred_check
      _
    $region119: #{tpu_custom_call.1} parent=1 // pred_check_branch
      %259 = sbr.rel (0) target = $region121
    $region120: #{tpu_custom_call.1} parent=1 // pred_region
      %260 = dma.done [#allocation9], 16
    $region121: #{tpu_custom_call.1} parent=1 // pred_fallthru
      _
    // Predicated region
    $region122: #{tpu_custom_call.1} parent=1 // pred_check
      _
    $region123: #{tpu_custom_call.1} parent=1 // pred_check_branch
      %262 = sbr.rel (0) target = $region125
    $region124: #{tpu_custom_call.1} parent=1 // pred_region
      %263 = dma.done [#allocation9], 1024
    $region125: #{tpu_custom_call.1} parent=1 // pred_fallthru
      _
    // Predicated region
    $region126: #{tpu_custom_call.1} parent=1 // pred_check
      _
    $region127: #{tpu_custom_call.1} parent=1 // pred_check_branch
      %265 = sbr.rel (0) target = $region129
    $region128: #{tpu_custom_call.1} parent=1 // pred_region
      %266 = dma.done [#allocation12], 16
    $region129: #{tpu_custom_call.1} parent=1 // pred_fallthru
      _
    // Predicated region
    $region130: #{tpu_custom_call.1} parent=1 // pred_check
      _
    $region131: #{tpu_custom_call.1} parent=1 // pred_check_branch
      %268 = sbr.rel (0) target = $region133
    $region132: #{tpu_custom_call.1} parent=1 // pred_region
      %269 = dma.done [#allocation12], 1024
    $region133: #{tpu_custom_call.1} parent=1 // pred_fallthru
      _
    // Predicated region
    $region134: #{tpu_custom_call.1} parent=1 // pred_check
      _
    $region135: #{tpu_custom_call.1} parent=1 // pred_check_branch
      %271 = sbr.rel (0) target = $region137
    $region136: #{tpu_custom_call.1} parent=1 // pred_region
      %272 = dma.done [#allocation15], 16
    $region137: #{tpu_custom_call.1} parent=1 // pred_fallthru
      _
    // Predicated region
    $region138: #{tpu_custom_call.1} parent=1 // pred_check
      _
    $region139: #{tpu_custom_call.1} parent=1 // pred_check_branch
      %274 = sbr.rel (0) target = $region141
    $region140: #{tpu_custom_call.1} parent=1 // pred_region
      %275 = dma.done [#allocation15], 1024
    $region141: #{tpu_custom_call.1} parent=1 // pred_fallthru
      _
    // Predicated region
    $region142: #{tpu_custom_call.1} parent=1 // pred_check
      _
    $region143: #{tpu_custom_call.1} parent=1 // pred_check_branch
      %277 = sbr.rel (0) target = $region145
    $region144: #{tpu_custom_call.1} parent=1 // pred_region
      %278 = dma.done [#allocation18], 16
    $region145: #{tpu_custom_call.1} parent=1 // pred_fallthru
      _
    // Predicated region
    $region146: #{tpu_custom_call.1} parent=1 // pred_check
      _
    $region147: #{tpu_custom_call.1} parent=1 // pred_check_branch
      %280 = sbr.rel (0) target = $region149
    $region148: #{tpu_custom_call.1} parent=1 // pred_region
      %281 = dma.done [#allocation18], 1024
    $region149: #{tpu_custom_call.1} parent=1 // pred_fallthru
      _
    // Predicated region
    $region150: #{tpu_custom_call.1} parent=1 // pred_check
      _
    $region151: #{tpu_custom_call.1} parent=1 // pred_check_branch
      %283 = sbr.rel (0) target = $region153
    $region152: #{tpu_custom_call.1} parent=1 // pred_region
      %284 = dma.done [#allocation21], 16
    $region153: #{tpu_custom_call.1} parent=1 // pred_fallthru
      _
    // Predicated region
    $region154: #{tpu_custom_call.1} parent=1 // pred_check
      _
    $region155: #{tpu_custom_call.1} parent=1 // pred_check_branch
      %286 = sbr.rel (0) target = $region157
    $region156: #{tpu_custom_call.1} parent=1 // pred_region
      %287 = dma.done [#allocation21], 8192
    $region157: #{tpu_custom_call.1} parent=1 // pred_fallthru
      _
    // Predicated region
    $region158: #{tpu_custom_call.1} parent=1 // pred_check
      _
    $region159: #{tpu_custom_call.1} parent=1 // pred_check_branch
      %289 = sbr.rel (0) target = $region161
    $region160: #{tpu_custom_call.1} parent=1 // pred_region
      %290 = dma.done [#allocation24], 64
    $region161: #{tpu_custom_call.1} parent=1 // pred_fallthru
      _
    // Predicated region
    $region162: #{tpu_custom_call.1} parent=1 // pred_check
      _
    $region163: #{tpu_custom_call.1} parent=1 // pred_check_branch
      %292 = sbr.rel (0) target = $region165
    $region164: #{tpu_custom_call.1} parent=1 // pred_region
      %293 = dma.done [#allocation24], 12288
    $region165: #{tpu_custom_call.1} parent=1 // pred_fallthru
      _
    // Predicated region
    $region166: #{tpu_custom_call.1} parent=1 // pred_check
      _
    $region167: #{tpu_custom_call.1} parent=1 // pred_check_branch
      %295 = sbr.rel (0) target = $region169
    $region168: #{tpu_custom_call.1} parent=1 // pred_region
      %296 = dma.done [#allocation27], 64
    $region169: #{tpu_custom_call.1} parent=1 // pred_fallthru
      _
    // Predicated region
    $region170: #{tpu_custom_call.1} parent=1 // pred_check
      _
    $region171: #{tpu_custom_call.1} parent=1 // pred_check_branch
      %298 = sbr.rel (0) target = $region173
    $region172: #{tpu_custom_call.1} parent=1 // pred_region
      %299 = dma.done [#allocation27], 1024
    $region173: #{tpu_custom_call.1} parent=1 // pred_fallthru
      _
    %v301 = vld [vmem:[#allocation2] sm:$0xf]
    %v302 = vld [vmem:[#allocation2 + $0x4] sm:$0xf]
    %v303 = vld [vmem:[#allocation5] sm:$0xf]
    %v304 = vld [vmem:[#allocation5 + $0x4] sm:$0xf]
    %v305 = vld [vmem:[%s2] sm:$0xf]
    %v306 = vld [vmem:[%s2 + $0x4] sm:$0xf]
    %v307 = vld [vmem:[%s2 + $0x8] sm:$0xf]
    %v308 = vld [vmem:[%s2 + $0xc] sm:$0xf]
    %v309 = vld [vmem:[%s3] sm:$0xf]
    %v310 = vld [vmem:[%s3 + $0x4] sm:$0xf]
    %v311 = vld [vmem:[%s3 + $0x8] sm:$0xf]
    %v312 = vld [vmem:[%s3 + $0xc] sm:$0xf]
    %v313 = vld [vmem:[%s6] sm:$0xf]
    %v314 = vld [vmem:[%s6 + $0x4] sm:$0xf]
    %v315 = vld [vmem:[%s6 + $0x8] sm:$0xf]
    %v316 = vld [vmem:[%s6 + $0xc] sm:$0xf]
    %v317 = vld [vmem:[%s6 + $0x10] sm:$0xf]
    %v318 = vld [vmem:[%s6 + $0x14] sm:$0xf]
    %v319 = vld [vmem:[%s6 + $0x18] sm:$0xf]
    %v320 = vld [vmem:[%s6 + $0x1c] sm:$0xf]
    %v321 = vld [vmem:[%s6 + $0x20] sm:$0xf]
    %v322 = vld [vmem:[%s6 + $0x24] sm:$0xf]
    %v323 = vld [vmem:[%s6 + $0x28] sm:$0xf]
    %v324 = vld [vmem:[%s6 + $0x2c] sm:$0xf]
    %v325 = vld [vmem:[%s6 + $0x30] sm:$0xf]
    %v326 = vld [vmem:[%s6 + $0x34] sm:$0xf]
    %v327 = vld [vmem:[%s6 + $0x38] sm:$0xf]
    %v328 = vld [vmem:[%s6 + $0x3c] sm:$0xf]
    %v329 = vld [vmem:[#allocation7] sm:$0xf]
    %v330 = vld [vmem:[#allocation7 + $0x4] sm:$0xf]
    %v331 = vld [vmem:[#allocation7 + $0x8] sm:$0xf]
    %v332 = vld [vmem:[#allocation7 + $0xc] sm:$0xf]
    %v333 = vld [vmem:[#allocation7 + $0x10] sm:$0xf]
    %v334 = vld [vmem:[#allocation7 + $0x14] sm:$0xf]
    %v335 = vld [vmem:[#allocation7 + $0x18] sm:$0xf]
    %v336 = vld [vmem:[#allocation7 + $0x1c] sm:$0xf]
    %v337 = vld [vmem:[#allocation7 + $0x20] sm:$0xf]
    %v338 = vld [vmem:[#allocation7 + $0x24] sm:$0xf]
    %v339 = vld [vmem:[#allocation7 + $0x28] sm:$0xf]
    %v340 = vld [vmem:[#allocation7 + $0x2c] sm:$0xf]
    %v341 = vld [vmem:[#allocation7 + $0x30] sm:$0xf]
    %v342 = vld [vmem:[#allocation7 + $0x34] sm:$0xf]
    %v343 = vld [vmem:[#allocation7 + $0x38] sm:$0xf]
    %v344 = vld [vmem:[#allocation7 + $0x3c] sm:$0xf]
    %v345 = vld [vmem:[#allocation10] sm:$0xf]
    %v346 = vld [vmem:[#allocation10 + $0x4] sm:$0xf]
    %v347 = vld [vmem:[#allocation10 + $0x8] sm:$0xf]
    %v348 = vld [vmem:[#allocation10 + $0xc] sm:$0xf]
    %v349 = vld [vmem:[#allocation10 + $0x10] sm:$0xf]
    %v350 = vld [vmem:[#allocation10 + $0x14] sm:$0xf]
    %v351 = vld [vmem:[#allocation10 + $0x18] sm:$0xf]
    %v352 = vld [vmem:[#allocation10 + $0x1c] sm:$0xf]
    %v353 = vld [vmem:[#allocation10 + $0x20] sm:$0xf]
    %v354 = vld [vmem:[#allocation10 + $0x24] sm:$0xf]
    %v355 = vld [vmem:[#allocation10 + $0x28] sm:$0xf]
    %v356 = vld [vmem:[#allocation10 + $0x2c] sm:$0xf]
    %v357 = vld [vmem:[#allocation10 + $0x30] sm:$0xf]
    %v358 = vld [vmem:[#allocation10 + $0x34] sm:$0xf]
    %v359 = vld [vmem:[#allocation10 + $0x38] sm:$0xf]
    %v360 = vld [vmem:[#allocation10 + $0x3c] sm:$0xf]
    %v361 = vld [vmem:[%s7] sm:$0x1]
    %v362 = vld [vmem:[#allocation8] sm:$0x1]
    %v363 = vld [vmem:[#allocation11] sm:$0x1]
    %v364 = vld [vmem:[#allocation13] sm:$0xf]
    %v365 = vld [vmem:[#allocation13 + $0x4] sm:$0xf]
    %v366 = vld [vmem:[#allocation13 + $0x8] sm:$0xf]
    %v367 = vld [vmem:[#allocation13 + $0xc] sm:$0xf]
    %v368 = vld [vmem:[#allocation13 + $0x10] sm:$0xf]
    %v369 = vld [vmem:[#allocation13 + $0x14] sm:$0xf]
    %v370 = vld [vmem:[#allocation13 + $0x18] sm:$0xf]
    %v371 = vld [vmem:[#allocation13 + $0x1c] sm:$0xf]
    %v372 = vld [vmem:[#allocation13 + $0x20] sm:$0xf]
    %v373 = vld [vmem:[#allocation13 + $0x24] sm:$0xf]
    %v374 = vld [vmem:[#allocation13 + $0x28] sm:$0xf]
    %v375 = vld [vmem:[#allocation13 + $0x2c] sm:$0xf]
    %v376 = vld [vmem:[#allocation13 + $0x30] sm:$0xf]
    %v377 = vld [vmem:[#allocation13 + $0x34] sm:$0xf]
    %v378 = vld [vmem:[#allocation13 + $0x38] sm:$0xf]
    %v379 = vld [vmem:[#allocation13 + $0x3c] sm:$0xf]
    %v380 = vld [vmem:[#allocation16] sm:$0xf]
    %v381 = vld [vmem:[#allocation16 + $0x4] sm:$0xf]
    %v382 = vld [vmem:[#allocation16 + $0x8] sm:$0xf]
    %v383 = vld [vmem:[#allocation16 + $0xc] sm:$0xf]
    %v384 = vld [vmem:[#allocation16 + $0x10] sm:$0xf]
    %v385 = vld [vmem:[#allocation16 + $0x14] sm:$0xf]
    %v386 = vld [vmem:[#allocation16 + $0x18] sm:$0xf]
    %v387 = vld [vmem:[#allocation16 + $0x1c] sm:$0xf]
    %v388 = vld [vmem:[#allocation16 + $0x20] sm:$0xf]
    %v389 = vld [vmem:[#allocation16 + $0x24] sm:$0xf]
    %v390 = vld [vmem:[#allocation16 + $0x28] sm:$0xf]
    %v391 = vld [vmem:[#allocation16 + $0x2c] sm:$0xf]
    %v392 = vld [vmem:[#allocation16 + $0x30] sm:$0xf]
    %v393 = vld [vmem:[#allocation16 + $0x34] sm:$0xf]
    %v394 = vld [vmem:[#allocation16 + $0x38] sm:$0xf]
    %v395 = vld [vmem:[#allocation16 + $0x3c] sm:$0xf]
    %v396 = vld [vmem:[#allocation19] sm:$0xf]
    %v397 = vld [vmem:[#allocation19 + $0x4] sm:$0xf]
    %v398 = vld [vmem:[#allocation19 + $0x8] sm:$0xf]
    %v399 = vld [vmem:[#allocation19 + $0xc] sm:$0xf]
    %v400 = vld [vmem:[#allocation19 + $0x10] sm:$0xf]
    %v401 = vld [vmem:[#allocation19 + $0x14] sm:$0xf]
    %v402 = vld [vmem:[#allocation19 + $0x18] sm:$0xf]
    %v403 = vld [vmem:[#allocation19 + $0x1c] sm:$0xf]
    %v404 = vld [vmem:[#allocation19 + $0x20] sm:$0xf]
    %v405 = vld [vmem:[#allocation19 + $0x24] sm:$0xf]
    %v406 = vld [vmem:[#allocation19 + $0x28] sm:$0xf]
    %v407 = vld [vmem:[#allocation19 + $0x2c] sm:$0xf]
    %v408 = vld [vmem:[#allocation19 + $0x30] sm:$0xf]
    %v409 = vld [vmem:[#allocation19 + $0x34] sm:$0xf]
    %v410 = vld [vmem:[#allocation19 + $0x38] sm:$0xf]
    %v411 = vld [vmem:[#allocation19 + $0x3c] sm:$0xf]
    %v412 = vld [vmem:[#allocation14] sm:$0x1]
    %v413 = vld [vmem:[#allocation17] sm:$0x1]
    %v414 = vld [vmem:[#allocation20] sm:$0x1]
    %v415 = vld [vmem:[#allocation22] sm:$0xff]
    %v416 = vld [vmem:[#allocation22 + $0x8] sm:$0xff]
    %v417 = vld [vmem:[#allocation22 + $0x10] sm:$0xff]
    %v418 = vld [vmem:[#allocation22 + $0x18] sm:$0xff]
    %v419 = vld [vmem:[#allocation22 + $0x20] sm:$0xff]
    %v420 = vld [vmem:[#allocation22 + $0x28] sm:$0xff]
    %v421 = vld [vmem:[#allocation22 + $0x30] sm:$0xff]
    %v422 = vld [vmem:[#allocation22 + $0x38] sm:$0xff]
    %v423 = vld [vmem:[#allocation22 + $0x40] sm:$0xff]
    %v424 = vld [vmem:[#allocation22 + $0x48] sm:$0xff]
    %v425 = vld [vmem:[#allocation22 + $0x50] sm:$0xff]
    %v426 = vld [vmem:[#allocation22 + $0x58] sm:$0xff]
    %v427 = vld [vmem:[#allocation22 + $0x60] sm:$0xff]
    %v428 = vld [vmem:[#allocation22 + $0x68] sm:$0xff]
    %v429 = vld [vmem:[#allocation22 + $0x70] sm:$0xff]
    %v430 = vld [vmem:[#allocation22 + $0x78] sm:$0xff]
    %v431 = vld [vmem:[#allocation22 + $0x80] sm:$0xff]
    %v432 = vld [vmem:[#allocation22 + $0x88] sm:$0xff]
    %v433 = vld [vmem:[#allocation22 + $0x90] sm:$0xff]
    %v434 = vld [vmem:[#allocation22 + $0x98] sm:$0xff]
    %v435 = vld [vmem:[#allocation22 + $0xa0] sm:$0xff]
    %v436 = vld [vmem:[#allocation22 + $0xa8] sm:$0xff]
    %v437 = vld [vmem:[#allocation22 + $0xb0] sm:$0xff]
    %v438 = vld [vmem:[#allocation22 + $0xb8] sm:$0xff]
    %v439 = vld [vmem:[#allocation22 + $0xc0] sm:$0xff]
    %v440 = vld [vmem:[#allocation22 + $0xc8] sm:$0xff]
    %v441 = vld [vmem:[#allocation22 + $0xd0] sm:$0xff]
    %v442 = vld [vmem:[#allocation22 + $0xd8] sm:$0xff]
    %v443 = vld [vmem:[#allocation22 + $0xe0] sm:$0xff]
    %v444 = vld [vmem:[#allocation22 + $0xe8] sm:$0xff]
    %v445 = vld [vmem:[#allocation22 + $0xf0] sm:$0xff]
    %v446 = vld [vmem:[#allocation22 + $0xf8] sm:$0xff]
    %v447 = vld [vmem:[#allocation22 + $0x100] sm:$0xff]
    %v448 = vld [vmem:[#allocation22 + $0x108] sm:$0xff]
    %v449 = vld [vmem:[#allocation22 + $0x110] sm:$0xff]
    %v450 = vld [vmem:[#allocation22 + $0x118] sm:$0xff]
    %v451 = vld [vmem:[#allocation22 + $0x120] sm:$0xff]
    %v452 = vld [vmem:[#allocation22 + $0x128] sm:$0xff]
    %v453 = vld [vmem:[#allocation22 + $0x130] sm:$0xff]
    %v454 = vld [vmem:[#allocation22 + $0x138] sm:$0xff]
    %v455 = vld [vmem:[#allocation22 + $0x140] sm:$0xff]
    %v456 = vld [vmem:[#allocation22 + $0x148] sm:$0xff]
    %v457 = vld [vmem:[#allocation22 + $0x150] sm:$0xff]
    %v458 = vld [vmem:[#allocation22 + $0x158] sm:$0xff]
    %v459 = vld [vmem:[#allocation22 + $0x160] sm:$0xff]
    %v460 = vld [vmem:[#allocation22 + $0x168] sm:$0xff]
    %v461 = vld [vmem:[#allocation22 + $0x170] sm:$0xff]
    %v462 = vld [vmem:[#allocation22 + $0x178] sm:$0xff]
    %v463 = vld [vmem:[#allocation22 + $0x180] sm:$0xff]
    %v464 = vld [vmem:[#allocation22 + $0x188] sm:$0xff]
    %v465 = vld [vmem:[#allocation22 + $0x190] sm:$0xff]
    %v466 = vld [vmem:[#allocation22 + $0x198] sm:$0xff]
    %v467 = vld [vmem:[#allocation22 + $0x1a0] sm:$0xff]
    %v468 = vld [vmem:[#allocation22 + $0x1a8] sm:$0xff]
    %v469 = vld [vmem:[#allocation22 + $0x1b0] sm:$0xff]
    %v470 = vld [vmem:[#allocation22 + $0x1b8] sm:$0xff]
    %v471 = vld [vmem:[#allocation22 + $0x1c0] sm:$0xff]
    %v472 = vld [vmem:[#allocation22 + $0x1c8] sm:$0xff]
    %v473 = vld [vmem:[#allocation22 + $0x1d0] sm:$0xff]
    %v474 = vld [vmem:[#allocation22 + $0x1d8] sm:$0xff]
    %v475 = vld [vmem:[#allocation22 + $0x1e0] sm:$0xff]
    %v476 = vld [vmem:[#allocation22 + $0x1e8] sm:$0xff]
    %v477 = vld [vmem:[#allocation22 + $0x1f0] sm:$0xff]
    %v478 = vld [vmem:[#allocation22 + $0x1f8] sm:$0xff]
    %v479 = vld [vmem:[#allocation23] sm:$0xf]
    %v480 = vld [vmem:[#allocation25] sm:$0xff]
    %v481 = vld [vmem:[#allocation25 + $0x8] sm:$0xff]
    %v482 = vld [vmem:[#allocation25 + $0x10] sm:$0xff]
    %v483 = vld [vmem:[#allocation25 + $0x18] sm:$0xff]
    %v484 = vld [vmem:[#allocation25 + $0x20] sm:$0xff]
    %v485 = vld [vmem:[#allocation25 + $0x28] sm:$0xff]
    %v486 = vld [vmem:[#allocation25 + $0x30] sm:$0xff]
    %v487 = vld [vmem:[#allocation25 + $0x38] sm:$0xff]
    %v488 = vld [vmem:[#allocation25 + $0x40] sm:$0xff]
    %v489 = vld [vmem:[#allocation25 + $0x48] sm:$0xff]
    %v490 = vld [vmem:[#allocation25 + $0x50] sm:$0xff]
    %v491 = vld [vmem:[#allocation25 + $0x58] sm:$0xff]
    %v492 = vld [vmem:[#allocation25 + $0x60] sm:$0xff]
    %v493 = vld [vmem:[#allocation25 + $0x68] sm:$0xff]
    %v494 = vld [vmem:[#allocation25 + $0x70] sm:$0xff]
    %v495 = vld [vmem:[#allocation25 + $0x78] sm:$0xff]
    %v496 = vld [vmem:[#allocation25 + $0x80] sm:$0xff]
    %v497 = vld [vmem:[#allocation25 + $0x88] sm:$0xff]
    %v498 = vld [vmem:[#allocation25 + $0x90] sm:$0xff]
    %v499 = vld [vmem:[#allocation25 + $0x98] sm:$0xff]
    %v500 = vld [vmem:[#allocation25 + $0xa0] sm:$0xff]
    %v501 = vld [vmem:[#allocation25 + $0xa8] sm:$0xff]
    %v502 = vld [vmem:[#allocation25 + $0xb0] sm:$0xff]
    %v503 = vld [vmem:[#allocation25 + $0xb8] sm:$0xff]
    %v504 = vld [vmem:[#allocation25 + $0xc0] sm:$0xff]
    %v505 = vld [vmem:[#allocation25 + $0xc8] sm:$0xff]
    %v506 = vld [vmem:[#allocation25 + $0xd0] sm:$0xff]
    %v507 = vld [vmem:[#allocation25 + $0xd8] sm:$0xff]
    %v508 = vld [vmem:[#allocation25 + $0xe0] sm:$0xff]
    %v509 = vld [vmem:[#allocation25 + $0xe8] sm:$0xff]
    %v510 = vld [vmem:[#allocation25 + $0xf0] sm:$0xff]
    %v511 = vld [vmem:[#allocation25 + $0xf8] sm:$0xff]
    %v512 = vld [vmem:[#allocation25 + $0x100] sm:$0xff]
    %v513 = vld [vmem:[#allocation25 + $0x108] sm:$0xff]
    %v514 = vld [vmem:[#allocation25 + $0x110] sm:$0xff]
    %v515 = vld [vmem:[#allocation25 + $0x118] sm:$0xff]
    %v516 = vld [vmem:[#allocation25 + $0x120] sm:$0xff]
    %v517 = vld [vmem:[#allocation25 + $0x128] sm:$0xff]
    %v518 = vld [vmem:[#allocation25 + $0x130] sm:$0xff]
    %v519 = vld [vmem:[#allocation25 + $0x138] sm:$0xff]
    %v520 = vld [vmem:[#allocation25 + $0x140] sm:$0xff]
    %v521 = vld [vmem:[#allocation25 + $0x148] sm:$0xff]
    %v522 = vld [vmem:[#allocation25 + $0x150] sm:$0xff]
    %v523 = vld [vmem:[#allocation25 + $0x158] sm:$0xff]
    %v524 = vld [vmem:[#allocation25 + $0x160] sm:$0xff]
    %v525 = vld [vmem:[#allocation25 + $0x168] sm:$0xff]
    %v526 = vld [vmem:[#allocation25 + $0x170] sm:$0xff]
    %v527 = vld [vmem:[#allocation25 + $0x178] sm:$0xff]
    %v528 = vld [vmem:[#allocation25 + $0x180] sm:$0xff]
    %v529 = vld [vmem:[#allocation25 + $0x188] sm:$0xff]
    %v530 = vld [vmem:[#allocation25 + $0x190] sm:$0xff]
    %v531 = vld [vmem:[#allocation25 + $0x198] sm:$0xff]
    %v532 = vld [vmem:[#allocation25 + $0x1a0] sm:$0xff]
    %v533 = vld [vmem:[#allocation25 + $0x1a8] sm:$0xff]
    %v534 = vld [vmem:[#allocation25 + $0x1b0] sm:$0xff]
    %v535 = vld [vmem:[#allocation25 + $0x1b8] sm:$0xff]
    %v536 = vld [vmem:[#allocation25 + $0x1c0] sm:$0xff]
    %v537 = vld [vmem:[#allocation25 + $0x1c8] sm:$0xff]
    %v538 = vld [vmem:[#allocation25 + $0x1d0] sm:$0xff]
    %v539 = vld [vmem:[#allocation25 + $0x1d8] sm:$0xff]
    %v540 = vld [vmem:[#allocation25 + $0x1e0] sm:$0xff]
    %v541 = vld [vmem:[#allocation25 + $0x1e8] sm:$0xff]
    %v542 = vld [vmem:[#allocation25 + $0x1f0] sm:$0xff]
    %v543 = vld [vmem:[#allocation25 + $0x1f8] sm:$0xff]
    %v544 = vld [vmem:[#allocation25 + $0x200] sm:$0xff]
    %v545 = vld [vmem:[#allocation25 + $0x208] sm:$0xff]
    %v546 = vld [vmem:[#allocation25 + $0x210] sm:$0xff]
    %v547 = vld [vmem:[#allocation25 + $0x218] sm:$0xff]
    %v548 = vld [vmem:[#allocation25 + $0x220] sm:$0xff]
    %v549 = vld [vmem:[#allocation25 + $0x228] sm:$0xff]
    %v550 = vld [vmem:[#allocation25 + $0x230] sm:$0xff]
    %v551 = vld [vmem:[#allocation25 + $0x238] sm:$0xff]
    %v552 = vld [vmem:[#allocation25 + $0x240] sm:$0xff]
    %v553 = vld [vmem:[#allocation25 + $0x248] sm:$0xff]
    %v554 = vld [vmem:[#allocation25 + $0x250] sm:$0xff]
    %v555 = vld [vmem:[#allocation25 + $0x258] sm:$0xff]
    %v556 = vld [vmem:[#allocation25 + $0x260] sm:$0xff]
    %v557 = vld [vmem:[#allocation25 + $0x268] sm:$0xff]
    %v558 = vld [vmem:[#allocation25 + $0x270] sm:$0xff]
    %v559 = vld [vmem:[#allocation25 + $0x278] sm:$0xff]
    %v560 = vld [vmem:[#allocation25 + $0x280] sm:$0xff]
    %v561 = vld [vmem:[#allocation25 + $0x288] sm:$0xff]
    %v562 = vld [vmem:[#allocation25 + $0x290] sm:$0xff]
    %v563 = vld [vmem:[#allocation25 + $0x298] sm:$0xff]
    %v564 = vld [vmem:[#allocation25 + $0x2a0] sm:$0xff]
    %v565 = vld [vmem:[#allocation25 + $0x2a8] sm:$0xff]
    %v566 = vld [vmem:[#allocation25 + $0x2b0] sm:$0xff]
    %v567 = vld [vmem:[#allocation25 + $0x2b8] sm:$0xff]
    %v568 = vld [vmem:[#allocation25 + $0x2c0] sm:$0xff]
    %v569 = vld [vmem:[#allocation25 + $0x2c8] sm:$0xff]
    %v570 = vld [vmem:[#allocation25 + $0x2d0] sm:$0xff]
    %v571 = vld [vmem:[#allocation25 + $0x2d8] sm:$0xff]
    %v572 = vld [vmem:[#allocation25 + $0x2e0] sm:$0xff]
    %v573 = vld [vmem:[#allocation25 + $0x2e8] sm:$0xff]
    %v574 = vld [vmem:[#allocation25 + $0x2f0] sm:$0xff]
    %v575 = vld [vmem:[#allocation25 + $0x2f8] sm:$0xff]
    %v576 = vld [vmem:[#allocation26] sm:$0xf]
    %v577 = vld [vmem:[%s4] sm:$0x1]
    %v579 = vlaneseq
    %v580 = vshrl.u32 %v579, 7
    %v581 = vsub.s32 0, %v580
    %v582 = vrot.slane %v577, %v581
    %v584 = vpack.c.bf16 %v582, %v582
    %v585 = vld [vmem:[%s5] sm:$0x1]
    %v587 = vlaneseq
    %v588 = vshrl.u32 %v587, 7
    %v589 = vsub.s32 0, %v588
    %v590 = vrot.slane %v585, %v589
    %v592 = vpack.c.bf16 %v590, %v590
    loop: start=0, step=1, limit=4
    $region174: #{tpu_custom_call.1} parent=1 // loop_pre_header
      _
    $region175: #{tpu_custom_call.1} parent=1 // loop_header
      %s594 = sphi 0, %s598
      %p595 = scmp.ge.s32.totalorder %s594, 4
      %v599 = vphi %v584, %v3028
      %v600 = vphi %v584, %v3077
      %v601 = vphi 0.0, %v3022
      %v602 = vphi 0.0, %v3023
      %v603 = vphi 0.0, %v3071
      %v604 = vphi 0.0, %v3072
      %v605 = vphi %v592, %v1709
      %v606 = vphi %v592, %v1710
      %v607 = vphi 0.0, %v1697
      %v608 = vphi 0.0, %v1698
      %v609 = vphi 0.0, %v1699
      %v610 = vphi 0.0, %v1700
    $region176: #{tpu_custom_call.1} parent=1 // loop_header_branch
      %597 = sbr.rel (%p595) target = $region180
    $region177: #{tpu_custom_call.1} parent=1 // loop_body
      %v612 = vlaneseq
      %v613 = vshrl.u32 %v612, 7
      %v614 = vsub.s32 0, %v613
      %v615 = vrot.slane %v361, %v614
      %v633 = vunpack.c.l.b16 %v313
      %v634 = vunpack.c.l.b16 %v314
      %v635 = vunpack.c.l.b16 %v315
      %v636 = vunpack.c.l.b16 %v316
      %v637 = vunpack.c.l.b16 %v317
      %v638 = vunpack.c.l.b16 %v318
      %v639 = vunpack.c.l.b16 %v319
      %v640 = vunpack.c.l.b16 %v320
      %v641 = vunpack.c.l.b16 %v321
      %v642 = vunpack.c.l.b16 %v322
      %v643 = vunpack.c.l.b16 %v323
      %v644 = vunpack.c.l.b16 %v324
      %v645 = vunpack.c.l.b16 %v325
      %v646 = vunpack.c.l.b16 %v326
      %v647 = vunpack.c.l.b16 %v327
      %v648 = vunpack.c.l.b16 %v328
      %v649 = vpack.c.b16 %v634, %v633
      %v650 = vpack.c.b16 %v636, %v635
      %v651 = vpack.c.b16 %v638, %v637
      %v652 = vpack.c.b16 %v640, %v639
      %v653 = vpack.c.b16 %v642, %v641
      %v654 = vpack.c.b16 %v644, %v643
      %v655 = vpack.c.b16 %v646, %v645
      %v656 = vpack.c.b16 %v648, %v647
      %665 = vmatprep.subr.bf16.mxu0 0
      %666 = vmatpush1.bf16.msra.mxu0 %v649
      %667 = vmatprep.subr.bf16.mxu0 0
      %668 = vmatpush1.bf16.msra.mxu0 %v650
      %669 = vmatprep.subr.bf16.mxu0 0
      %670 = vmatpush1.bf16.msra.mxu0 %v651
      %671 = vmatprep.subr.bf16.mxu0 0
      %672 = vmatpush1.bf16.msra.mxu0 %v652
      %673 = vmatprep.subr.bf16.mxu0 0
      %674 = vmatpush1.bf16.msra.mxu0 %v653
      %675 = vmatprep.subr.bf16.mxu0 0
      %676 = vmatpush1.bf16.msra.mxu0 %v654
      %677 = vmatprep.subr.bf16.mxu0 0
      %678 = vmatpush1.bf16.msra.mxu0 %v655
      %679 = vmatprep.subr.bf16.mxu0 0
      %680 = vmatpush1.bf16.msra.mxu0 %v656
      %681 = vmatprep.subr.bf16.mxu0 0
      %682 = vmatpush1.bf16.msra.mxu0 0
      %683 = vmatprep.subr.bf16.mxu0 0
      %684 = vmatpush1.bf16.msra.mxu0 0
      %685 = vmatprep.subr.bf16.mxu0 0
      %686 = vmatpush1.bf16.msra.mxu0 0
      %687 = vmatprep.subr.bf16.mxu0 0
      %688 = vmatpush1.bf16.msra.mxu0 0
      %689 = vmatprep.subr.bf16.mxu0 0
      %690 = vmatpush1.bf16.msra.mxu0 0
      %691 = vmatprep.subr.bf16.mxu0 0
      %692 = vmatpush1.bf16.msra.mxu0 0
      %693 = vmatprep.subr.bf16.mxu0 0
      %694 = vmatpush1.bf16.msra.mxu0 0
      %695 = vmatprep.subr.bf16.mxu0 0
      %696 = vmatpush1.bf16.msra.mxu0 0
      %697 = vmatprep.mubr.bf16.mxu0 0
      %698 = vmatmul.mubr.bf16.gmra.mrb[0].mxu0 %v599
      %v699 = vpop.f32.mrb[0].mxu0
      %v700 = vadd.f32 %v615, %v699
      %v701 = vpop.f32.mrb[0].mxu0
      %v702 = vpop.f32.mrb[0].mxu0
      %v703 = vadd.f32 %v615, %v702
      %v704 = vpop.f32.mrb[0].mxu0
      %705 = vdwg.mxu0
      %v706 = vmax.f32 %v700, 0.0
      %v707 = vmax.f32 %v703, 0.0
      %v708 = vpack.c.bf16 %v707, %v706
      %v710 = vlaneseq
      %v711 = vshrl.u32 %v710, 7
      %v712 = vsub.s32 0, %v711
      %v713 = vrot.slane %v362, %v712
      %v731 = vunpack.c.l.b16 %v329
      %v732 = vunpack.c.l.b16 %v330
      %v733 = vunpack.c.l.b16 %v331
      %v734 = vunpack.c.l.b16 %v332
      %v735 = vunpack.c.l.b16 %v333
      %v736 = vunpack.c.l.b16 %v334
      %v737 = vunpack.c.l.b16 %v335
      %v738 = vunpack.c.l.b16 %v336
      %v739 = vunpack.c.l.b16 %v337
      %v740 = vunpack.c.l.b16 %v338
      %v741 = vunpack.c.l.b16 %v339
      %v742 = vunpack.c.l.b16 %v340
      %v743 = vunpack.c.l.b16 %v341
      %v744 = vunpack.c.l.b16 %v342
      %v745 = vunpack.c.l.b16 %v343
      %v746 = vunpack.c.l.b16 %v344
      %v747 = vpack.c.b16 %v732, %v731
      %v748 = vpack.c.b16 %v734, %v733
      %v749 = vpack.c.b16 %v736, %v735
      %v750 = vpack.c.b16 %v738, %v737
      %v751 = vpack.c.b16 %v740, %v739
      %v752 = vpack.c.b16 %v742, %v741
      %v753 = vpack.c.b16 %v744, %v743
      %v754 = vpack.c.b16 %v746, %v745
      %763 = vmatprep.subr.bf16.mxu0 0
      %764 = vmatpush1.bf16.msra.mxu0 %v747
      %765 = vmatprep.subr.bf16.mxu0 0
      %766 = vmatpush1.bf16.msra.mxu0 %v748
      %767 = vmatprep.subr.bf16.mxu0 0
      %768 = vmatpush1.bf16.msra.mxu0 %v749
      %769 = vmatprep.subr.bf16.mxu0 0
      %770 = vmatpush1.bf16.msra.mxu0 %v750
      %771 = vmatprep.subr.bf16.mxu0 0
      %772 = vmatpush1.bf16.msra.mxu0 %v751
      %773 = vmatprep.subr.bf16.mxu0 0
      %774 = vmatpush1.bf16.msra.mxu0 %v752
      %775 = vmatprep.subr.bf16.mxu0 0
      %776 = vmatpush1.bf16.msra.mxu0 %v753
      %777 = vmatprep.subr.bf16.mxu0 0
      %778 = vmatpush1.bf16.msra.mxu0 %v754
      %779 = vmatprep.subr.bf16.mxu0 0
      %780 = vmatpush1.bf16.msra.mxu0 0
      %781 = vmatprep.subr.bf16.mxu0 0
      %782 = vmatpush1.bf16.msra.mxu0 0
      %783 = vmatprep.subr.bf16.mxu0 0
      %784 = vmatpush1.bf16.msra.mxu0 0
      %785 = vmatprep.subr.bf16.mxu0 0
      %786 = vmatpush1.bf16.msra.mxu0 0
      %787 = vmatprep.subr.bf16.mxu0 0
      %788 = vmatpush1.bf16.msra.mxu0 0
      %789 = vmatprep.subr.bf16.mxu0 0
      %790 = vmatpush1.bf16.msra.mxu0 0
      %791 = vmatprep.subr.bf16.mxu0 0
      %792 = vmatpush1.bf16.msra.mxu0 0
      %793 = vmatprep.subr.bf16.mxu0 0
      %794 = vmatpush1.bf16.msra.mxu0 0
      %795 = vmatprep.mubr.bf16.mxu0 0
      %796 = vmatmul.mubr.bf16.gmra.mrb[0].mxu0 %v708
      %v797 = vpop.f32.mrb[0].mxu0
      %v798 = vadd.f32 %v713, %v797
      %v799 = vpop.f32.mrb[0].mxu0
      %v800 = vpop.f32.mrb[0].mxu0
      %v801 = vadd.f32 %v713, %v800
      %v802 = vpop.f32.mrb[0].mxu0
      %803 = vdwg.mxu0
      %v804 = vmax.f32 %v798, 0.0
      %v805 = vmax.f32 %v801, 0.0
      %v806 = vpack.c.bf16 %v805, %v804
      %v808 = vlaneseq
      %v809 = vshrl.u32 %v808, 7
      %v810 = vsub.s32 0, %v809
      %v811 = vrot.slane %v363, %v810
      %v829 = vunpack.c.l.b16 %v345
      %v830 = vunpack.c.l.b16 %v346
      %v831 = vunpack.c.l.b16 %v347
      %v832 = vunpack.c.l.b16 %v348
      %v833 = vunpack.c.l.b16 %v349
      %v834 = vunpack.c.l.b16 %v350
      %v835 = vunpack.c.l.b16 %v351
      %v836 = vunpack.c.l.b16 %v352
      %v837 = vunpack.c.l.b16 %v353
      %v838 = vunpack.c.l.b16 %v354
      %v839 = vunpack.c.l.b16 %v355
      %v840 = vunpack.c.l.b16 %v356
      %v841 = vunpack.c.l.b16 %v357
      %v842 = vunpack.c.l.b16 %v358
      %v843 = vunpack.c.l.b16 %v359
      %v844 = vunpack.c.l.b16 %v360
      %v845 = vpack.c.b16 %v830, %v829
      %v846 = vpack.c.b16 %v832, %v831
      %v847 = vpack.c.b16 %v834, %v833
      %v848 = vpack.c.b16 %v836, %v835
      %v849 = vpack.c.b16 %v838, %v837
      %v850 = vpack.c.b16 %v840, %v839
      %v851 = vpack.c.b16 %v842, %v841
      %v852 = vpack.c.b16 %v844, %v843
      %861 = vmatprep.subr.bf16.mxu0 0
      %862 = vmatpush1.bf16.msra.mxu0 %v845
      %863 = vmatprep.subr.bf16.mxu0 0
      %864 = vmatpush1.bf16.msra.mxu0 %v846
      %865 = vmatprep.subr.bf16.mxu0 0
      %866 = vmatpush1.bf16.msra.mxu0 %v847
      %867 = vmatprep.subr.bf16.mxu0 0
      %868 = vmatpush1.bf16.msra.mxu0 %v848
      %869 = vmatprep.subr.bf16.mxu0 0
      %870 = vmatpush1.bf16.msra.mxu0 %v849
      %871 = vmatprep.subr.bf16.mxu0 0
      %872 = vmatpush1.bf16.msra.mxu0 %v850
      %873 = vmatprep.subr.bf16.mxu0 0
      %874 = vmatpush1.bf16.msra.mxu0 %v851
      %875 = vmatprep.subr.bf16.mxu0 0
      %876 = vmatpush1.bf16.msra.mxu0 %v852
      %877 = vmatprep.subr.bf16.mxu0 0
      %878 = vmatpush1.bf16.msra.mxu0 0
      %879 = vmatprep.subr.bf16.mxu0 0
      %880 = vmatpush1.bf16.msra.mxu0 0
      %881 = vmatprep.subr.bf16.mxu0 0
      %882 = vmatpush1.bf16.msra.mxu0 0
      %883 = vmatprep.subr.bf16.mxu0 0
      %884 = vmatpush1.bf16.msra.mxu0 0
      %885 = vmatprep.subr.bf16.mxu0 0
      %886 = vmatpush1.bf16.msra.mxu0 0
      %887 = vmatprep.subr.bf16.mxu0 0
      %888 = vmatpush1.bf16.msra.mxu0 0
      %889 = vmatprep.subr.bf16.mxu0 0
      %890 = vmatpush1.bf16.msra.mxu0 0
      %891 = vmatprep.subr.bf16.mxu0 0
      %892 = vmatpush1.bf16.msra.mxu0 0
      %893 = vmatprep.mubr.bf16.mxu0 0
      %894 = vmatmul.mubr.bf16.gmra.mrb[0].mxu0 %v806
      %v895 = vpop.f32.mrb[0].mxu0
      %v896 = vadd.f32 %v811, %v895
      %v897 = vpop.f32.mrb[0].mxu0
      %v898 = vpop.f32.mrb[0].mxu0
      %v899 = vadd.f32 %v811, %v898
      %v900 = vpop.f32.mrb[0].mxu0
      %901 = vdwg.mxu0
      %902 = vmatprep.subr.bf16.mxu0 0
      %903 = vmatpush1.bf16.msra.mxu0 %v649
      %904 = vmatprep.subr.bf16.mxu0 0
      %905 = vmatpush1.bf16.msra.mxu0 %v650
      %906 = vmatprep.subr.bf16.mxu0 0
      %907 = vmatpush1.bf16.msra.mxu0 %v651
      %908 = vmatprep.subr.bf16.mxu0 0
      %909 = vmatpush1.bf16.msra.mxu0 %v652
      %910 = vmatprep.subr.bf16.mxu0 0
      %911 = vmatpush1.bf16.msra.mxu0 %v653
      %912 = vmatprep.subr.bf16.mxu0 0
      %913 = vmatpush1.bf16.msra.mxu0 %v654
      %914 = vmatprep.subr.bf16.mxu0 0
      %915 = vmatpush1.bf16.msra.mxu0 %v655
      %916 = vmatprep.subr.bf16.mxu0 0
      %917 = vmatpush1.bf16.msra.mxu0 %v656
      %918 = vmatprep.subr.bf16.mxu0 0
      %919 = vmatpush1.bf16.msra.mxu0 0
      %920 = vmatprep.subr.bf16.mxu0 0
      %921 = vmatpush1.bf16.msra.mxu0 0
      %922 = vmatprep.subr.bf16.mxu0 0
      %923 = vmatpush1.bf16.msra.mxu0 0
      %924 = vmatprep.subr.bf16.mxu0 0
      %925 = vmatpush1.bf16.msra.mxu0 0
      %926 = vmatprep.subr.bf16.mxu0 0
      %927 = vmatpush1.bf16.msra.mxu0 0
      %928 = vmatprep.subr.bf16.mxu0 0
      %929 = vmatpush1.bf16.msra.mxu0 0
      %930 = vmatprep.subr.bf16.mxu0 0
      %931 = vmatpush1.bf16.msra.mxu0 0
      %932 = vmatprep.subr.bf16.mxu0 0
      %933 = vmatpush1.bf16.msra.mxu0 0
      %934 = vmatprep.mubr.bf16.mxu0 0
      %935 = vmatmul.mubr.bf16.gmra.mrb[0].mxu0 %v600
      %v936 = vpop.f32.mrb[0].mxu0
      %v937 = vadd.f32 %v615, %v936
      %v938 = vpop.f32.mrb[0].mxu0
      %v939 = vpop.f32.mrb[0].mxu0
      %v940 = vadd.f32 %v615, %v939
      %v941 = vpop.f32.mrb[0].mxu0
      %942 = vdwg.mxu0
      %v943 = vmax.f32 %v937, 0.0
      %v944 = vmax.f32 %v940, 0.0
      %v945 = vpack.c.bf16 %v944, %v943
      %946 = vmatprep.subr.bf16.mxu0 0
      %947 = vmatpush1.bf16.msra.mxu0 %v747
      %948 = vmatprep.subr.bf16.mxu0 0
      %949 = vmatpush1.bf16.msra.mxu0 %v748
      %950 = vmatprep.subr.bf16.mxu0 0
      %951 = vmatpush1.bf16.msra.mxu0 %v749
      %952 = vmatprep.subr.bf16.mxu0 0
      %953 = vmatpush1.bf16.msra.mxu0 %v750
      %954 = vmatprep.subr.bf16.mxu0 0
      %955 = vmatpush1.bf16.msra.mxu0 %v751
      %956 = vmatprep.subr.bf16.mxu0 0
      %957 = vmatpush1.bf16.msra.mxu0 %v752
      %958 = vmatprep.subr.bf16.mxu0 0
      %959 = vmatpush1.bf16.msra.mxu0 %v753
      %960 = vmatprep.subr.bf16.mxu0 0
      %961 = vmatpush1.bf16.msra.mxu0 %v754
      %962 = vmatprep.subr.bf16.mxu0 0
      %963 = vmatpush1.bf16.msra.mxu0 0
      %964 = vmatprep.subr.bf16.mxu0 0
      %965 = vmatpush1.bf16.msra.mxu0 0
      %966 = vmatprep.subr.bf16.mxu0 0
      %967 = vmatpush1.bf16.msra.mxu0 0
      %968 = vmatprep.subr.bf16.mxu0 0
      %969 = vmatpush1.bf16.msra.mxu0 0
      %970 = vmatprep.subr.bf16.mxu0 0
      %971 = vmatpush1.bf16.msra.mxu0 0
      %972 = vmatprep.subr.bf16.mxu0 0
      %973 = vmatpush1.bf16.msra.mxu0 0
      %974 = vmatprep.subr.bf16.mxu0 0
      %975 = vmatpush1.bf16.msra.mxu0 0
      %976 = vmatprep.subr.bf16.mxu0 0
      %977 = vmatpush1.bf16.msra.mxu0 0
      %978 = vmatprep.mubr.bf16.mxu0 0
      %979 = vmatmul.mubr.bf16.gmra.mrb[0].mxu0 %v945
      %v980 = vpop.f32.mrb[0].mxu0
      %v981 = vadd.f32 %v713, %v980
      %v982 = vpop.f32.mrb[0].mxu0
      %v983 = vpop.f32.mrb[0].mxu0
      %v984 = vadd.f32 %v713, %v983
      %v985 = vpop.f32.mrb[0].mxu0
      %986 = vdwg.mxu0
      %v987 = vmax.f32 %v981, 0.0
      %v988 = vmax.f32 %v984, 0.0
      %v989 = vpack.c.bf16 %v988, %v987
      %990 = vmatprep.subr.bf16.mxu0 0
      %991 = vmatpush1.bf16.msra.mxu0 %v845
      %992 = vmatprep.subr.bf16.mxu0 0
      %993 = vmatpush1.bf16.msra.mxu0 %v846
      %994 = vmatprep.subr.bf16.mxu0 0
      %995 = vmatpush1.bf16.msra.mxu0 %v847
      %996 = vmatprep.subr.bf16.mxu0 0
      %997 = vmatpush1.bf16.msra.mxu0 %v848
      %998 = vmatprep.subr.bf16.mxu0 0
      %999 = vmatpush1.bf16.msra.mxu0 %v849
      %1000 = vmatprep.subr.bf16.mxu0 0
      %1001 = vmatpush1.bf16.msra.mxu0 %v850
      %1002 = vmatprep.subr.bf16.mxu0 0
      %1003 = vmatpush1.bf16.msra.mxu0 %v851
      %1004 = vmatprep.subr.bf16.mxu0 0
      %1005 = vmatpush1.bf16.msra.mxu0 %v852
      %1006 = vmatprep.subr.bf16.mxu0 0
      %1007 = vmatpush1.bf16.msra.mxu0 0
      %1008 = vmatprep.subr.bf16.mxu0 0
      %1009 = vmatpush1.bf16.msra.mxu0 0
      %1010 = vmatprep.subr.bf16.mxu0 0
      %1011 = vmatpush1.bf16.msra.mxu0 0
      %1012 = vmatprep.subr.bf16.mxu0 0
      %1013 = vmatpush1.bf16.msra.mxu0 0
      %1014 = vmatprep.subr.bf16.mxu0 0
      %1015 = vmatpush1.bf16.msra.mxu0 0
      %1016 = vmatprep.subr.bf16.mxu0 0
      %1017 = vmatpush1.bf16.msra.mxu0 0
      %1018 = vmatprep.subr.bf16.mxu0 0
      %1019 = vmatpush1.bf16.msra.mxu0 0
      %1020 = vmatprep.subr.bf16.mxu0 0
      %1021 = vmatpush1.bf16.msra.mxu0 0
      %1022 = vmatprep.mubr.bf16.mxu0 0
      %1023 = vmatmul.mubr.bf16.gmra.mrb[0].mxu0 %v989
      %v1024 = vpop.f32.mrb[0].mxu0
      %v1025 = vadd.f32 %v811, %v1024
      %v1026 = vpop.f32.mrb[0].mxu0
      %v1027 = vpop.f32.mrb[0].mxu0
      %v1028 = vadd.f32 %v811, %v1027
      %v1029 = vpop.f32.mrb[0].mxu0
      %1030 = vdwg.mxu0
      %v1031 = vpack.c.bf16 %v899, %v896
      %v1032 = vpack.c.bf16 %v1028, %v1025
      %v1037 = vunpack.c.l.b16 %v309
      %v1038 = vunpack.c.l.b16 %v310
      %v1039 = vunpack.c.l.b16 %v311
      %v1040 = vunpack.c.l.b16 %v312
      %v1041 = vpack.c.b16 %v1038, %v1037
      %v1042 = vpack.c.b16 %v1040, %v1039
      %vm1043 = vcmask 130048
      %v1045 = vsel %vm1043, %v1041, 0
      %v1048 = vsel %vm1043, %v1042, 0
      %1050 = vmatprep.subr.bf16.mxu0 0
      %1051 = vmatpush1.bf16.msra.mxu0 %v1032
      %1052 = vmatprep.subr.bf16.mxu0 0
      %1053 = vmatpush1.bf16.msra.mxu0 0
      %1054 = vmatprep.subr.bf16.mxu0 0
      %1055 = vmatpush1.bf16.msra.mxu0 0
      %1056 = vmatprep.subr.bf16.mxu0 0
      %1057 = vmatpush1.bf16.msra.mxu0 0
      %1058 = vmatprep.subr.bf16.mxu0 0
      %1059 = vmatpush1.bf16.msra.mxu0 0
      %1060 = vmatprep.subr.bf16.mxu0 0
      %1061 = vmatpush1.bf16.msra.mxu0 0
      %1062 = vmatprep.subr.bf16.mxu0 0
      %1063 = vmatpush1.bf16.msra.mxu0 0
      %1064 = vmatprep.subr.bf16.mxu0 0
      %1065 = vmatpush1.bf16.msra.mxu0 0
      %1066 = vmatprep.subr.bf16.mxu0 0
      %1067 = vmatpush1.bf16.msra.mxu0 0
      %1068 = vmatprep.subr.bf16.mxu0 0
      %1069 = vmatpush1.bf16.msra.mxu0 0
      %1070 = vmatprep.subr.bf16.mxu0 0
      %1071 = vmatpush1.bf16.msra.mxu0 0
      %1072 = vmatprep.subr.bf16.mxu0 0
      %1073 = vmatpush1.bf16.msra.mxu0 0
      %1074 = vmatprep.subr.bf16.mxu0 0
      %1075 = vmatpush1.bf16.msra.mxu0 0
      %1076 = vmatprep.subr.bf16.mxu0 0
      %1077 = vmatpush1.bf16.msra.mxu0 0
      %1078 = vmatprep.subr.bf16.mxu0 0
      %1079 = vmatpush1.bf16.msra.mxu0 0
      %1080 = vmatprep.subr.bf16.mxu0 0
      %1081 = vmatpush1.bf16.msra.mxu0 0
      %1082 = vmatprep.mubr.bf16.mxu0 0
      %1083 = vmatmul.mubr.bf16.gmra.mrb[0].mxu0 %v1045
      %v1084 = vpop.f32.mrb[0].mxu0
      %v1085 = vadd.f32 0.0, %v1084
      %v1086 = vpop.f32.mrb[0].mxu0
      %v1087 = vpop.f32.mrb[0].mxu0
      %v1088 = vadd.f32 0.0, %v1087
      %v1089 = vpop.f32.mrb[0].mxu0
      %1090 = vmatprep.mubr.bf16.mxu0 0
      %1091 = vmatmul.mubr.bf16.gmra.mrb[0].mxu0 %v1048
      %v1092 = vpop.f32.mrb[0].mxu0
      %v1093 = vadd.f32 0.0, %v1092
      %v1094 = vpop.f32.mrb[0].mxu0
      %v1095 = vpop.f32.mrb[0].mxu0
      %v1096 = vadd.f32 0.0, %v1095
      %v1097 = vpop.f32.mrb[0].mxu0
      %1098 = vdwg.mxu0
      %v1103 = vunpack.c.l.b16 %v305
      %v1104 = vunpack.c.l.b16 %v306
      %v1105 = vunpack.c.l.b16 %v307
      %v1106 = vunpack.c.l.b16 %v308
      %v1107 = vpack.c.b16 %v1104, %v1103
      %v1108 = vpack.c.b16 %v1106, %v1105
      %v1110 = vsel %vm1043, %v1107, 0
      %v1113 = vsel %vm1043, %v1108, 0
      %1115 = vmatprep.subr.bf16.mxu0 0
      %1116 = vmatpush1.bf16.msra.mxu0 %v1031
      %1117 = vmatprep.subr.bf16.mxu0 0
      %1118 = vmatpush1.bf16.msra.mxu0 0
      %1119 = vmatprep.subr.bf16.mxu0 0
      %1120 = vmatpush1.bf16.msra.mxu0 0
      %1121 = vmatprep.subr.bf16.mxu0 0
      %1122 = vmatpush1.bf16.msra.mxu0 0
      %1123 = vmatprep.subr.bf16.mxu0 0
      %1124 = vmatpush1.bf16.msra.mxu0 0
      %1125 = vmatprep.subr.bf16.mxu0 0
      %1126 = vmatpush1.bf16.msra.mxu0 0
      %1127 = vmatprep.subr.bf16.mxu0 0
      %1128 = vmatpush1.bf16.msra.mxu0 0
      %1129 = vmatprep.subr.bf16.mxu0 0
      %1130 = vmatpush1.bf16.msra.mxu0 0
      %1131 = vmatprep.subr.bf16.mxu0 0
      %1132 = vmatpush1.bf16.msra.mxu0 0
      %1133 = vmatprep.subr.bf16.mxu0 0
      %1134 = vmatpush1.bf16.msra.mxu0 0
      %1135 = vmatprep.subr.bf16.mxu0 0
      %1136 = vmatpush1.bf16.msra.mxu0 0
      %1137 = vmatprep.subr.bf16.mxu0 0
      %1138 = vmatpush1.bf16.msra.mxu0 0
      %1139 = vmatprep.subr.bf16.mxu0 0
      %1140 = vmatpush1.bf16.msra.mxu0 0
      %1141 = vmatprep.subr.bf16.mxu0 0
      %1142 = vmatpush1.bf16.msra.mxu0 0
      %1143 = vmatprep.subr.bf16.mxu0 0
      %1144 = vmatpush1.bf16.msra.mxu0 0
      %1145 = vmatprep.subr.bf16.mxu0 0
      %1146 = vmatpush1.bf16.msra.mxu0 0
      %1147 = vmatprep.mubr.bf16.mxu0 0
      %1148 = vmatmul.mubr.bf16.gmra.mrb[0].mxu0 %v1110
      %v1149 = vpop.f32.mrb[0].mxu0
      %v1150 = vadd.f32 %v1085, %v1149
      %v1151 = vpop.f32.mrb[0].mxu0
      %v1152 = vpop.f32.mrb[0].mxu0
      %v1153 = vadd.f32 %v1088, %v1152
      %v1154 = vpop.f32.mrb[0].mxu0
      %1155 = vmatprep.mubr.bf16.mxu0 0
      %1156 = vmatmul.mubr.bf16.gmra.mrb[0].mxu0 %v1113
      %v1157 = vpop.f32.mrb[0].mxu0
      %v1158 = vadd.f32 %v1093, %v1157
      %v1159 = vpop.f32.mrb[0].mxu0
      %v1160 = vpop.f32.mrb[0].mxu0
      %v1161 = vadd.f32 %v1096, %v1160
      %v1162 = vpop.f32.mrb[0].mxu0
      %1163 = vdwg.mxu0
      %v1164 = vpack.c.bf16 %v1153, %v1150
      %v1165 = vpack.c.bf16 %v1161, %v1158
      %v1167 = vlaneseq
      %v1168 = vshrl.u32 %v1167, 7
      %v1169 = vsub.s32 0, %v1168
      %v1170 = vrot.slane %v479, %v1169
      %v1171 = vlaneseq
      %v1172 = vshrl.u32 %v1171, 7
      %v1173 = vsub.s32 1, %v1172
      %v1174 = vrot.slane %v479, %v1173
      %v1175 = vlaneseq
      %v1176 = vshrl.u32 %v1175, 7
      %v1177 = vsub.s32 2, %v1176
      %v1178 = vrot.slane %v479, %v1177
      %v1179 = vlaneseq
      %v1180 = vshrl.u32 %v1179, 7
      %v1181 = vsub.s32 3, %v1180
      %v1182 = vrot.slane %v479, %v1181
      %v1251 = vunpack.c.l.b16 %v415
      %v1252 = vunpack.c.h.b16 %v415
      %v1253 = vunpack.c.l.b16 %v416
      %v1254 = vunpack.c.h.b16 %v416
      %v1255 = vunpack.c.l.b16 %v417
      %v1256 = vunpack.c.h.b16 %v417
      %v1257 = vunpack.c.l.b16 %v418
      %v1258 = vunpack.c.h.b16 %v418
      %v1259 = vunpack.c.l.b16 %v419
      %v1260 = vunpack.c.h.b16 %v419
      %v1261 = vunpack.c.l.b16 %v420
      %v1262 = vunpack.c.h.b16 %v420
      %v1263 = vunpack.c.l.b16 %v421
      %v1264 = vunpack.c.h.b16 %v421
      %v1265 = vunpack.c.l.b16 %v422
      %v1266 = vunpack.c.h.b16 %v422
      %v1267 = vunpack.c.l.b16 %v423
      %v1268 = vunpack.c.h.b16 %v423
      %v1269 = vunpack.c.l.b16 %v424
      %v1270 = vunpack.c.h.b16 %v424
      %v1271 = vunpack.c.l.b16 %v425
      %v1272 = vunpack.c.h.b16 %v425
      %v1273 = vunpack.c.l.b16 %v426
      %v1274 = vunpack.c.h.b16 %v426
      %v1275 = vunpack.c.l.b16 %v427
      %v1276 = vunpack.c.h.b16 %v427
      %v1277 = vunpack.c.l.b16 %v428
      %v1278 = vunpack.c.h.b16 %v428
      %v1279 = vunpack.c.l.b16 %v429
      %v1280 = vunpack.c.h.b16 %v429
      %v1281 = vunpack.c.l.b16 %v430
      %v1282 = vunpack.c.h.b16 %v430
      %v1283 = vunpack.c.l.b16 %v431
      %v1284 = vunpack.c.h.b16 %v431
      %v1285 = vunpack.c.l.b16 %v432
      %v1286 = vunpack.c.h.b16 %v432
      %v1287 = vunpack.c.l.b16 %v433
      %v1288 = vunpack.c.h.b16 %v433
      %v1289 = vunpack.c.l.b16 %v434
      %v1290 = vunpack.c.h.b16 %v434
      %v1291 = vunpack.c.l.b16 %v435
      %v1292 = vunpack.c.h.b16 %v435
      %v1293 = vunpack.c.l.b16 %v436
      %v1294 = vunpack.c.h.b16 %v436
      %v1295 = vunpack.c.l.b16 %v437
      %v1296 = vunpack.c.h.b16 %v437
      %v1297 = vunpack.c.l.b16 %v438
      %v1298 = vunpack.c.h.b16 %v438
      %v1299 = vunpack.c.l.b16 %v439
      %v1300 = vunpack.c.h.b16 %v439
      %v1301 = vunpack.c.l.b16 %v440
      %v1302 = vunpack.c.h.b16 %v440
      %v1303 = vunpack.c.l.b16 %v441
      %v1304 = vunpack.c.h.b16 %v441
      %v1305 = vunpack.c.l.b16 %v442
      %v1306 = vunpack.c.h.b16 %v442
      %v1307 = vunpack.c.l.b16 %v443
      %v1308 = vunpack.c.h.b16 %v443
      %v1309 = vunpack.c.l.b16 %v444
      %v1310 = vunpack.c.h.b16 %v444
      %v1311 = vunpack.c.l.b16 %v445
      %v1312 = vunpack.c.h.b16 %v445
      %v1313 = vunpack.c.l.b16 %v446
      %v1314 = vunpack.c.h.b16 %v446
      %v1315 = vunpack.c.l.b16 %v447
      %v1316 = vunpack.c.h.b16 %v447
      %v1317 = vunpack.c.l.b16 %v448
      %v1318 = vunpack.c.h.b16 %v448
      %v1319 = vunpack.c.l.b16 %v449
      %v1320 = vunpack.c.h.b16 %v449
      %v1321 = vunpack.c.l.b16 %v450
      %v1322 = vunpack.c.h.b16 %v450
      %v1323 = vunpack.c.l.b16 %v451
      %v1324 = vunpack.c.h.b16 %v451
      %v1325 = vunpack.c.l.b16 %v452
      %v1326 = vunpack.c.h.b16 %v452
      %v1327 = vunpack.c.l.b16 %v453
      %v1328 = vunpack.c.h.b16 %v453
      %v1329 = vunpack.c.l.b16 %v454
      %v1330 = vunpack.c.h.b16 %v454
      %v1331 = vunpack.c.l.b16 %v455
      %v1332 = vunpack.c.h.b16 %v455
      %v1333 = vunpack.c.l.b16 %v456
      %v1334 = vunpack.c.h.b16 %v456
      %v1335 = vunpack.c.l.b16 %v457
      %v1336 = vunpack.c.h.b16 %v457
      %v1337 = vunpack.c.l.b16 %v458
      %v1338 = vunpack.c.h.b16 %v458
      %v1339 = vunpack.c.l.b16 %v459
      %v1340 = vunpack.c.h.b16 %v459
      %v1341 = vunpack.c.l.b16 %v460
      %v1342 = vunpack.c.h.b16 %v460
      %v1343 = vunpack.c.l.b16 %v461
      %v1344 = vunpack.c.h.b16 %v461
      %v1345 = vunpack.c.l.b16 %v462
      %v1346 = vunpack.c.h.b16 %v462
      %v1347 = vunpack.c.l.b16 %v463
      %v1348 = vunpack.c.h.b16 %v463
      %v1349 = vunpack.c.l.b16 %v464
      %v1350 = vunpack.c.h.b16 %v464
      %v1351 = vunpack.c.l.b16 %v465
      %v1352 = vunpack.c.h.b16 %v465
      %v1353 = vunpack.c.l.b16 %v466
      %v1354 = vunpack.c.h.b16 %v466
      %v1355 = vunpack.c.l.b16 %v467
      %v1356 = vunpack.c.h.b16 %v467
      %v1357 = vunpack.c.l.b16 %v468
      %v1358 = vunpack.c.h.b16 %v468
      %v1359 = vunpack.c.l.b16 %v469
      %v1360 = vunpack.c.h.b16 %v469
      %v1361 = vunpack.c.l.b16 %v470
      %v1362 = vunpack.c.h.b16 %v470
      %v1363 = vunpack.c.l.b16 %v471
      %v1364 = vunpack.c.h.b16 %v471
      %v1365 = vunpack.c.l.b16 %v472
      %v1366 = vunpack.c.h.b16 %v472
      %v1367 = vunpack.c.l.b16 %v473
      %v1368 = vunpack.c.h.b16 %v473
      %v1369 = vunpack.c.l.b16 %v474
      %v1370 = vunpack.c.h.b16 %v474
      %v1371 = vunpack.c.l.b16 %v475
      %v1372 = vunpack.c.h.b16 %v475
      %v1373 = vunpack.c.l.b16 %v476
      %v1374 = vunpack.c.h.b16 %v476
      %v1375 = vunpack.c.l.b16 %v477
      %v1376 = vunpack.c.h.b16 %v477
      %v1377 = vunpack.c.l.b16 %v478
      %v1378 = vunpack.c.h.b16 %v478
      %v1379 = vpack.c.b16 %v1255, %v1251
      %v1380 = vpack.c.b16 %v1256, %v1252
      %v1381 = vpack.c.b16 %v1257, %v1253
      %v1382 = vpack.c.b16 %v1258, %v1254
      %v1383 = vpack.c.b16 %v1263, %v1259
      %v1384 = vpack.c.b16 %v1264, %v1260
      %v1385 = vpack.c.b16 %v1265, %v1261
      %v1386 = vpack.c.b16 %v1266, %v1262
      %v1387 = vpack.c.b16 %v1271, %v1267
      %v1388 = vpack.c.b16 %v1272, %v1268
      %v1389 = vpack.c.b16 %v1273, %v1269
      %v1390 = vpack.c.b16 %v1274, %v1270
      %v1391 = vpack.c.b16 %v1279, %v1275
      %v1392 = vpack.c.b16 %v1280, %v1276
      %v1393 = vpack.c.b16 %v1281, %v1277
      %v1394 = vpack.c.b16 %v1282, %v1278
      %v1395 = vpack.c.b16 %v1287, %v1283
      %v1396 = vpack.c.b16 %v1288, %v1284
      %v1397 = vpack.c.b16 %v1289, %v1285
      %v1398 = vpack.c.b16 %v1290, %v1286
      %v1399 = vpack.c.b16 %v1295, %v1291
      %v1400 = vpack.c.b16 %v1296, %v1292
      %v1401 = vpack.c.b16 %v1297, %v1293
      %v1402 = vpack.c.b16 %v1298, %v1294
      %v1403 = vpack.c.b16 %v1303, %v1299
      %v1404 = vpack.c.b16 %v1304, %v1300
      %v1405 = vpack.c.b16 %v1305, %v1301
      %v1406 = vpack.c.b16 %v1306, %v1302
      %v1407 = vpack.c.b16 %v1311, %v1307
      %v1408 = vpack.c.b16 %v1312, %v1308
      %v1409 = vpack.c.b16 %v1313, %v1309
      %v1410 = vpack.c.b16 %v1314, %v1310
      %v1411 = vpack.c.b16 %v1319, %v1315
      %v1412 = vpack.c.b16 %v1320, %v1316
      %v1413 = vpack.c.b16 %v1321, %v1317
      %v1414 = vpack.c.b16 %v1322, %v1318
      %v1415 = vpack.c.b16 %v1327, %v1323
      %v1416 = vpack.c.b16 %v1328, %v1324
      %v1417 = vpack.c.b16 %v1329, %v1325
      %v1418 = vpack.c.b16 %v1330, %v1326
      %v1419 = vpack.c.b16 %v1335, %v1331
      %v1420 = vpack.c.b16 %v1336, %v1332
      %v1421 = vpack.c.b16 %v1337, %v1333
      %v1422 = vpack.c.b16 %v1338, %v1334
      %v1423 = vpack.c.b16 %v1343, %v1339
      %v1424 = vpack.c.b16 %v1344, %v1340
      %v1425 = vpack.c.b16 %v1345, %v1341
      %v1426 = vpack.c.b16 %v1346, %v1342
      %v1427 = vpack.c.b16 %v1351, %v1347
      %v1428 = vpack.c.b16 %v1352, %v1348
      %v1429 = vpack.c.b16 %v1353, %v1349
      %v1430 = vpack.c.b16 %v1354, %v1350
      %v1431 = vpack.c.b16 %v1359, %v1355
      %v1432 = vpack.c.b16 %v1360, %v1356
      %v1433 = vpack.c.b16 %v1361, %v1357
      %v1434 = vpack.c.b16 %v1362, %v1358
      %v1435 = vpack.c.b16 %v1367, %v1363
      %v1436 = vpack.c.b16 %v1368, %v1364
      %v1437 = vpack.c.b16 %v1369, %v1365
      %v1438 = vpack.c.b16 %v1370, %v1366
      %v1439 = vpack.c.b16 %v1375, %v1371
      %v1440 = vpack.c.b16 %v1376, %v1372
      %v1441 = vpack.c.b16 %v1377, %v1373
      %v1442 = vpack.c.b16 %v1378, %v1374
      %1507 = vmatprep.subr.bf16.mxu0 %v1380
      %1508 = vmatpush1.bf16.msra.mxu0 %v1379
      %1509 = vmatprep.subr.bf16.mxu0 %v1384
      %1510 = vmatpush1.bf16.msra.mxu0 %v1383
      %1511 = vmatprep.subr.bf16.mxu0 %v1388
      %1512 = vmatpush1.bf16.msra.mxu0 %v1387
      %1513 = vmatprep.subr.bf16.mxu0 %v1392
      %1514 = vmatpush1.bf16.msra.mxu0 %v1391
      %1515 = vmatprep.subr.bf16.mxu0 %v1396
      %1516 = vmatpush1.bf16.msra.mxu0 %v1395
      %1517 = vmatprep.subr.bf16.mxu0 %v1400
      %1518 = vmatpush1.bf16.msra.mxu0 %v1399
      %1519 = vmatprep.subr.bf16.mxu0 %v1404
      %1520 = vmatpush1.bf16.msra.mxu0 %v1403
      %1521 = vmatprep.subr.bf16.mxu0 %v1408
      %1522 = vmatpush1.bf16.msra.mxu0 %v1407
      %1523 = vmatprep.subr.bf16.mxu0 %v1412
      %1524 = vmatpush1.bf16.msra.mxu0 %v1411
      %1525 = vmatprep.subr.bf16.mxu0 %v1416
      %1526 = vmatpush1.bf16.msra.mxu0 %v1415
      %1527 = vmatprep.subr.bf16.mxu0 %v1420
      %1528 = vmatpush1.bf16.msra.mxu0 %v1419
      %1529 = vmatprep.subr.bf16.mxu0 %v1424
      %1530 = vmatpush1.bf16.msra.mxu0 %v1423
      %1531 = vmatprep.subr.bf16.mxu0 %v1428
      %1532 = vmatpush1.bf16.msra.mxu0 %v1427
      %1533 = vmatprep.subr.bf16.mxu0 %v1432
      %1534 = vmatpush1.bf16.msra.mxu0 %v1431
      %1535 = vmatprep.subr.bf16.mxu0 %v1436
      %1536 = vmatpush1.bf16.msra.mxu0 %v1435
      %1537 = vmatprep.subr.bf16.mxu0 %v1440
      %1538 = vmatpush1.bf16.msra.mxu0 %v1439
      %1539 = vmatprep.mubr.bf16.mxu0 %v605
      %1540 = vmatmul.mubr.bf16.gmra.mrb[0].mxu0 %v1164
      %v1541 = vpop.f32.mrb[0].mxu0
      %v1542 = vadd.f32 %v1170, %v1541
      %v1543 = vpop.f32.mrb[0].mxu0
      %v1544 = vadd.f32 %v1174, %v1543
      %v1545 = vpop.f32.mrb[0].mxu0
      %v1546 = vadd.f32 %v1170, %v1545
      %v1547 = vpop.f32.mrb[0].mxu0
      %v1548 = vadd.f32 %v1174, %v1547
      %1549 = vmatprep.mubr.bf16.mxu0 %v606
      %1550 = vmatmul.mubr.bf16.gmra.mrb[0].mxu0 %v1165
      %v1551 = vpop.f32.mrb[0].mxu0
      %v1552 = vadd.f32 %v1170, %v1551
      %v1553 = vpop.f32.mrb[0].mxu0
      %v1554 = vadd.f32 %v1174, %v1553
      %v1555 = vpop.f32.mrb[0].mxu0
      %v1556 = vadd.f32 %v1170, %v1555
      %v1557 = vpop.f32.mrb[0].mxu0
      %v1558 = vadd.f32 %v1174, %v1557
      %1559 = vdwg.mxu0
      %1560 = vmatprep.subr.bf16.mxu0 %v1382
      %1561 = vmatpush1.bf16.msra.mxu0 %v1381
      %1562 = vmatprep.subr.bf16.mxu0 %v1386
      %1563 = vmatpush1.bf16.msra.mxu0 %v1385
      %1564 = vmatprep.subr.bf16.mxu0 %v1390
      %1565 = vmatpush1.bf16.msra.mxu0 %v1389
      %1566 = vmatprep.subr.bf16.mxu0 %v1394
      %1567 = vmatpush1.bf16.msra.mxu0 %v1393
      %1568 = vmatprep.subr.bf16.mxu0 %v1398
      %1569 = vmatpush1.bf16.msra.mxu0 %v1397
      %1570 = vmatprep.subr.bf16.mxu0 %v1402
      %1571 = vmatpush1.bf16.msra.mxu0 %v1401
      %1572 = vmatprep.subr.bf16.mxu0 %v1406
      %1573 = vmatpush1.bf16.msra.mxu0 %v1405
      %1574 = vmatprep.subr.bf16.mxu0 %v1410
      %1575 = vmatpush1.bf16.msra.mxu0 %v1409
      %1576 = vmatprep.subr.bf16.mxu0 %v1414
      %1577 = vmatpush1.bf16.msra.mxu0 %v1413
      %1578 = vmatprep.subr.bf16.mxu0 %v1418
      %1579 = vmatpush1.bf16.msra.mxu0 %v1417
      %1580 = vmatprep.subr.bf16.mxu0 %v1422
      %1581 = vmatpush1.bf16.msra.mxu0 %v1421
      %1582 = vmatprep.subr.bf16.mxu0 %v1426
      %1583 = vmatpush1.bf16.msra.mxu0 %v1425
      %1584 = vmatprep.subr.bf16.mxu0 %v1430
      %1585 = vmatpush1.bf16.msra.mxu0 %v1429
      %1586 = vmatprep.subr.bf16.mxu0 %v1434
      %1587 = vmatpush1.bf16.msra.mxu0 %v1433
      %1588 = vmatprep.subr.bf16.mxu0 %v1438
      %1589 = vmatpush1.bf16.msra.mxu0 %v1437
      %1590 = vmatprep.subr.bf16.mxu0 %v1442
      %1591 = vmatpush1.bf16.msra.mxu0 %v1441
      %1592 = vmatprep.mubr.bf16.mxu0 %v605
      %1593 = vmatmul.mubr.bf16.gmra.mrb[0].mxu0 %v1164
      %v1594 = vpop.f32.mrb[0].mxu0
      %v1595 = vadd.f32 %v1178, %v1594
      %v1596 = vpop.f32.mrb[0].mxu0
      %v1597 = vadd.f32 %v1182, %v1596
      %v1598 = vpop.f32.mrb[0].mxu0
      %v1599 = vadd.f32 %v1178, %v1598
      %v1600 = vpop.f32.mrb[0].mxu0
      %v1601 = vadd.f32 %v1182, %v1600
      %1602 = vmatprep.mubr.bf16.mxu0 %v606
      %1603 = vmatmul.mubr.bf16.gmra.mrb[0].mxu0 %v1165
      %v1604 = vpop.f32.mrb[0].mxu0
      %v1605 = vadd.f32 %v1178, %v1604
      %v1606 = vpop.f32.mrb[0].mxu0
      %v1607 = vadd.f32 %v1182, %v1606
      %v1608 = vpop.f32.mrb[0].mxu0
      %v1609 = vadd.f32 %v1178, %v1608
      %v1610 = vpop.f32.mrb[0].mxu0
      %v1611 = vadd.f32 %v1182, %v1610
      %1612 = vdwg.mxu0
      %v1613 = vxor.u32 %v1542, 2147483648
      %v1614 = vxor.u32 %v1546, 2147483648
      %v1615 = vxor.u32 %v1552, 2147483648
      %v1616 = vxor.u32 %v1556, 2147483648
      %v1617 = vmul.f32 %v1613, 1.442695
      %v1618 = vpow.pop %v1617
      %v1619 = vmul.f32 %v1614, 1.442695
      %v1620 = vpow.pop %v1619
      %v1621 = vmul.f32 %v1615, 1.442695
      %v1622 = vpow.pop %v1621
      %v1623 = vmul.f32 %v1616, 1.442695
      %v1624 = vpow.pop %v1623
      %v1625 = vadd.f32 %v1618, 1.0
      %v1626 = vadd.f32 %v1620, 1.0
      %v1627 = vadd.f32 %v1622, 1.0
      %v1628 = vadd.f32 %v1624, 1.0
      %v1629 = vrcp.pop %v1625
      %v1630 = vmul.f32 1.0, %v1629
      %v1631 = vrcp.pop %v1626
      %v1632 = vmul.f32 1.0, %v1631
      %v1633 = vrcp.pop %v1627
      %v1634 = vmul.f32 1.0, %v1633
      %v1635 = vrcp.pop %v1628
      %v1636 = vmul.f32 1.0, %v1635
      %v1637 = vxor.u32 %v1544, 2147483648
      %v1638 = vxor.u32 %v1548, 2147483648
      %v1639 = vxor.u32 %v1554, 2147483648
      %v1640 = vxor.u32 %v1558, 2147483648
      %v1641 = vmul.f32 %v1637, 1.442695
      %v1642 = vpow.pop %v1641
      %v1643 = vmul.f32 %v1638, 1.442695
      %v1644 = vpow.pop %v1643
      %v1645 = vmul.f32 %v1639, 1.442695
      %v1646 = vpow.pop %v1645
      %v1647 = vmul.f32 %v1640, 1.442695
      %v1648 = vpow.pop %v1647
      %v1649 = vadd.f32 %v1642, 1.0
      %v1650 = vadd.f32 %v1644, 1.0
      %v1651 = vadd.f32 %v1646, 1.0
      %v1652 = vadd.f32 %v1648, 1.0
      %v1653 = vrcp.pop %v1649
      %v1654 = vmul.f32 1.0, %v1653
      %v1655 = vrcp.pop %v1650
      %v1656 = vmul.f32 1.0, %v1655
      %v1657 = vrcp.pop %v1651
      %v1658 = vmul.f32 1.0, %v1657
      %v1659 = vrcp.pop %v1652
      %v1660 = vmul.f32 1.0, %v1659
      %v1661 = vtanh.pop %v1595
      %v1662 = vtanh.pop %v1599
      %v1663 = vtanh.pop %v1605
      %v1664 = vtanh.pop %v1609
      %v1665 = vxor.u32 %v1597, 2147483648
      %v1666 = vxor.u32 %v1601, 2147483648
      %v1667 = vxor.u32 %v1607, 2147483648
      %v1668 = vxor.u32 %v1611, 2147483648
      %v1669 = vmul.f32 %v1665, 1.442695
      %v1670 = vpow.pop %v1669
      %v1671 = vmul.f32 %v1666, 1.442695
      %v1672 = vpow.pop %v1671
      %v1673 = vmul.f32 %v1667, 1.442695
      %v1674 = vpow.pop %v1673
      %v1675 = vmul.f32 %v1668, 1.442695
      %v1676 = vpow.pop %v1675
      %v1677 = vadd.f32 %v1670, 1.0
      %v1678 = vadd.f32 %v1672, 1.0
      %v1679 = vadd.f32 %v1674, 1.0
      %v1680 = vadd.f32 %v1676, 1.0
      %v1681 = vrcp.pop %v1677
      %v1682 = vmul.f32 1.0, %v1681
      %v1683 = vrcp.pop %v1678
      %v1684 = vmul.f32 1.0, %v1683
      %v1685 = vrcp.pop %v1679
      %v1686 = vmul.f32 1.0, %v1685
      %v1687 = vrcp.pop %v1680
      %v1688 = vmul.f32 1.0, %v1687
      %v1689 = vmul.f32 %v1654, %v607
      %v1690 = vmul.f32 %v1656, %v608
      %v1691 = vmul.f32 %v1658, %v609
      %v1692 = vmul.f32 %v1660, %v610
      %v1693 = vmul.f32 %v1630, %v1661
      %v1694 = vmul.f32 %v1632, %v1662
      %v1695 = vmul.f32 %v1634, %v1663
      %v1696 = vmul.f32 %v1636, %v1664
      %v1697 = vadd.f32 %v1689, %v1693
      %v1698 = vadd.f32 %v1690, %v1694
      %v1699 = vadd.f32 %v1691, %v1695
      %v1700 = vadd.f32 %v1692, %v1696
      %v1701 = vtanh.pop %v1697
      %v1702 = vtanh.pop %v1698
      %v1703 = vtanh.pop %v1699
      %v1704 = vtanh.pop %v1700
      %v1705 = vmul.f32 %v1682, %v1701
      %v1706 = vmul.f32 %v1684, %v1702
      %v1707 = vmul.f32 %v1686, %v1703
      %v1708 = vmul.f32 %v1688, %v1704
      %v1709 = vpack.c.bf16 %v1706, %v1705
      %v1710 = vpack.c.bf16 %v1708, %v1707
      %v1712 = vlaneseq
      %v1713 = vshrl.u32 %v1712, 7
      %v1714 = vsub.s32 0, %v1713
      %v1715 = vrot.slane %v412, %v1714
      %v1733 = vunpack.c.l.b16 %v364
      %v1734 = vunpack.c.l.b16 %v365
      %v1735 = vunpack.c.l.b16 %v366
      %v1736 = vunpack.c.l.b16 %v367
      %v1737 = vunpack.c.l.b16 %v368
      %v1738 = vunpack.c.l.b16 %v369
      %v1739 = vunpack.c.l.b16 %v370
      %v1740 = vunpack.c.l.b16 %v371
      %v1741 = vunpack.c.l.b16 %v372
      %v1742 = vunpack.c.l.b16 %v373
      %v1743 = vunpack.c.l.b16 %v374
      %v1744 = vunpack.c.l.b16 %v375
      %v1745 = vunpack.c.l.b16 %v376
      %v1746 = vunpack.c.l.b16 %v377
      %v1747 = vunpack.c.l.b16 %v378
      %v1748 = vunpack.c.l.b16 %v379
      %v1749 = vpack.c.b16 %v1734, %v1733
      %v1750 = vpack.c.b16 %v1736, %v1735
      %v1751 = vpack.c.b16 %v1738, %v1737
      %v1752 = vpack.c.b16 %v1740, %v1739
      %v1753 = vpack.c.b16 %v1742, %v1741
      %v1754 = vpack.c.b16 %v1744, %v1743
      %v1755 = vpack.c.b16 %v1746, %v1745
      %v1756 = vpack.c.b16 %v1748, %v1747
      %1765 = vmatprep.subr.bf16.mxu0 0
      %1766 = vmatpush1.bf16.msra.mxu0 %v1749
      %1767 = vmatprep.subr.bf16.mxu0 0
      %1768 = vmatpush1.bf16.msra.mxu0 %v1750
      %1769 = vmatprep.subr.bf16.mxu0 0
      %1770 = vmatpush1.bf16.msra.mxu0 %v1751
      %1771 = vmatprep.subr.bf16.mxu0 0
      %1772 = vmatpush1.bf16.msra.mxu0 %v1752
      %1773 = vmatprep.subr.bf16.mxu0 0
      %1774 = vmatpush1.bf16.msra.mxu0 %v1753
      %1775 = vmatprep.subr.bf16.mxu0 0
      %1776 = vmatpush1.bf16.msra.mxu0 %v1754
      %1777 = vmatprep.subr.bf16.mxu0 0
      %1778 = vmatpush1.bf16.msra.mxu0 %v1755
      %1779 = vmatprep.subr.bf16.mxu0 0
      %1780 = vmatpush1.bf16.msra.mxu0 %v1756
      %1781 = vmatprep.subr.bf16.mxu0 0
      %1782 = vmatpush1.bf16.msra.mxu0 0
      %1783 = vmatprep.subr.bf16.mxu0 0
      %1784 = vmatpush1.bf16.msra.mxu0 0
      %1785 = vmatprep.subr.bf16.mxu0 0
      %1786 = vmatpush1.bf16.msra.mxu0 0
      %1787 = vmatprep.subr.bf16.mxu0 0
      %1788 = vmatpush1.bf16.msra.mxu0 0
      %1789 = vmatprep.subr.bf16.mxu0 0
      %1790 = vmatpush1.bf16.msra.mxu0 0
      %1791 = vmatprep.subr.bf16.mxu0 0
      %1792 = vmatpush1.bf16.msra.mxu0 0
      %1793 = vmatprep.subr.bf16.mxu0 0
      %1794 = vmatpush1.bf16.msra.mxu0 0
      %1795 = vmatprep.subr.bf16.mxu0 0
      %1796 = vmatpush1.bf16.msra.mxu0 0
      %1797 = vmatprep.mubr.bf16.mxu0 0
      %1798 = vmatmul.mubr.bf16.gmra.mrb[0].mxu0 %v1709
      %v1799 = vpop.f32.mrb[0].mxu0
      %v1800 = vadd.f32 %v1715, %v1799
      %v1801 = vpop.f32.mrb[0].mxu0
      %v1802 = vpop.f32.mrb[0].mxu0
      %v1803 = vadd.f32 %v1715, %v1802
      %v1804 = vpop.f32.mrb[0].mxu0
      %1805 = vmatprep.mubr.bf16.mxu0 0
      %1806 = vmatmul.mubr.bf16.gmra.mrb[0].mxu0 %v1710
      %v1807 = vpop.f32.mrb[0].mxu0
      %v1808 = vadd.f32 %v1715, %v1807
      %v1809 = vpop.f32.mrb[0].mxu0
      %v1810 = vpop.f32.mrb[0].mxu0
      %v1811 = vadd.f32 %v1715, %v1810
      %v1812 = vpop.f32.mrb[0].mxu0
      %1813 = vdwg.mxu0
      %v1814 = vmax.f32 %v1800, 0.0
      %v1815 = vmax.f32 %v1803, 0.0
      %v1816 = vmax.f32 %v1808, 0.0
      %v1817 = vmax.f32 %v1811, 0.0
      %v1818 = vpack.c.bf16 %v1815, %v1814
      %v1819 = vpack.c.bf16 %v1817, %v1816
      %v1821 = vlaneseq
      %v1822 = vshrl.u32 %v1821, 7
      %v1823 = vsub.s32 0, %v1822
      %v1824 = vrot.slane %v413, %v1823
      %v1842 = vunpack.c.l.b16 %v380
      %v1843 = vunpack.c.l.b16 %v381
      %v1844 = vunpack.c.l.b16 %v382
      %v1845 = vunpack.c.l.b16 %v383
      %v1846 = vunpack.c.l.b16 %v384
      %v1847 = vunpack.c.l.b16 %v385
      %v1848 = vunpack.c.l.b16 %v386
      %v1849 = vunpack.c.l.b16 %v387
      %v1850 = vunpack.c.l.b16 %v388
      %v1851 = vunpack.c.l.b16 %v389
      %v1852 = vunpack.c.l.b16 %v390
      %v1853 = vunpack.c.l.b16 %v391
      %v1854 = vunpack.c.l.b16 %v392
      %v1855 = vunpack.c.l.b16 %v393
      %v1856 = vunpack.c.l.b16 %v394
      %v1857 = vunpack.c.l.b16 %v395
      %v1858 = vpack.c.b16 %v1843, %v1842
      %v1859 = vpack.c.b16 %v1845, %v1844
      %v1860 = vpack.c.b16 %v1847, %v1846
      %v1861 = vpack.c.b16 %v1849, %v1848
      %v1862 = vpack.c.b16 %v1851, %v1850
      %v1863 = vpack.c.b16 %v1853, %v1852
      %v1864 = vpack.c.b16 %v1855, %v1854
      %v1865 = vpack.c.b16 %v1857, %v1856
      %1874 = vmatprep.subr.bf16.mxu0 0
      %1875 = vmatpush1.bf16.msra.mxu0 %v1858
      %1876 = vmatprep.subr.bf16.mxu0 0
      %1877 = vmatpush1.bf16.msra.mxu0 %v1859
      %1878 = vmatprep.subr.bf16.mxu0 0
      %1879 = vmatpush1.bf16.msra.mxu0 %v1860
      %1880 = vmatprep.subr.bf16.mxu0 0
      %1881 = vmatpush1.bf16.msra.mxu0 %v1861
      %1882 = vmatprep.subr.bf16.mxu0 0
      %1883 = vmatpush1.bf16.msra.mxu0 %v1862
      %1884 = vmatprep.subr.bf16.mxu0 0
      %1885 = vmatpush1.bf16.msra.mxu0 %v1863
      %1886 = vmatprep.subr.bf16.mxu0 0
      %1887 = vmatpush1.bf16.msra.mxu0 %v1864
      %1888 = vmatprep.subr.bf16.mxu0 0
      %1889 = vmatpush1.bf16.msra.mxu0 %v1865
      %1890 = vmatprep.subr.bf16.mxu0 0
      %1891 = vmatpush1.bf16.msra.mxu0 0
      %1892 = vmatprep.subr.bf16.mxu0 0
      %1893 = vmatpush1.bf16.msra.mxu0 0
      %1894 = vmatprep.subr.bf16.mxu0 0
      %1895 = vmatpush1.bf16.msra.mxu0 0
      %1896 = vmatprep.subr.bf16.mxu0 0
      %1897 = vmatpush1.bf16.msra.mxu0 0
      %1898 = vmatprep.subr.bf16.mxu0 0
      %1899 = vmatpush1.bf16.msra.mxu0 0
      %1900 = vmatprep.subr.bf16.mxu0 0
      %1901 = vmatpush1.bf16.msra.mxu0 0
      %1902 = vmatprep.subr.bf16.mxu0 0
      %1903 = vmatpush1.bf16.msra.mxu0 0
      %1904 = vmatprep.subr.bf16.mxu0 0
      %1905 = vmatpush1.bf16.msra.mxu0 0
      %1906 = vmatprep.mubr.bf16.mxu0 0
      %1907 = vmatmul.mubr.bf16.gmra.mrb[0].mxu0 %v1818
      %v1908 = vpop.f32.mrb[0].mxu0
      %v1909 = vadd.f32 %v1824, %v1908
      %v1910 = vpop.f32.mrb[0].mxu0
      %v1911 = vpop.f32.mrb[0].mxu0
      %v1912 = vadd.f32 %v1824, %v1911
      %v1913 = vpop.f32.mrb[0].mxu0
      %1914 = vmatprep.mubr.bf16.mxu0 0
      %1915 = vmatmul.mubr.bf16.gmra.mrb[0].mxu0 %v1819
      %v1916 = vpop.f32.mrb[0].mxu0
      %v1917 = vadd.f32 %v1824, %v1916
      %v1918 = vpop.f32.mrb[0].mxu0
      %v1919 = vpop.f32.mrb[0].mxu0
      %v1920 = vadd.f32 %v1824, %v1919
      %v1921 = vpop.f32.mrb[0].mxu0
      %1922 = vdwg.mxu0
      %v1923 = vmax.f32 %v1909, 0.0
      %v1924 = vmax.f32 %v1912, 0.0
      %v1925 = vmax.f32 %v1917, 0.0
      %v1926 = vmax.f32 %v1920, 0.0
      %v1927 = vpack.c.bf16 %v1924, %v1923
      %v1928 = vpack.c.bf16 %v1926, %v1925
      %v1930 = vlaneseq
      %v1931 = vshrl.u32 %v1930, 7
      %v1932 = vsub.s32 0, %v1931
      %v1933 = vrot.slane %v414, %v1932
      %v1951 = vunpack.c.l.b16 %v396
      %v1952 = vunpack.c.l.b16 %v397
      %v1953 = vunpack.c.l.b16 %v398
      %v1954 = vunpack.c.l.b16 %v399
      %v1955 = vunpack.c.l.b16 %v400
      %v1956 = vunpack.c.l.b16 %v401
      %v1957 = vunpack.c.l.b16 %v402
      %v1958 = vunpack.c.l.b16 %v403
      %v1959 = vunpack.c.l.b16 %v404
      %v1960 = vunpack.c.l.b16 %v405
      %v1961 = vunpack.c.l.b16 %v406
      %v1962 = vunpack.c.l.b16 %v407
      %v1963 = vunpack.c.l.b16 %v408
      %v1964 = vunpack.c.l.b16 %v409
      %v1965 = vunpack.c.l.b16 %v410
      %v1966 = vunpack.c.l.b16 %v411
      %v1967 = vpack.c.b16 %v1952, %v1951
      %v1968 = vpack.c.b16 %v1954, %v1953
      %v1969 = vpack.c.b16 %v1956, %v1955
      %v1970 = vpack.c.b16 %v1958, %v1957
      %v1971 = vpack.c.b16 %v1960, %v1959
      %v1972 = vpack.c.b16 %v1962, %v1961
      %v1973 = vpack.c.b16 %v1964, %v1963
      %v1974 = vpack.c.b16 %v1966, %v1965
      %1983 = vmatprep.subr.bf16.mxu0 0
      %1984 = vmatpush1.bf16.msra.mxu0 %v1967
      %1985 = vmatprep.subr.bf16.mxu0 0
      %1986 = vmatpush1.bf16.msra.mxu0 %v1968
      %1987 = vmatprep.subr.bf16.mxu0 0
      %1988 = vmatpush1.bf16.msra.mxu0 %v1969
      %1989 = vmatprep.subr.bf16.mxu0 0
      %1990 = vmatpush1.bf16.msra.mxu0 %v1970
      %1991 = vmatprep.subr.bf16.mxu0 0
      %1992 = vmatpush1.bf16.msra.mxu0 %v1971
      %1993 = vmatprep.subr.bf16.mxu0 0
      %1994 = vmatpush1.bf16.msra.mxu0 %v1972
      %1995 = vmatprep.subr.bf16.mxu0 0
      %1996 = vmatpush1.bf16.msra.mxu0 %v1973
      %1997 = vmatprep.subr.bf16.mxu0 0
      %1998 = vmatpush1.bf16.msra.mxu0 %v1974
      %1999 = vmatprep.subr.bf16.mxu0 0
      %2000 = vmatpush1.bf16.msra.mxu0 0
      %2001 = vmatprep.subr.bf16.mxu0 0
      %2002 = vmatpush1.bf16.msra.mxu0 0
      %2003 = vmatprep.subr.bf16.mxu0 0
      %2004 = vmatpush1.bf16.msra.mxu0 0
      %2005 = vmatprep.subr.bf16.mxu0 0
      %2006 = vmatpush1.bf16.msra.mxu0 0
      %2007 = vmatprep.subr.bf16.mxu0 0
      %2008 = vmatpush1.bf16.msra.mxu0 0
      %2009 = vmatprep.subr.bf16.mxu0 0
      %2010 = vmatpush1.bf16.msra.mxu0 0
      %2011 = vmatprep.subr.bf16.mxu0 0
      %2012 = vmatpush1.bf16.msra.mxu0 0
      %2013 = vmatprep.subr.bf16.mxu0 0
      %2014 = vmatpush1.bf16.msra.mxu0 0
      %2015 = vmatprep.mubr.bf16.mxu0 0
      %2016 = vmatmul.mubr.bf16.gmra.mrb[0].mxu0 %v1927
      %v2017 = vpop.f32.mrb[0].mxu0
      %v2018 = vadd.f32 %v1933, %v2017
      %v2019 = vpop.f32.mrb[0].mxu0
      %v2020 = vpop.f32.mrb[0].mxu0
      %v2021 = vadd.f32 %v1933, %v2020
      %v2022 = vpop.f32.mrb[0].mxu0
      %2023 = vmatprep.mubr.bf16.mxu0 0
      %2024 = vmatmul.mubr.bf16.gmra.mrb[0].mxu0 %v1928
      %v2025 = vpop.f32.mrb[0].mxu0
      %v2026 = vadd.f32 %v1933, %v2025
      %v2027 = vpop.f32.mrb[0].mxu0
      %v2028 = vpop.f32.mrb[0].mxu0
      %v2029 = vadd.f32 %v1933, %v2028
      %v2030 = vpop.f32.mrb[0].mxu0
      %2031 = vdwg.mxu0
      %v2032 = vpack.c.bf16 %v2021, %v2018
      %v2033 = vpack.c.bf16 %v2029, %v2026
      %v2036 = vunpack.c.l.b16 %v301
      %v2037 = vunpack.c.l.b16 %v302
      %v2038 = vpack.c.b16 %v2037, %v2036
      %vm2039 = vcmask 261120
      %v2041 = vsel %vm2039, %v2038, 0
      %2043 = vmatprep.subr.bf16.mxu0 0
      %2044 = vmatpush1.bf16.msra.mxu0 %v2032
      %2045 = vmatprep.subr.bf16.mxu0 0
      %2046 = vmatpush1.bf16.msra.mxu0 %v2033
      %2047 = vmatprep.subr.bf16.mxu0 0
      %2048 = vmatpush1.bf16.msra.mxu0 0
      %2049 = vmatprep.subr.bf16.mxu0 0
      %2050 = vmatpush1.bf16.msra.mxu0 0
      %2051 = vmatprep.subr.bf16.mxu0 0
      %2052 = vmatpush1.bf16.msra.mxu0 0
      %2053 = vmatprep.subr.bf16.mxu0 0
      %2054 = vmatpush1.bf16.msra.mxu0 0
      %2055 = vmatprep.subr.bf16.mxu0 0
      %2056 = vmatpush1.bf16.msra.mxu0 0
      %2057 = vmatprep.subr.bf16.mxu0 0
      %2058 = vmatpush1.bf16.msra.mxu0 0
      %2059 = vmatprep.subr.bf16.mxu0 0
      %2060 = vmatpush1.bf16.msra.mxu0 0
      %2061 = vmatprep.subr.bf16.mxu0 0
      %2062 = vmatpush1.bf16.msra.mxu0 0
      %2063 = vmatprep.subr.bf16.mxu0 0
      %2064 = vmatpush1.bf16.msra.mxu0 0
      %2065 = vmatprep.subr.bf16.mxu0 0
      %2066 = vmatpush1.bf16.msra.mxu0 0
      %2067 = vmatprep.subr.bf16.mxu0 0
      %2068 = vmatpush1.bf16.msra.mxu0 0
      %2069 = vmatprep.subr.bf16.mxu0 0
      %2070 = vmatpush1.bf16.msra.mxu0 0
      %2071 = vmatprep.subr.bf16.mxu0 0
      %2072 = vmatpush1.bf16.msra.mxu0 0
      %2073 = vmatprep.subr.bf16.mxu0 0
      %2074 = vmatpush1.bf16.msra.mxu0 0
      %2075 = vmatprep.mubr.bf16.mxu0 0
      %2076 = vmatmul.mubr.bf16.gmra.mrb[0].mxu0 %v2041
      %v2077 = vpop.f32.mrb[0].mxu0
      %v2078 = vadd.f32 0.0, %v2077
      %v2079 = vpop.f32.mrb[0].mxu0
      %v2080 = vpop.f32.mrb[0].mxu0
      %v2081 = vadd.f32 0.0, %v2080
      %v2082 = vpop.f32.mrb[0].mxu0
      %2083 = vdwg.mxu0
      %v2086 = vunpack.c.l.b16 %v303
      %v2087 = vunpack.c.l.b16 %v304
      %v2088 = vpack.c.b16 %v2087, %v2086
      %v2090 = vsel %vm2039, %v2088, 0
      %2092 = vmatprep.subr.bf16.mxu0 0
      %2093 = vmatpush1.bf16.msra.mxu0 %v2032
      %2094 = vmatprep.subr.bf16.mxu0 0
      %2095 = vmatpush1.bf16.msra.mxu0 %v2033
      %2096 = vmatprep.subr.bf16.mxu0 0
      %2097 = vmatpush1.bf16.msra.mxu0 0
      %2098 = vmatprep.subr.bf16.mxu0 0
      %2099 = vmatpush1.bf16.msra.mxu0 0
      %2100 = vmatprep.subr.bf16.mxu0 0
      %2101 = vmatpush1.bf16.msra.mxu0 0
      %2102 = vmatprep.subr.bf16.mxu0 0
      %2103 = vmatpush1.bf16.msra.mxu0 0
      %2104 = vmatprep.subr.bf16.mxu0 0
      %2105 = vmatpush1.bf16.msra.mxu0 0
      %2106 = vmatprep.subr.bf16.mxu0 0
      %2107 = vmatpush1.bf16.msra.mxu0 0
      %2108 = vmatprep.subr.bf16.mxu0 0
      %2109 = vmatpush1.bf16.msra.mxu0 0
      %2110 = vmatprep.subr.bf16.mxu0 0
      %2111 = vmatpush1.bf16.msra.mxu0 0
      %2112 = vmatprep.subr.bf16.mxu0 0
      %2113 = vmatpush1.bf16.msra.mxu0 0
      %2114 = vmatprep.subr.bf16.mxu0 0
      %2115 = vmatpush1.bf16.msra.mxu0 0
      %2116 = vmatprep.subr.bf16.mxu0 0
      %2117 = vmatpush1.bf16.msra.mxu0 0
      %2118 = vmatprep.subr.bf16.mxu0 0
      %2119 = vmatpush1.bf16.msra.mxu0 0
      %2120 = vmatprep.subr.bf16.mxu0 0
      %2121 = vmatpush1.bf16.msra.mxu0 0
      %2122 = vmatprep.subr.bf16.mxu0 0
      %2123 = vmatpush1.bf16.msra.mxu0 0
      %2124 = vmatprep.mubr.bf16.mxu0 0
      %2125 = vmatmul.mubr.bf16.gmra.mrb[0].mxu0 %v2090
      %v2126 = vpop.f32.mrb[0].mxu0
      %v2127 = vadd.f32 0.0, %v2126
      %v2128 = vpop.f32.mrb[0].mxu0
      %v2129 = vpop.f32.mrb[0].mxu0
      %v2130 = vadd.f32 0.0, %v2129
      %v2131 = vpop.f32.mrb[0].mxu0
      %2132 = vdwg.mxu0
      %v2133 = vpack.c.bf16 %v2081, %v2078
      %v2134 = vpack.c.bf16 %v2130, %v2127
      %v2136 = vlaneseq
      %v2137 = vshrl.u32 %v2136, 7
      %v2138 = vsub.s32 0, %v2137
      %v2139 = vrot.slane %v576, %v2138
      %v2140 = vlaneseq
      %v2141 = vshrl.u32 %v2140, 7
      %v2142 = vsub.s32 1, %v2141
      %v2143 = vrot.slane %v576, %v2142
      %v2144 = vlaneseq
      %v2145 = vshrl.u32 %v2144, 7
      %v2146 = vsub.s32 2, %v2145
      %v2147 = vrot.slane %v576, %v2146
      %v2148 = vlaneseq
      %v2149 = vshrl.u32 %v2148, 7
      %v2150 = vsub.s32 3, %v2149
      %v2151 = vrot.slane %v576, %v2150
      %v2252 = vunpack.c.l.b16 %v480
      %v2253 = vunpack.c.h.b16 %v480
      %v2254 = vunpack.c.l.b16 %v481
      %v2255 = vunpack.c.h.b16 %v481
      %v2256 = vunpack.c.l.b16 %v482
      %v2257 = vunpack.c.h.b16 %v482
      %v2258 = vunpack.c.l.b16 %v483
      %v2259 = vunpack.c.h.b16 %v483
      %v2260 = vunpack.c.l.b16 %v484
      %v2261 = vunpack.c.h.b16 %v484
      %v2262 = vunpack.c.l.b16 %v485
      %v2263 = vunpack.c.h.b16 %v485
      %v2264 = vunpack.c.l.b16 %v486
      %v2265 = vunpack.c.h.b16 %v486
      %v2266 = vunpack.c.l.b16 %v487
      %v2267 = vunpack.c.h.b16 %v487
      %v2268 = vunpack.c.l.b16 %v488
      %v2269 = vunpack.c.h.b16 %v488
      %v2270 = vunpack.c.l.b16 %v489
      %v2271 = vunpack.c.h.b16 %v489
      %v2272 = vunpack.c.l.b16 %v490
      %v2273 = vunpack.c.h.b16 %v490
      %v2274 = vunpack.c.l.b16 %v491
      %v2275 = vunpack.c.h.b16 %v491
      %v2276 = vunpack.c.l.b16 %v492
      %v2277 = vunpack.c.h.b16 %v492
      %v2278 = vunpack.c.l.b16 %v493
      %v2279 = vunpack.c.h.b16 %v493
      %v2280 = vunpack.c.l.b16 %v494
      %v2281 = vunpack.c.h.b16 %v494
      %v2282 = vunpack.c.l.b16 %v495
      %v2283 = vunpack.c.h.b16 %v495
      %v2284 = vunpack.c.l.b16 %v496
      %v2285 = vunpack.c.h.b16 %v496
      %v2286 = vunpack.c.l.b16 %v497
      %v2287 = vunpack.c.h.b16 %v497
      %v2288 = vunpack.c.l.b16 %v498
      %v2289 = vunpack.c.h.b16 %v498
      %v2290 = vunpack.c.l.b16 %v499
      %v2291 = vunpack.c.h.b16 %v499
      %v2292 = vunpack.c.l.b16 %v500
      %v2293 = vunpack.c.h.b16 %v500
      %v2294 = vunpack.c.l.b16 %v501
      %v2295 = vunpack.c.h.b16 %v501
      %v2296 = vunpack.c.l.b16 %v502
      %v2297 = vunpack.c.h.b16 %v502
      %v2298 = vunpack.c.l.b16 %v503
      %v2299 = vunpack.c.h.b16 %v503
      %v2300 = vunpack.c.l.b16 %v504
      %v2301 = vunpack.c.h.b16 %v504
      %v2302 = vunpack.c.l.b16 %v505
      %v2303 = vunpack.c.h.b16 %v505
      %v2304 = vunpack.c.l.b16 %v506
      %v2305 = vunpack.c.h.b16 %v506
      %v2306 = vunpack.c.l.b16 %v507
      %v2307 = vunpack.c.h.b16 %v507
      %v2308 = vunpack.c.l.b16 %v508
      %v2309 = vunpack.c.h.b16 %v508
      %v2310 = vunpack.c.l.b16 %v509
      %v2311 = vunpack.c.h.b16 %v509
      %v2312 = vunpack.c.l.b16 %v510
      %v2313 = vunpack.c.h.b16 %v510
      %v2314 = vunpack.c.l.b16 %v511
      %v2315 = vunpack.c.h.b16 %v511
      %v2316 = vunpack.c.l.b16 %v512
      %v2317 = vunpack.c.h.b16 %v512
      %v2318 = vunpack.c.l.b16 %v513
      %v2319 = vunpack.c.h.b16 %v513
      %v2320 = vunpack.c.l.b16 %v514
      %v2321 = vunpack.c.h.b16 %v514
      %v2322 = vunpack.c.l.b16 %v515
      %v2323 = vunpack.c.h.b16 %v515
      %v2324 = vunpack.c.l.b16 %v516
      %v2325 = vunpack.c.h.b16 %v516
      %v2326 = vunpack.c.l.b16 %v517
      %v2327 = vunpack.c.h.b16 %v517
      %v2328 = vunpack.c.l.b16 %v518
      %v2329 = vunpack.c.h.b16 %v518
      %v2330 = vunpack.c.l.b16 %v519
      %v2331 = vunpack.c.h.b16 %v519
      %v2332 = vunpack.c.l.b16 %v520
      %v2333 = vunpack.c.h.b16 %v520
      %v2334 = vunpack.c.l.b16 %v521
      %v2335 = vunpack.c.h.b16 %v521
      %v2336 = vunpack.c.l.b16 %v522
      %v2337 = vunpack.c.h.b16 %v522
      %v2338 = vunpack.c.l.b16 %v523
      %v2339 = vunpack.c.h.b16 %v523
      %v2340 = vunpack.c.l.b16 %v524
      %v2341 = vunpack.c.h.b16 %v524
      %v2342 = vunpack.c.l.b16 %v525
      %v2343 = vunpack.c.h.b16 %v525
      %v2344 = vunpack.c.l.b16 %v526
      %v2345 = vunpack.c.h.b16 %v526
      %v2346 = vunpack.c.l.b16 %v527
      %v2347 = vunpack.c.h.b16 %v527
      %v2348 = vunpack.c.l.b16 %v528
      %v2349 = vunpack.c.h.b16 %v528
      %v2350 = vunpack.c.l.b16 %v529
      %v2351 = vunpack.c.h.b16 %v529
      %v2352 = vunpack.c.l.b16 %v530
      %v2353 = vunpack.c.h.b16 %v530
      %v2354 = vunpack.c.l.b16 %v531
      %v2355 = vunpack.c.h.b16 %v531
      %v2356 = vunpack.c.l.b16 %v532
      %v2357 = vunpack.c.h.b16 %v532
      %v2358 = vunpack.c.l.b16 %v533
      %v2359 = vunpack.c.h.b16 %v533
      %v2360 = vunpack.c.l.b16 %v534
      %v2361 = vunpack.c.h.b16 %v534
      %v2362 = vunpack.c.l.b16 %v535
      %v2363 = vunpack.c.h.b16 %v535
      %v2364 = vunpack.c.l.b16 %v536
      %v2365 = vunpack.c.h.b16 %v536
      %v2366 = vunpack.c.l.b16 %v537
      %v2367 = vunpack.c.h.b16 %v537
      %v2368 = vunpack.c.l.b16 %v538
      %v2369 = vunpack.c.h.b16 %v538
      %v2370 = vunpack.c.l.b16 %v539
      %v2371 = vunpack.c.h.b16 %v539
      %v2372 = vunpack.c.l.b16 %v540
      %v2373 = vunpack.c.h.b16 %v540
      %v2374 = vunpack.c.l.b16 %v541
      %v2375 = vunpack.c.h.b16 %v541
      %v2376 = vunpack.c.l.b16 %v542
      %v2377 = vunpack.c.h.b16 %v542
      %v2378 = vunpack.c.l.b16 %v543
      %v2379 = vunpack.c.h.b16 %v543
      %v2380 = vunpack.c.l.b16 %v544
      %v2381 = vunpack.c.h.b16 %v544
      %v2382 = vunpack.c.l.b16 %v545
      %v2383 = vunpack.c.h.b16 %v545
      %v2384 = vunpack.c.l.b16 %v546
      %v2385 = vunpack.c.h.b16 %v546
      %v2386 = vunpack.c.l.b16 %v547
      %v2387 = vunpack.c.h.b16 %v547
      %v2388 = vunpack.c.l.b16 %v548
      %v2389 = vunpack.c.h.b16 %v548
      %v2390 = vunpack.c.l.b16 %v549
      %v2391 = vunpack.c.h.b16 %v549
      %v2392 = vunpack.c.l.b16 %v550
      %v2393 = vunpack.c.h.b16 %v550
      %v2394 = vunpack.c.l.b16 %v551
      %v2395 = vunpack.c.h.b16 %v551
      %v2396 = vunpack.c.l.b16 %v552
      %v2397 = vunpack.c.h.b16 %v552
      %v2398 = vunpack.c.l.b16 %v553
      %v2399 = vunpack.c.h.b16 %v553
      %v2400 = vunpack.c.l.b16 %v554
      %v2401 = vunpack.c.h.b16 %v554
      %v2402 = vunpack.c.l.b16 %v555
      %v2403 = vunpack.c.h.b16 %v555
      %v2404 = vunpack.c.l.b16 %v556
      %v2405 = vunpack.c.h.b16 %v556
      %v2406 = vunpack.c.l.b16 %v557
      %v2407 = vunpack.c.h.b16 %v557
      %v2408 = vunpack.c.l.b16 %v558
      %v2409 = vunpack.c.h.b16 %v558
      %v2410 = vunpack.c.l.b16 %v559
      %v2411 = vunpack.c.h.b16 %v559
      %v2412 = vunpack.c.l.b16 %v560
      %v2413 = vunpack.c.h.b16 %v560
      %v2414 = vunpack.c.l.b16 %v561
      %v2415 = vunpack.c.h.b16 %v561
      %v2416 = vunpack.c.l.b16 %v562
      %v2417 = vunpack.c.h.b16 %v562
      %v2418 = vunpack.c.l.b16 %v563
      %v2419 = vunpack.c.h.b16 %v563
      %v2420 = vunpack.c.l.b16 %v564
      %v2421 = vunpack.c.h.b16 %v564
      %v2422 = vunpack.c.l.b16 %v565
      %v2423 = vunpack.c.h.b16 %v565
      %v2424 = vunpack.c.l.b16 %v566
      %v2425 = vunpack.c.h.b16 %v566
      %v2426 = vunpack.c.l.b16 %v567
      %v2427 = vunpack.c.h.b16 %v567
      %v2428 = vunpack.c.l.b16 %v568
      %v2429 = vunpack.c.h.b16 %v568
      %v2430 = vunpack.c.l.b16 %v569
      %v2431 = vunpack.c.h.b16 %v569
      %v2432 = vunpack.c.l.b16 %v570
      %v2433 = vunpack.c.h.b16 %v570
      %v2434 = vunpack.c.l.b16 %v571
      %v2435 = vunpack.c.h.b16 %v571
      %v2436 = vunpack.c.l.b16 %v572
      %v2437 = vunpack.c.h.b16 %v572
      %v2438 = vunpack.c.l.b16 %v573
      %v2439 = vunpack.c.h.b16 %v573
      %v2440 = vunpack.c.l.b16 %v574
      %v2441 = vunpack.c.h.b16 %v574
      %v2442 = vunpack.c.l.b16 %v575
      %v2443 = vunpack.c.h.b16 %v575
      %v2444 = vpack.c.b16 %v2256, %v2252
      %v2445 = vpack.c.b16 %v2257, %v2253
      %v2446 = vpack.c.b16 %v2258, %v2254
      %v2447 = vpack.c.b16 %v2259, %v2255
      %v2448 = vpack.c.b16 %v2264, %v2260
      %v2449 = vpack.c.b16 %v2265, %v2261
      %v2450 = vpack.c.b16 %v2266, %v2262
      %v2451 = vpack.c.b16 %v2267, %v2263
      %v2452 = vpack.c.b16 %v2272, %v2268
      %v2453 = vpack.c.b16 %v2273, %v2269
      %v2454 = vpack.c.b16 %v2274, %v2270
      %v2455 = vpack.c.b16 %v2275, %v2271
      %v2456 = vpack.c.b16 %v2280, %v2276
      %v2457 = vpack.c.b16 %v2281, %v2277
      %v2458 = vpack.c.b16 %v2282, %v2278
      %v2459 = vpack.c.b16 %v2283, %v2279
      %v2460 = vpack.c.b16 %v2288, %v2284
      %v2461 = vpack.c.b16 %v2289, %v2285
      %v2462 = vpack.c.b16 %v2290, %v2286
      %v2463 = vpack.c.b16 %v2291, %v2287
      %v2464 = vpack.c.b16 %v2296, %v2292
      %v2465 = vpack.c.b16 %v2297, %v2293
      %v2466 = vpack.c.b16 %v2298, %v2294
      %v2467 = vpack.c.b16 %v2299, %v2295
      %v2468 = vpack.c.b16 %v2304, %v2300
      %v2469 = vpack.c.b16 %v2305, %v2301
      %v2470 = vpack.c.b16 %v2306, %v2302
      %v2471 = vpack.c.b16 %v2307, %v2303
      %v2472 = vpack.c.b16 %v2312, %v2308
      %v2473 = vpack.c.b16 %v2313, %v2309
      %v2474 = vpack.c.b16 %v2314, %v2310
      %v2475 = vpack.c.b16 %v2315, %v2311
      %v2476 = vpack.c.b16 %v2320, %v2316
      %v2477 = vpack.c.b16 %v2321, %v2317
      %v2478 = vpack.c.b16 %v2322, %v2318
      %v2479 = vpack.c.b16 %v2323, %v2319
      %v2480 = vpack.c.b16 %v2328, %v2324
      %v2481 = vpack.c.b16 %v2329, %v2325
      %v2482 = vpack.c.b16 %v2330, %v2326
      %v2483 = vpack.c.b16 %v2331, %v2327
      %v2484 = vpack.c.b16 %v2336, %v2332
      %v2485 = vpack.c.b16 %v2337, %v2333
      %v2486 = vpack.c.b16 %v2338, %v2334
      %v2487 = vpack.c.b16 %v2339, %v2335
      %v2488 = vpack.c.b16 %v2344, %v2340
      %v2489 = vpack.c.b16 %v2345, %v2341
      %v2490 = vpack.c.b16 %v2346, %v2342
      %v2491 = vpack.c.b16 %v2347, %v2343
      %v2492 = vpack.c.b16 %v2352, %v2348
      %v2493 = vpack.c.b16 %v2353, %v2349
      %v2494 = vpack.c.b16 %v2354, %v2350
      %v2495 = vpack.c.b16 %v2355, %v2351
      %v2496 = vpack.c.b16 %v2360, %v2356
      %v2497 = vpack.c.b16 %v2361, %v2357
      %v2498 = vpack.c.b16 %v2362, %v2358
      %v2499 = vpack.c.b16 %v2363, %v2359
      %v2500 = vpack.c.b16 %v2368, %v2364
      %v2501 = vpack.c.b16 %v2369, %v2365
      %v2502 = vpack.c.b16 %v2370, %v2366
      %v2503 = vpack.c.b16 %v2371, %v2367
      %v2504 = vpack.c.b16 %v2376, %v2372
      %v2505 = vpack.c.b16 %v2377, %v2373
      %v2506 = vpack.c.b16 %v2378, %v2374
      %v2507 = vpack.c.b16 %v2379, %v2375
      %v2508 = vpack.c.b16 %v2384, %v2380
      %v2509 = vpack.c.b16 %v2385, %v2381
      %v2510 = vpack.c.b16 %v2386, %v2382
      %v2511 = vpack.c.b16 %v2387, %v2383
      %v2512 = vpack.c.b16 %v2392, %v2388
      %v2513 = vpack.c.b16 %v2393, %v2389
      %v2514 = vpack.c.b16 %v2394, %v2390
      %v2515 = vpack.c.b16 %v2395, %v2391
      %v2516 = vpack.c.b16 %v2400, %v2396
      %v2517 = vpack.c.b16 %v2401, %v2397
      %v2518 = vpack.c.b16 %v2402, %v2398
      %v2519 = vpack.c.b16 %v2403, %v2399
      %v2520 = vpack.c.b16 %v2408, %v2404
      %v2521 = vpack.c.b16 %v2409, %v2405
      %v2522 = vpack.c.b16 %v2410, %v2406
      %v2523 = vpack.c.b16 %v2411, %v2407
      %v2524 = vpack.c.b16 %v2416, %v2412
      %v2525 = vpack.c.b16 %v2417, %v2413
      %v2526 = vpack.c.b16 %v2418, %v2414
      %v2527 = vpack.c.b16 %v2419, %v2415
      %v2528 = vpack.c.b16 %v2424, %v2420
      %v2529 = vpack.c.b16 %v2425, %v2421
      %v2530 = vpack.c.b16 %v2426, %v2422
      %v2531 = vpack.c.b16 %v2427, %v2423
      %v2532 = vpack.c.b16 %v2432, %v2428
      %v2533 = vpack.c.b16 %v2433, %v2429
      %v2534 = vpack.c.b16 %v2434, %v2430
      %v2535 = vpack.c.b16 %v2435, %v2431
      %v2536 = vpack.c.b16 %v2440, %v2436
      %v2537 = vpack.c.b16 %v2441, %v2437
      %v2538 = vpack.c.b16 %v2442, %v2438
      %v2539 = vpack.c.b16 %v2443, %v2439
      %2636 = vmatprep.subr.bf16.mxu0 %v2445
      %2637 = vmatpush1.bf16.msra.mxu0 %v2444
      %2638 = vmatprep.subr.bf16.mxu0 %v2449
      %2639 = vmatpush1.bf16.msra.mxu0 %v2448
      %2640 = vmatprep.subr.bf16.mxu0 %v2453
      %2641 = vmatpush1.bf16.msra.mxu0 %v2452
      %2642 = vmatprep.subr.bf16.mxu0 %v2457
      %2643 = vmatpush1.bf16.msra.mxu0 %v2456
      %2644 = vmatprep.subr.bf16.mxu0 %v2461
      %2645 = vmatpush1.bf16.msra.mxu0 %v2460
      %2646 = vmatprep.subr.bf16.mxu0 %v2465
      %2647 = vmatpush1.bf16.msra.mxu0 %v2464
      %2648 = vmatprep.subr.bf16.mxu0 %v2469
      %2649 = vmatpush1.bf16.msra.mxu0 %v2468
      %2650 = vmatprep.subr.bf16.mxu0 %v2473
      %2651 = vmatpush1.bf16.msra.mxu0 %v2472
      %2652 = vmatprep.subr.bf16.mxu0 %v2477
      %2653 = vmatpush1.bf16.msra.mxu0 %v2476
      %2654 = vmatprep.subr.bf16.mxu0 %v2481
      %2655 = vmatpush1.bf16.msra.mxu0 %v2480
      %2656 = vmatprep.subr.bf16.mxu0 %v2485
      %2657 = vmatpush1.bf16.msra.mxu0 %v2484
      %2658 = vmatprep.subr.bf16.mxu0 %v2489
      %2659 = vmatpush1.bf16.msra.mxu0 %v2488
      %2660 = vmatprep.subr.bf16.mxu0 %v2493
      %2661 = vmatpush1.bf16.msra.mxu0 %v2492
      %2662 = vmatprep.subr.bf16.mxu0 %v2497
      %2663 = vmatpush1.bf16.msra.mxu0 %v2496
      %2664 = vmatprep.subr.bf16.mxu0 %v2501
      %2665 = vmatpush1.bf16.msra.mxu0 %v2500
      %2666 = vmatprep.subr.bf16.mxu0 %v2505
      %2667 = vmatpush1.bf16.msra.mxu0 %v2504
      %2668 = vmatprep.mubr.bf16.mxu0 %v600
      %2669 = vmatmul.mubr.bf16.gmra.mrb[0].mxu0 %v2133
      %v2670 = vpop.f32.mrb[0].mxu0
      %v2671 = vadd.f32 %v2139, %v2670
      %v2672 = vpop.f32.mrb[0].mxu0
      %v2673 = vadd.f32 %v2143, %v2672
      %v2674 = vpop.f32.mrb[0].mxu0
      %v2675 = vadd.f32 %v2139, %v2674
      %v2676 = vpop.f32.mrb[0].mxu0
      %v2677 = vadd.f32 %v2143, %v2676
      %2678 = vdwg.mxu0
      %2679 = vmatprep.subr.bf16.mxu0 %v2509
      %2680 = vmatpush1.bf16.msra.mxu0 %v2508
      %2681 = vmatprep.subr.bf16.mxu0 %v2513
      %2682 = vmatpush1.bf16.msra.mxu0 %v2512
      %2683 = vmatprep.subr.bf16.mxu0 %v2517
      %2684 = vmatpush1.bf16.msra.mxu0 %v2516
      %2685 = vmatprep.subr.bf16.mxu0 %v2521
      %2686 = vmatpush1.bf16.msra.mxu0 %v2520
      %2687 = vmatprep.subr.bf16.mxu0 %v2525
      %2688 = vmatpush1.bf16.msra.mxu0 %v2524
      %2689 = vmatprep.subr.bf16.mxu0 %v2529
      %2690 = vmatpush1.bf16.msra.mxu0 %v2528
      %2691 = vmatprep.subr.bf16.mxu0 %v2533
      %2692 = vmatpush1.bf16.msra.mxu0 %v2532
      %2693 = vmatprep.subr.bf16.mxu0 %v2537
      %2694 = vmatpush1.bf16.msra.mxu0 %v2536
      %2695 = vmatprep.subr.bf16.mxu0 0
      %2696 = vmatpush1.bf16.msra.mxu0 0
      %2697 = vmatprep.subr.bf16.mxu0 0
      %2698 = vmatpush1.bf16.msra.mxu0 0
      %2699 = vmatprep.subr.bf16.mxu0 0
      %2700 = vmatpush1.bf16.msra.mxu0 0
      %2701 = vmatprep.subr.bf16.mxu0 0
      %2702 = vmatpush1.bf16.msra.mxu0 0
      %2703 = vmatprep.subr.bf16.mxu0 0
      %2704 = vmatpush1.bf16.msra.mxu0 0
      %2705 = vmatprep.subr.bf16.mxu0 0
      %2706 = vmatpush1.bf16.msra.mxu0 0
      %2707 = vmatprep.subr.bf16.mxu0 0
      %2708 = vmatpush1.bf16.msra.mxu0 0
      %2709 = vmatprep.subr.bf16.mxu0 0
      %2710 = vmatpush1.bf16.msra.mxu0 0
      %2711 = vmatprep.mubr.bf16.mxu0 0
      %2712 = vmatmul.mubr.bf16.gmra.mrb[0].mxu0 %v599
      %v2713 = vpop.f32.mrb[0].mxu0
      %v2714 = vadd.f32 %v2671, %v2713
      %v2715 = vpop.f32.mrb[0].mxu0
      %v2716 = vadd.f32 %v2673, %v2715
      %v2717 = vpop.f32.mrb[0].mxu0
      %v2718 = vadd.f32 %v2675, %v2717
      %v2719 = vpop.f32.mrb[0].mxu0
      %v2720 = vadd.f32 %v2677, %v2719
      %2721 = vdwg.mxu0
      %2722 = vmatprep.subr.bf16.mxu0 %v2447
      %2723 = vmatpush1.bf16.msra.mxu0 %v2446
      %2724 = vmatprep.subr.bf16.mxu0 %v2451
      %2725 = vmatpush1.bf16.msra.mxu0 %v2450
      %2726 = vmatprep.subr.bf16.mxu0 %v2455
      %2727 = vmatpush1.bf16.msra.mxu0 %v2454
      %2728 = vmatprep.subr.bf16.mxu0 %v2459
      %2729 = vmatpush1.bf16.msra.mxu0 %v2458
      %2730 = vmatprep.subr.bf16.mxu0 %v2463
      %2731 = vmatpush1.bf16.msra.mxu0 %v2462
      %2732 = vmatprep.subr.bf16.mxu0 %v2467
      %2733 = vmatpush1.bf16.msra.mxu0 %v2466
      %2734 = vmatprep.subr.bf16.mxu0 %v2471
      %2735 = vmatpush1.bf16.msra.mxu0 %v2470
      %2736 = vmatprep.subr.bf16.mxu0 %v2475
      %2737 = vmatpush1.bf16.msra.mxu0 %v2474
      %2738 = vmatprep.subr.bf16.mxu0 %v2479
      %2739 = vmatpush1.bf16.msra.mxu0 %v2478
      %2740 = vmatprep.subr.bf16.mxu0 %v2483
      %2741 = vmatpush1.bf16.msra.mxu0 %v2482
      %2742 = vmatprep.subr.bf16.mxu0 %v2487
      %2743 = vmatpush1.bf16.msra.mxu0 %v2486
      %2744 = vmatprep.subr.bf16.mxu0 %v2491
      %2745 = vmatpush1.bf16.msra.mxu0 %v2490
      %2746 = vmatprep.subr.bf16.mxu0 %v2495
      %2747 = vmatpush1.bf16.msra.mxu0 %v2494
      %2748 = vmatprep.subr.bf16.mxu0 %v2499
      %2749 = vmatpush1.bf16.msra.mxu0 %v2498
      %2750 = vmatprep.subr.bf16.mxu0 %v2503
      %2751 = vmatpush1.bf16.msra.mxu0 %v2502
      %2752 = vmatprep.subr.bf16.mxu0 %v2507
      %2753 = vmatpush1.bf16.msra.mxu0 %v2506
      %2754 = vmatprep.mubr.bf16.mxu0 %v600
      %2755 = vmatmul.mubr.bf16.gmra.mrb[0].mxu0 %v2133
      %v2756 = vpop.f32.mrb[0].mxu0
      %v2757 = vadd.f32 %v2147, %v2756
      %v2758 = vpop.f32.mrb[0].mxu0
      %v2759 = vadd.f32 %v2151, %v2758
      %v2760 = vpop.f32.mrb[0].mxu0
      %v2761 = vadd.f32 %v2147, %v2760
      %v2762 = vpop.f32.mrb[0].mxu0
      %v2763 = vadd.f32 %v2151, %v2762
      %2764 = vdwg.mxu0
      %2765 = vmatprep.subr.bf16.mxu0 %v2511
      %2766 = vmatpush1.bf16.msra.mxu0 %v2510
      %2767 = vmatprep.subr.bf16.mxu0 %v2515
      %2768 = vmatpush1.bf16.msra.mxu0 %v2514
      %2769 = vmatprep.subr.bf16.mxu0 %v2519
      %2770 = vmatpush1.bf16.msra.mxu0 %v2518
      %2771 = vmatprep.subr.bf16.mxu0 %v2523
      %2772 = vmatpush1.bf16.msra.mxu0 %v2522
      %2773 = vmatprep.subr.bf16.mxu0 %v2527
      %2774 = vmatpush1.bf16.msra.mxu0 %v2526
      %2775 = vmatprep.subr.bf16.mxu0 %v2531
      %2776 = vmatpush1.bf16.msra.mxu0 %v2530
      %2777 = vmatprep.subr.bf16.mxu0 %v2535
      %2778 = vmatpush1.bf16.msra.mxu0 %v2534
      %2779 = vmatprep.subr.bf16.mxu0 %v2539
      %2780 = vmatpush1.bf16.msra.mxu0 %v2538
      %2781 = vmatprep.subr.bf16.mxu0 0
      %2782 = vmatpush1.bf16.msra.mxu0 0
      %2783 = vmatprep.subr.bf16.mxu0 0
      %2784 = vmatpush1.bf16.msra.mxu0 0
      %2785 = vmatprep.subr.bf16.mxu0 0
      %2786 = vmatpush1.bf16.msra.mxu0 0
      %2787 = vmatprep.subr.bf16.mxu0 0
      %2788 = vmatpush1.bf16.msra.mxu0 0
      %2789 = vmatprep.subr.bf16.mxu0 0
      %2790 = vmatpush1.bf16.msra.mxu0 0
      %2791 = vmatprep.subr.bf16.mxu0 0
      %2792 = vmatpush1.bf16.msra.mxu0 0
      %2793 = vmatprep.subr.bf16.mxu0 0
      %2794 = vmatpush1.bf16.msra.mxu0 0
      %2795 = vmatprep.subr.bf16.mxu0 0
      %2796 = vmatpush1.bf16.msra.mxu0 0
      %2797 = vmatprep.mubr.bf16.mxu0 0
      %2798 = vmatmul.mubr.bf16.gmra.mrb[0].mxu0 %v599
      %v2799 = vpop.f32.mrb[0].mxu0
      %v2800 = vadd.f32 %v2757, %v2799
      %v2801 = vpop.f32.mrb[0].mxu0
      %v2802 = vadd.f32 %v2759, %v2801
      %v2803 = vpop.f32.mrb[0].mxu0
      %v2804 = vadd.f32 %v2761, %v2803
      %v2805 = vpop.f32.mrb[0].mxu0
      %v2806 = vadd.f32 %v2763, %v2805
      %2807 = vdwg.mxu0
      %2808 = vmatprep.subr.bf16.mxu0 %v2445
      %2809 = vmatpush1.bf16.msra.mxu0 %v2444
      %2810 = vmatprep.subr.bf16.mxu0 %v2449
      %2811 = vmatpush1.bf16.msra.mxu0 %v2448
      %2812 = vmatprep.subr.bf16.mxu0 %v2453
      %2813 = vmatpush1.bf16.msra.mxu0 %v2452
      %2814 = vmatprep.subr.bf16.mxu0 %v2457
      %2815 = vmatpush1.bf16.msra.mxu0 %v2456
      %2816 = vmatprep.subr.bf16.mxu0 %v2461
      %2817 = vmatpush1.bf16.msra.mxu0 %v2460
      %2818 = vmatprep.subr.bf16.mxu0 %v2465
      %2819 = vmatpush1.bf16.msra.mxu0 %v2464
      %2820 = vmatprep.subr.bf16.mxu0 %v2469
      %2821 = vmatpush1.bf16.msra.mxu0 %v2468
      %2822 = vmatprep.subr.bf16.mxu0 %v2473
      %2823 = vmatpush1.bf16.msra.mxu0 %v2472
      %2824 = vmatprep.subr.bf16.mxu0 %v2477
      %2825 = vmatpush1.bf16.msra.mxu0 %v2476
      %2826 = vmatprep.subr.bf16.mxu0 %v2481
      %2827 = vmatpush1.bf16.msra.mxu0 %v2480
      %2828 = vmatprep.subr.bf16.mxu0 %v2485
      %2829 = vmatpush1.bf16.msra.mxu0 %v2484
      %2830 = vmatprep.subr.bf16.mxu0 %v2489
      %2831 = vmatpush1.bf16.msra.mxu0 %v2488
      %2832 = vmatprep.subr.bf16.mxu0 %v2493
      %2833 = vmatpush1.bf16.msra.mxu0 %v2492
      %2834 = vmatprep.subr.bf16.mxu0 %v2497
      %2835 = vmatpush1.bf16.msra.mxu0 %v2496
      %2836 = vmatprep.subr.bf16.mxu0 %v2501
      %2837 = vmatpush1.bf16.msra.mxu0 %v2500
      %2838 = vmatprep.subr.bf16.mxu0 %v2505
      %2839 = vmatpush1.bf16.msra.mxu0 %v2504
      %2840 = vmatprep.mubr.bf16.mxu0 %v599
      %2841 = vmatmul.mubr.bf16.gmra.mrb[0].mxu0 %v2134
      %v2842 = vpop.f32.mrb[0].mxu0
      %v2843 = vadd.f32 %v2139, %v2842
      %v2844 = vpop.f32.mrb[0].mxu0
      %v2845 = vadd.f32 %v2143, %v2844
      %v2846 = vpop.f32.mrb[0].mxu0
      %v2847 = vadd.f32 %v2139, %v2846
      %v2848 = vpop.f32.mrb[0].mxu0
      %v2849 = vadd.f32 %v2143, %v2848
      %2850 = vdwg.mxu0
      %2851 = vmatprep.subr.bf16.mxu0 %v2509
      %2852 = vmatpush1.bf16.msra.mxu0 %v2508
      %2853 = vmatprep.subr.bf16.mxu0 %v2513
      %2854 = vmatpush1.bf16.msra.mxu0 %v2512
      %2855 = vmatprep.subr.bf16.mxu0 %v2517
      %2856 = vmatpush1.bf16.msra.mxu0 %v2516
      %2857 = vmatprep.subr.bf16.mxu0 %v2521
      %2858 = vmatpush1.bf16.msra.mxu0 %v2520
      %2859 = vmatprep.subr.bf16.mxu0 %v2525
      %2860 = vmatpush1.bf16.msra.mxu0 %v2524
      %2861 = vmatprep.subr.bf16.mxu0 %v2529
      %2862 = vmatpush1.bf16.msra.mxu0 %v2528
      %2863 = vmatprep.subr.bf16.mxu0 %v2533
      %2864 = vmatpush1.bf16.msra.mxu0 %v2532
      %2865 = vmatprep.subr.bf16.mxu0 %v2537
      %2866 = vmatpush1.bf16.msra.mxu0 %v2536
      %2867 = vmatprep.subr.bf16.mxu0 0
      %2868 = vmatpush1.bf16.msra.mxu0 0
      %2869 = vmatprep.subr.bf16.mxu0 0
      %2870 = vmatpush1.bf16.msra.mxu0 0
      %2871 = vmatprep.subr.bf16.mxu0 0
      %2872 = vmatpush1.bf16.msra.mxu0 0
      %2873 = vmatprep.subr.bf16.mxu0 0
      %2874 = vmatpush1.bf16.msra.mxu0 0
      %2875 = vmatprep.subr.bf16.mxu0 0
      %2876 = vmatpush1.bf16.msra.mxu0 0
      %2877 = vmatprep.subr.bf16.mxu0 0
      %2878 = vmatpush1.bf16.msra.mxu0 0
      %2879 = vmatprep.subr.bf16.mxu0 0
      %2880 = vmatpush1.bf16.msra.mxu0 0
      %2881 = vmatprep.subr.bf16.mxu0 0
      %2882 = vmatpush1.bf16.msra.mxu0 0
      %2883 = vmatprep.mubr.bf16.mxu0 0
      %2884 = vmatmul.mubr.bf16.gmra.mrb[0].mxu0 %v600
      %v2885 = vpop.f32.mrb[0].mxu0
      %v2886 = vadd.f32 %v2843, %v2885
      %v2887 = vpop.f32.mrb[0].mxu0
      %v2888 = vadd.f32 %v2845, %v2887
      %v2889 = vpop.f32.mrb[0].mxu0
      %v2890 = vadd.f32 %v2847, %v2889
      %v2891 = vpop.f32.mrb[0].mxu0
      %v2892 = vadd.f32 %v2849, %v2891
      %2893 = vdwg.mxu0
      %2894 = vmatprep.subr.bf16.mxu0 %v2447
      %2895 = vmatpush1.bf16.msra.mxu0 %v2446
      %2896 = vmatprep.subr.bf16.mxu0 %v2451
      %2897 = vmatpush1.bf16.msra.mxu0 %v2450
      %2898 = vmatprep.subr.bf16.mxu0 %v2455
      %2899 = vmatpush1.bf16.msra.mxu0 %v2454
      %2900 = vmatprep.subr.bf16.mxu0 %v2459
      %2901 = vmatpush1.bf16.msra.mxu0 %v2458
      %2902 = vmatprep.subr.bf16.mxu0 %v2463
      %2903 = vmatpush1.bf16.msra.mxu0 %v2462
      %2904 = vmatprep.subr.bf16.mxu0 %v2467
      %2905 = vmatpush1.bf16.msra.mxu0 %v2466
      %2906 = vmatprep.subr.bf16.mxu0 %v2471
      %2907 = vmatpush1.bf16.msra.mxu0 %v2470
      %2908 = vmatprep.subr.bf16.mxu0 %v2475
      %2909 = vmatpush1.bf16.msra.mxu0 %v2474
      %2910 = vmatprep.subr.bf16.mxu0 %v2479
      %2911 = vmatpush1.bf16.msra.mxu0 %v2478
      %2912 = vmatprep.subr.bf16.mxu0 %v2483
      %2913 = vmatpush1.bf16.msra.mxu0 %v2482
      %2914 = vmatprep.subr.bf16.mxu0 %v2487
      %2915 = vmatpush1.bf16.msra.mxu0 %v2486
      %2916 = vmatprep.subr.bf16.mxu0 %v2491
      %2917 = vmatpush1.bf16.msra.mxu0 %v2490
      %2918 = vmatprep.subr.bf16.mxu0 %v2495
      %2919 = vmatpush1.bf16.msra.mxu0 %v2494
      %2920 = vmatprep.subr.bf16.mxu0 %v2499
      %2921 = vmatpush1.bf16.msra.mxu0 %v2498
      %2922 = vmatprep.subr.bf16.mxu0 %v2503
      %2923 = vmatpush1.bf16.msra.mxu0 %v2502
      %2924 = vmatprep.subr.bf16.mxu0 %v2507
      %2925 = vmatpush1.bf16.msra.mxu0 %v2506
      %2926 = vmatprep.mubr.bf16.mxu0 %v599
      %2927 = vmatmul.mubr.bf16.gmra.mrb[0].mxu0 %v2134
      %v2928 = vpop.f32.mrb[0].mxu0
      %v2929 = vadd.f32 %v2147, %v2928
      %v2930 = vpop.f32.mrb[0].mxu0
      %v2931 = vadd.f32 %v2151, %v2930
      %v2932 = vpop.f32.mrb[0].mxu0
      %v2933 = vadd.f32 %v2147, %v2932
      %v2934 = vpop.f32.mrb[0].mxu0
      %v2935 = vadd.f32 %v2151, %v2934
      %2936 = vdwg.mxu0
      %2937 = vmatprep.subr.bf16.mxu0 %v2511
      %2938 = vmatpush1.bf16.msra.mxu0 %v2510
      %2939 = vmatprep.subr.bf16.mxu0 %v2515
      %2940 = vmatpush1.bf16.msra.mxu0 %v2514
      %2941 = vmatprep.subr.bf16.mxu0 %v2519
      %2942 = vmatpush1.bf16.msra.mxu0 %v2518
      %2943 = vmatprep.subr.bf16.mxu0 %v2523
      %2944 = vmatpush1.bf16.msra.mxu0 %v2522
      %2945 = vmatprep.subr.bf16.mxu0 %v2527
      %2946 = vmatpush1.bf16.msra.mxu0 %v2526
      %2947 = vmatprep.subr.bf16.mxu0 %v2531
      %2948 = vmatpush1.bf16.msra.mxu0 %v2530
      %2949 = vmatprep.subr.bf16.mxu0 %v2535
      %2950 = vmatpush1.bf16.msra.mxu0 %v2534
      %2951 = vmatprep.subr.bf16.mxu0 %v2539
      %2952 = vmatpush1.bf16.msra.mxu0 %v2538
      %2953 = vmatprep.subr.bf16.mxu0 0
      %2954 = vmatpush1.bf16.msra.mxu0 0
      %2955 = vmatprep.subr.bf16.mxu0 0
      %2956 = vmatpush1.bf16.msra.mxu0 0
      %2957 = vmatprep.subr.bf16.mxu0 0
      %2958 = vmatpush1.bf16.msra.mxu0 0
      %2959 = vmatprep.subr.bf16.mxu0 0
      %2960 = vmatpush1.bf16.msra.mxu0 0
      %2961 = vmatprep.subr.bf16.mxu0 0
      %2962 = vmatpush1.bf16.msra.mxu0 0
      %2963 = vmatprep.subr.bf16.mxu0 0
      %2964 = vmatpush1.bf16.msra.mxu0 0
      %2965 = vmatprep.subr.bf16.mxu0 0
      %2966 = vmatpush1.bf16.msra.mxu0 0
      %2967 = vmatprep.subr.bf16.mxu0 0
      %2968 = vmatpush1.bf16.msra.mxu0 0
      %2969 = vmatprep.mubr.bf16.mxu0 0
      %2970 = vmatmul.mubr.bf16.gmra.mrb[0].mxu0 %v600
      %v2971 = vpop.f32.mrb[0].mxu0
      %v2972 = vadd.f32 %v2929, %v2971
      %v2973 = vpop.f32.mrb[0].mxu0
      %v2974 = vadd.f32 %v2931, %v2973
      %v2975 = vpop.f32.mrb[0].mxu0
      %v2976 = vadd.f32 %v2933, %v2975
      %v2977 = vpop.f32.mrb[0].mxu0
      %v2978 = vadd.f32 %v2935, %v2977
      %2979 = vdwg.mxu0
      %v2980 = vxor.u32 %v2714, 2147483648
      %v2981 = vxor.u32 %v2718, 2147483648
      %v2982 = vmul.f32 %v2980, 1.442695
      %v2983 = vpow.pop %v2982
      %v2984 = vmul.f32 %v2981, 1.442695
      %v2985 = vpow.pop %v2984
      %v2986 = vadd.f32 %v2983, 1.0
      %v2987 = vadd.f32 %v2985, 1.0
      %v2988 = vrcp.pop %v2986
      %v2989 = vmul.f32 1.0, %v2988
      %v2990 = vrcp.pop %v2987
      %v2991 = vmul.f32 1.0, %v2990
      %v2992 = vxor.u32 %v2716, 2147483648
      %v2993 = vxor.u32 %v2720, 2147483648
      %v2994 = vmul.f32 %v2992, 1.442695
      %v2995 = vpow.pop %v2994
      %v2996 = vmul.f32 %v2993, 1.442695
      %v2997 = vpow.pop %v2996
      %v2998 = vadd.f32 %v2995, 1.0
      %v2999 = vadd.f32 %v2997, 1.0
      %v3000 = vrcp.pop %v2998
      %v3001 = vmul.f32 1.0, %v3000
      %v3002 = vrcp.pop %v2999
      %v3003 = vmul.f32 1.0, %v3002
      %v3004 = vtanh.pop %v2800
      %v3005 = vtanh.pop %v2804
      %v3006 = vxor.u32 %v2802, 2147483648
      %v3007 = vxor.u32 %v2806, 2147483648
      %v3008 = vmul.f32 %v3006, 1.442695
      %v3009 = vpow.pop %v3008
      %v3010 = vmul.f32 %v3007, 1.442695
      %v3011 = vpow.pop %v3010
      %v3012 = vadd.f32 %v3009, 1.0
      %v3013 = vadd.f32 %v3011, 1.0
      %v3014 = vrcp.pop %v3012
      %v3015 = vmul.f32 1.0, %v3014
      %v3016 = vrcp.pop %v3013
      %v3017 = vmul.f32 1.0, %v3016
      %v3018 = vmul.f32 %v3001, %v601
      %v3019 = vmul.f32 %v3003, %v602
      %v3020 = vmul.f32 %v2989, %v3004
      %v3021 = vmul.f32 %v2991, %v3005
      %v3022 = vadd.f32 %v3018, %v3020
      %v3023 = vadd.f32 %v3019, %v3021
      %v3024 = vtanh.pop %v3022
      %v3025 = vtanh.pop %v3023
      %v3026 = vmul.f32 %v3015, %v3024
      %v3027 = vmul.f32 %v3017, %v3025
      %v3028 = vpack.c.bf16 %v3027, %v3026
      %v3029 = vxor.u32 %v2886, 2147483648
      %v3030 = vxor.u32 %v2890, 2147483648
      %v3031 = vmul.f32 %v3029, 1.442695
      %v3032 = vpow.pop %v3031
      %v3033 = vmul.f32 %v3030, 1.442695
      %v3034 = vpow.pop %v3033
      %v3035 = vadd.f32 %v3032, 1.0
      %v3036 = vadd.f32 %v3034, 1.0
      %v3037 = vrcp.pop %v3035
      %v3038 = vmul.f32 1.0, %v3037
      %v3039 = vrcp.pop %v3036
      %v3040 = vmul.f32 1.0, %v3039
      %v3041 = vxor.u32 %v2888, 2147483648
      %v3042 = vxor.u32 %v2892, 2147483648
      %v3043 = vmul.f32 %v3041, 1.442695
      %v3044 = vpow.pop %v3043
      %v3045 = vmul.f32 %v3042, 1.442695
      %v3046 = vpow.pop %v3045
      %v3047 = vadd.f32 %v3044, 1.0
      %v3048 = vadd.f32 %v3046, 1.0
      %v3049 = vrcp.pop %v3047
      %v3050 = vmul.f32 1.0, %v3049
      %v3051 = vrcp.pop %v3048
      %v3052 = vmul.f32 1.0, %v3051
      %v3053 = vtanh.pop %v2972
      %v3054 = vtanh.pop %v2976
      %v3055 = vxor.u32 %v2974, 2147483648
      %v3056 = vxor.u32 %v2978, 2147483648
      %v3057 = vmul.f32 %v3055, 1.442695
      %v3058 = vpow.pop %v3057
      %v3059 = vmul.f32 %v3056, 1.442695
      %v3060 = vpow.pop %v3059
      %v3061 = vadd.f32 %v3058, 1.0
      %v3062 = vadd.f32 %v3060, 1.0
      %v3063 = vrcp.pop %v3061
      %v3064 = vmul.f32 1.0, %v3063
      %v3065 = vrcp.pop %v3062
      %v3066 = vmul.f32 1.0, %v3065
      %v3067 = vmul.f32 %v3050, %v603
      %v3068 = vmul.f32 %v3052, %v604
      %v3069 = vmul.f32 %v3038, %v3053
      %v3070 = vmul.f32 %v3040, %v3054
      %v3071 = vadd.f32 %v3067, %v3069
      %v3072 = vadd.f32 %v3068, %v3070
      %v3073 = vtanh.pop %v3071
      %v3074 = vtanh.pop %v3072
      %v3075 = vmul.f32 %v3064, %v3073
      %v3076 = vmul.f32 %v3066, %v3074
      %v3077 = vpack.c.bf16 %v3076, %v3075
    $region178: #{tpu_custom_call.1} parent=1 // loop_footer
      %s598 = sadd.s32 1, %s594
    $region179: #{tpu_custom_call.1} parent=1 // loop_footer_branch
      %593 = sbr.rel target = $region175
    $region180: #{tpu_custom_call.1} parent=1 // loop_exit
      _
    %v3078 = vld [vmem:[%s22] sm:$0xf]
    %v3079 = vld [vmem:[%s22 + $0x4] sm:$0xf]
    %v3080 = vld [vmem:[%s22 + $0x8] sm:$0xf]
    %v3081 = vld [vmem:[%s22 + $0xc] sm:$0xf]
    %v3082 = vld [vmem:[%s22 + $0x10] sm:$0xf]
    %v3083 = vld [vmem:[%s22 + $0x14] sm:$0xf]
    %v3084 = vld [vmem:[%s22 + $0x18] sm:$0xf]
    %v3085 = vld [vmem:[%s22 + $0x1c] sm:$0xf]
    %v3086 = vld [vmem:[%s22 + $0x20] sm:$0xf]
    %v3087 = vld [vmem:[%s22 + $0x24] sm:$0xf]
    %v3088 = vld [vmem:[%s22 + $0x28] sm:$0xf]
    %v3089 = vld [vmem:[%s22 + $0x2c] sm:$0xf]
    %v3090 = vld [vmem:[%s22 + $0x30] sm:$0xf]
    %v3091 = vld [vmem:[%s22 + $0x34] sm:$0xf]
    %v3092 = vld [vmem:[%s22 + $0x38] sm:$0xf]
    %v3093 = vld [vmem:[%s22 + $0x3c] sm:$0xf]
    %v3094 = vld [vmem:[#allocation28] sm:$0xf]
    %v3095 = vld [vmem:[#allocation28 + $0x4] sm:$0xf]
    %v3096 = vld [vmem:[#allocation28 + $0x8] sm:$0xf]
    %v3097 = vld [vmem:[#allocation28 + $0xc] sm:$0xf]
    %v3098 = vld [vmem:[#allocation28 + $0x10] sm:$0xf]
    %v3099 = vld [vmem:[#allocation28 + $0x14] sm:$0xf]
    %v3100 = vld [vmem:[#allocation28 + $0x18] sm:$0xf]
    %v3101 = vld [vmem:[#allocation28 + $0x1c] sm:$0xf]
    %v3102 = vld [vmem:[#allocation28 + $0x20] sm:$0xf]
    %v3103 = vld [vmem:[#allocation28 + $0x24] sm:$0xf]
    %v3104 = vld [vmem:[#allocation28 + $0x28] sm:$0xf]
    %v3105 = vld [vmem:[#allocation28 + $0x2c] sm:$0xf]
    %v3106 = vld [vmem:[#allocation28 + $0x30] sm:$0xf]
    %v3107 = vld [vmem:[#allocation28 + $0x34] sm:$0xf]
    %v3108 = vld [vmem:[#allocation28 + $0x38] sm:$0xf]
    %v3109 = vld [vmem:[#allocation28 + $0x3c] sm:$0xf]
    %v3110 = vld [vmem:[%s23] sm:$0x1]
    %v3111 = vld [vmem:[%s25] sm:$0x1]
    %v3113 = vlaneseq
    %v3114 = vshrl.u32 %v3113, 7
    %v3115 = vsub.s32 0, %v3114
    %v3116 = vrot.slane %v3110, %v3115
    %v3134 = vunpack.c.l.b16 %v3078
    %v3135 = vunpack.c.l.b16 %v3079
    %v3136 = vunpack.c.l.b16 %v3080
    %v3137 = vunpack.c.l.b16 %v3081
    %v3138 = vunpack.c.l.b16 %v3082
    %v3139 = vunpack.c.l.b16 %v3083
    %v3140 = vunpack.c.l.b16 %v3084
    %v3141 = vunpack.c.l.b16 %v3085
    %v3142 = vunpack.c.l.b16 %v3086
    %v3143 = vunpack.c.l.b16 %v3087
    %v3144 = vunpack.c.l.b16 %v3088
    %v3145 = vunpack.c.l.b16 %v3089
    %v3146 = vunpack.c.l.b16 %v3090
    %v3147 = vunpack.c.l.b16 %v3091
    %v3148 = vunpack.c.l.b16 %v3092
    %v3149 = vunpack.c.l.b16 %v3093
    %v3150 = vpack.c.b16 %v3135, %v3134
    %v3151 = vpack.c.b16 %v3137, %v3136
    %v3152 = vpack.c.b16 %v3139, %v3138
    %v3153 = vpack.c.b16 %v3141, %v3140
    %v3154 = vpack.c.b16 %v3143, %v3142
    %v3155 = vpack.c.b16 %v3145, %v3144
    %v3156 = vpack.c.b16 %v3147, %v3146
    %v3157 = vpack.c.b16 %v3149, %v3148
    %3166 = vmatprep.subr.bf16.mxu0 0
    %3167 = vmatpush1.bf16.msra.mxu0 %v3150
    %3168 = vmatprep.subr.bf16.mxu0 0
    %3169 = vmatpush1.bf16.msra.mxu0 %v3151
    %3170 = vmatprep.subr.bf16.mxu0 0
    %3171 = vmatpush1.bf16.msra.mxu0 %v3152
    %3172 = vmatprep.subr.bf16.mxu0 0
    %3173 = vmatpush1.bf16.msra.mxu0 %v3153
    %3174 = vmatprep.subr.bf16.mxu0 0
    %3175 = vmatpush1.bf16.msra.mxu0 %v3154
    %3176 = vmatprep.subr.bf16.mxu0 0
    %3177 = vmatpush1.bf16.msra.mxu0 %v3155
    %3178 = vmatprep.subr.bf16.mxu0 0
    %3179 = vmatpush1.bf16.msra.mxu0 %v3156
    %3180 = vmatprep.subr.bf16.mxu0 0
    %3181 = vmatpush1.bf16.msra.mxu0 %v3157
    %3182 = vmatprep.subr.bf16.mxu0 0
    %3183 = vmatpush1.bf16.msra.mxu0 0
    %3184 = vmatprep.subr.bf16.mxu0 0
    %3185 = vmatpush1.bf16.msra.mxu0 0
    %3186 = vmatprep.subr.bf16.mxu0 0
    %3187 = vmatpush1.bf16.msra.mxu0 0
    %3188 = vmatprep.subr.bf16.mxu0 0
    %3189 = vmatpush1.bf16.msra.mxu0 0
    %3190 = vmatprep.subr.bf16.mxu0 0
    %3191 = vmatpush1.bf16.msra.mxu0 0
    %3192 = vmatprep.subr.bf16.mxu0 0
    %3193 = vmatpush1.bf16.msra.mxu0 0
    %3194 = vmatprep.subr.bf16.mxu0 0
    %3195 = vmatpush1.bf16.msra.mxu0 0
    %3196 = vmatprep.subr.bf16.mxu0 0
    %3197 = vmatpush1.bf16.msra.mxu0 0
    %3198 = vmatprep.mubr.bf16.mxu0 0
    %3199 = vmatmul.mubr.bf16.gmra.mrb[0].mxu0 %v599
    %v3200 = vpop.f32.mrb[0].mxu0
    %v3201 = vadd.f32 %v3116, %v3200
    %v3202 = vpop.f32.mrb[0].mxu0
    %v3203 = vpop.f32.mrb[0].mxu0
    %v3204 = vadd.f32 %v3116, %v3203
    %v3205 = vpop.f32.mrb[0].mxu0
    %3206 = vdwg.mxu0
    %v3207 = vmax.f32 %v3201, 0.0
    %v3208 = vmax.f32 %v3204, 0.0
    %v3209 = vpack.c.bf16 %v3208, %v3207
    %v3211 = vlaneseq
    %v3212 = vshrl.u32 %v3211, 7
    %v3213 = vsub.s32 0, %v3212
    %v3214 = vrot.slane %v3111, %v3213
    %v3232 = vunpack.c.l.b16 %v3094
    %v3233 = vunpack.c.l.b16 %v3095
    %v3234 = vunpack.c.l.b16 %v3096
    %v3235 = vunpack.c.l.b16 %v3097
    %v3236 = vunpack.c.l.b16 %v3098
    %v3237 = vunpack.c.l.b16 %v3099
    %v3238 = vunpack.c.l.b16 %v3100
    %v3239 = vunpack.c.l.b16 %v3101
    %v3240 = vunpack.c.l.b16 %v3102
    %v3241 = vunpack.c.l.b16 %v3103
    %v3242 = vunpack.c.l.b16 %v3104
    %v3243 = vunpack.c.l.b16 %v3105
    %v3244 = vunpack.c.l.b16 %v3106
    %v3245 = vunpack.c.l.b16 %v3107
    %v3246 = vunpack.c.l.b16 %v3108
    %v3247 = vunpack.c.l.b16 %v3109
    %v3248 = vpack.c.b16 %v3233, %v3232
    %v3249 = vpack.c.b16 %v3235, %v3234
    %v3250 = vpack.c.b16 %v3237, %v3236
    %v3251 = vpack.c.b16 %v3239, %v3238
    %v3252 = vpack.c.b16 %v3241, %v3240
    %v3253 = vpack.c.b16 %v3243, %v3242
    %v3254 = vpack.c.b16 %v3245, %v3244
    %v3255 = vpack.c.b16 %v3247, %v3246
    %3264 = vmatprep.subr.bf16.mxu0 0
    %3265 = vmatpush1.bf16.msra.mxu0 %v3248
    %3266 = vmatprep.subr.bf16.mxu0 0
    %3267 = vmatpush1.bf16.msra.mxu0 %v3249
    %3268 = vmatprep.subr.bf16.mxu0 0
    %3269 = vmatpush1.bf16.msra.mxu0 %v3250
    %3270 = vmatprep.subr.bf16.mxu0 0
    %3271 = vmatpush1.bf16.msra.mxu0 %v3251
    %3272 = vmatprep.subr.bf16.mxu0 0
    %3273 = vmatpush1.bf16.msra.mxu0 %v3252
    %3274 = vmatprep.subr.bf16.mxu0 0
    %3275 = vmatpush1.bf16.msra.mxu0 %v3253
    %3276 = vmatprep.subr.bf16.mxu0 0
    %3277 = vmatpush1.bf16.msra.mxu0 %v3254
    %3278 = vmatprep.subr.bf16.mxu0 0
    %3279 = vmatpush1.bf16.msra.mxu0 %v3255
    %3280 = vmatprep.subr.bf16.mxu0 0
    %3281 = vmatpush1.bf16.msra.mxu0 0
    %3282 = vmatprep.subr.bf16.mxu0 0
    %3283 = vmatpush1.bf16.msra.mxu0 0
    %3284 = vmatprep.subr.bf16.mxu0 0
    %3285 = vmatpush1.bf16.msra.mxu0 0
    %3286 = vmatprep.subr.bf16.mxu0 0
    %3287 = vmatpush1.bf16.msra.mxu0 0
    %3288 = vmatprep.subr.bf16.mxu0 0
    %3289 = vmatpush1.bf16.msra.mxu0 0
    %3290 = vmatprep.subr.bf16.mxu0 0
    %3291 = vmatpush1.bf16.msra.mxu0 0
    %3292 = vmatprep.subr.bf16.mxu0 0
    %3293 = vmatpush1.bf16.msra.mxu0 0
    %3294 = vmatprep.subr.bf16.mxu0 0
    %3295 = vmatpush1.bf16.msra.mxu0 0
    %3296 = vmatprep.mubr.bf16.mxu0 0
    %3297 = vmatmul.mubr.bf16.gmra.mrb[0].mxu0 %v3209
    %v3298 = vpop.f32.mrb[0].mxu0
    %v3299 = vadd.f32 %v3214, %v3298
    %v3300 = vpop.f32.mrb[0].mxu0
    %v3301 = vpop.f32.mrb[0].mxu0
    %v3302 = vadd.f32 %v3214, %v3301
    %v3303 = vpop.f32.mrb[0].mxu0
    %3304 = vdwg.mxu0
    %v3305 = vmax.f32 %v3299, 0.0
    %v3306 = vmax.f32 %v3302, 0.0
    %3307 = vst [vmem:[#allocation29] sm:$0xff] %v3305
    %3308 = vst [vmem:[#allocation29 + $0x8] sm:$0xff] %v3306
    %3309 = vmatprep.subr.bf16.mxu0 0
    %3310 = vmatpush1.bf16.msra.mxu0 %v3150
    %3311 = vmatprep.subr.bf16.mxu0 0
    %3312 = vmatpush1.bf16.msra.mxu0 %v3151
    %3313 = vmatprep.subr.bf16.mxu0 0
    %3314 = vmatpush1.bf16.msra.mxu0 %v3152
    %3315 = vmatprep.subr.bf16.mxu0 0
    %3316 = vmatpush1.bf16.msra.mxu0 %v3153
    %3317 = vmatprep.subr.bf16.mxu0 0
    %3318 = vmatpush1.bf16.msra.mxu0 %v3154
    %3319 = vmatprep.subr.bf16.mxu0 0
    %3320 = vmatpush1.bf16.msra.mxu0 %v3155
    %3321 = vmatprep.subr.bf16.mxu0 0
    %3322 = vmatpush1.bf16.msra.mxu0 %v3156
    %3323 = vmatprep.subr.bf16.mxu0 0
    %3324 = vmatpush1.bf16.msra.mxu0 %v3157
    %3325 = vmatprep.subr.bf16.mxu0 0
    %3326 = vmatpush1.bf16.msra.mxu0 0
    %3327 = vmatprep.subr.bf16.mxu0 0
    %3328 = vmatpush1.bf16.msra.mxu0 0
    %3329 = vmatprep.subr.bf16.mxu0 0
    %3330 = vmatpush1.bf16.msra.mxu0 0
    %3331 = vmatprep.subr.bf16.mxu0 0
    %3332 = vmatpush1.bf16.msra.mxu0 0
    %3333 = vmatprep.subr.bf16.mxu0 0
    %3334 = vmatpush1.bf16.msra.mxu0 0
    %3335 = vmatprep.subr.bf16.mxu0 0
    %3336 = vmatpush1.bf16.msra.mxu0 0
    %3337 = vmatprep.subr.bf16.mxu0 0
    %3338 = vmatpush1.bf16.msra.mxu0 0
    %3339 = vmatprep.subr.bf16.mxu0 0
    %3340 = vmatpush1.bf16.msra.mxu0 0
    %3341 = vmatprep.mubr.bf16.mxu0 0
    %3342 = vmatmul.mubr.bf16.gmra.mrb[0].mxu0 %v600
    %v3343 = vpop.f32.mrb[0].mxu0
    %v3344 = vadd.f32 %v3116, %v3343
    %v3345 = vpop.f32.mrb[0].mxu0
    %v3346 = vpop.f32.mrb[0].mxu0
    %v3347 = vadd.f32 %v3116, %v3346
    %v3348 = vpop.f32.mrb[0].mxu0
    %3349 = vdwg.mxu0
    %v3350 = vmax.f32 %v3344, 0.0
    %v3351 = vmax.f32 %v3347, 0.0
    %v3352 = vpack.c.bf16 %v3351, %v3350
    %3353 = vmatprep.subr.bf16.mxu0 0
    %3354 = vmatpush1.bf16.msra.mxu0 %v3248
    %3355 = vmatprep.subr.bf16.mxu0 0
    %3356 = vmatpush1.bf16.msra.mxu0 %v3249
    %3357 = vmatprep.subr.bf16.mxu0 0
    %3358 = vmatpush1.bf16.msra.mxu0 %v3250
    %3359 = vmatprep.subr.bf16.mxu0 0
    %3360 = vmatpush1.bf16.msra.mxu0 %v3251
    %3361 = vmatprep.subr.bf16.mxu0 0
    %3362 = vmatpush1.bf16.msra.mxu0 %v3252
    %3363 = vmatprep.subr.bf16.mxu0 0
    %3364 = vmatpush1.bf16.msra.mxu0 %v3253
    %3365 = vmatprep.subr.bf16.mxu0 0
    %3366 = vmatpush1.bf16.msra.mxu0 %v3254
    %3367 = vmatprep.subr.bf16.mxu0 0
    %3368 = vmatpush1.bf16.msra.mxu0 %v3255
    %3369 = vmatprep.subr.bf16.mxu0 0
    %3370 = vmatpush1.bf16.msra.mxu0 0
    %3371 = vmatprep.subr.bf16.mxu0 0
    %3372 = vmatpush1.bf16.msra.mxu0 0
    %3373 = vmatprep.subr.bf16.mxu0 0
    %3374 = vmatpush1.bf16.msra.mxu0 0
    %3375 = vmatprep.subr.bf16.mxu0 0
    %3376 = vmatpush1.bf16.msra.mxu0 0
    %3377 = vmatprep.subr.bf16.mxu0 0
    %3378 = vmatpush1.bf16.msra.mxu0 0
    %3379 = vmatprep.subr.bf16.mxu0 0
    %3380 = vmatpush1.bf16.msra.mxu0 0
    %3381 = vmatprep.subr.bf16.mxu0 0
    %3382 = vmatpush1.bf16.msra.mxu0 0
    %3383 = vmatprep.subr.bf16.mxu0 0
    %3384 = vmatpush1.bf16.msra.mxu0 0
    %3385 = vmatprep.mubr.bf16.mxu0 0
    %3386 = vmatmul.mubr.bf16.gmra.mrb[0].mxu0 %v3352
    %v3387 = vpop.f32.mrb[0].mxu0
    %v3388 = vadd.f32 %v3214, %v3387
    %v3389 = vpop.f32.mrb[0].mxu0
    %v3390 = vpop.f32.mrb[0].mxu0
    %v3391 = vadd.f32 %v3214, %v3390
    %v3392 = vpop.f32.mrb[0].mxu0
    %3393 = vdwg.mxu0
    %v3394 = vmax.f32 %v3388, 0.0
    %v3395 = vmax.f32 %v3391, 0.0
    %3396 = vst [vmem:[#allocation29 + $0x10] sm:$0xff] %v3394
    %3397 = vst [vmem:[#allocation29 + $0x18] sm:$0xff] %v3395
    // Predicated region
    $region181: #{tpu_custom_call.1} parent=1 // pred_check
      _
    $region182: #{tpu_custom_call.1} parent=1 // pred_check_branch
      %3399 = sbr.rel (0) target = $region184
    $region183: #{tpu_custom_call.1} parent=1 // pred_region
      %s3401 = ssub.s32 512, 512
      %3402 = vsyncadd [#allocation4], %s3401
      %s3403 = sshll.u32 [#allocation29], 4
      %s3404 = int_to_ptr.vmem [resolvable:$true] %s3403
      %3409 = dma.vmem_to_hbm [thread:$0]  %s3404, 512, %s26, [#allocation4], 128, 128, 8
    $region184: #{tpu_custom_call.1} parent=1 // pred_fallthru
      _
    // Predicated region
    $region185: #{tpu_custom_call.1} parent=1 // pred_check
      _
    $region186: #{tpu_custom_call.1} parent=1 // pred_check_branch
      %3411 = sbr.rel (0) target = $region188
    $region187: #{tpu_custom_call.1} parent=1 // pred_region
      %3412 = dma.done [#allocation4], 512
    $region188: #{tpu_custom_call.1} parent=1 // pred_fallthru
      _
    %3413 = vsyncpa [#allocation3], 1
    %3414 = vsyncpa [#allocation6], 1
    %3415 = vsyncpa [#allocation9], 1
    %3416 = vsyncpa [#allocation12], 1
    %3417 = vsyncpa [#allocation15], 1
    %3418 = vsyncpa [#allocation18], 1
    %3419 = vsyncpa [#allocation21], 1
    %3420 = vsyncpa [#allocation24], 1
    %3421 = vsyncpa [#allocation27], 1
    %3422 = vsyncpa [#allocation4], 1

</llo_original>
